<compile_context>
chip_gen: v5e
topology: v5e:2x2
jax: 0.10.0
libtpu: 0.0.40
codegen_flags: <defaults>
</compile_context>

<pallas_src>
import functools
import math

import jax
import jax.numpy as jnp
from jax.experimental import pallas as pl
from jax.experimental.pallas import tpu as pltpu


# ---------------------------------------------------------------------------
# Hardware-aware helpers (safe fallbacks if introspection is unavailable).
# ---------------------------------------------------------------------------
def _num_tensorcores():
    try:
        info = pltpu.get_tpu_info()
        for attr in ("num_cores", "core_count", "tensorcore_count", "num_tensor_cores"):
            val = getattr(info, attr, None)
            if isinstance(val, int) and val > 0:
                return val
    except Exception:
        pass
    try:
        kind = jax.devices()[0].device_kind.lower()
        if "v7" in kind:
            return 2
    except Exception:
        pass
    return 1


def _vmem_budget_bytes():
    try:
        cap = int(pltpu.get_tpu_info().vmem_capacity_bytes)
    except Exception:
        cap = 64 * 1024 * 1024
    # Leave headroom for double-buffered weight blocks + pipeline overhead.
    return max(8 * 1024 * 1024, cap // 4)


def _pick_batch_tile(b, n, c, itemsize):
    """Batch elements per grid step.  One full-size step on single-TC chips
    (v5e/v6e); split across the two TensorCores on v7x when possible."""
    ncores = _num_tensorcores()
    tb = b
    if ncores >= 2 and b >= ncores and b % ncores == 0:
        tb = b // ncores

    def step_bytes(t):
        # x block + qkv (f32) + head outputs / merged output (f32) + scores.
        return t * n * (c * itemsize + 3 * c * 4 + 2 * c * 4) + t * n * n * 8

    budget = _vmem_budget_bytes()
    while tb > 1 and step_bytes(tb) > budget:
        tb -= 1
    while b % tb:
        tb -= 1
    return tb


# ---------------------------------------------------------------------------
# Fused kernel: qkv linear -> per-head SDPA -> head merge -> output projection.
# Block = (TB, N, C) tokens; weights/biases are whole-array blocks.
# ---------------------------------------------------------------------------
def _fused_attention_kernel(x_ref, wqkv_ref, bqkv_ref, wproj_ref, bproj_ref,
                            o_ref, *, num_heads, scale):
    tb, n, c = x_ref.shape
    d = c // num_heads

    # ---- qkv projection: bf16 MXU feed, f32 accumulation ----
    x2d = x_ref[...].reshape(tb * n, c).astype(jnp.bfloat16)
    qkv = jnp.dot(x2d, wqkv_ref[...], preferred_element_type=jnp.float32)
    qkv = qkv + bqkv_ref[...]                       # (tb*n, 3c) + (1, 3c)
    qkv = qkv.reshape(tb, n, 3 * c)

    # ---- per-head scaled-dot-product attention ----
    # Channel layout of the 3c axis is [s=0..2][h=0..H-1][d=0..D-1], matching
    # torch's reshape(B, N, 3, H, D).permute(2, 0, 3, 1, 4).
    head_outs = []
    for h in range(num_heads):
        q = qkv[:, :, h * d:(h + 1) * d].astype(jnp.bfloat16)              # (tb, n, d)
        k = qkv[:, :, c + h * d:c + (h + 1) * d].astype(jnp.bfloat16)
        v = qkv[:, :, 2 * c + h * d:2 * c + (h + 1) * d].astype(jnp.bfloat16)

        s = jnp.einsum("bqd,bkd->bqk", q, k,
                       preferred_element_type=jnp.float32)                 # (tb, n, n)
        m = jnp.max(s, axis=-1, keepdims=True)
        p = jnp.exp((s - m) * scale)          # scale folded into exp arg (f32)
        denom = jnp.sum(p, axis=-1, keepdims=True)
        w = p * pl.reciprocal(denom, approx=False)                         # exact
        o_h = jnp.einsum("bqk,bkd->bqd", w.astype(jnp.bfloat16), v,
                         preferred_element_type=jnp.float32)               # (tb, n, d)
        head_outs.append(o_h)

    # Head merge == torch's transpose(1, 2).reshape(B, N, C): channel = h*D + d.
    attn_out = jnp.concatenate(head_outs, axis=-1)                         # (tb, n, c)

    # ---- output projection ----
    o2d = attn_out.reshape(tb * n, c).astype(jnp.bfloat16)
    out = jnp.dot(o2d, wproj_ref[...], preferred_element_type=jnp.float32)
    out = out + bproj_ref[...]
    o_ref[...] = out.reshape(tb, n, c).astype(o_ref.dtype)


# ---------------------------------------------------------------------------
# Module forward (dropout = 0.0, matching module defaults).
# Weights use the (in_features, out_features) convention: y = x @ W + b.
# ---------------------------------------------------------------------------
@functools.partial(jax.jit, static_argnames=("num_heads",))
def test_attention_forward(x, w_qkv, b_qkv, w_proj, b_proj, *, num_heads):
    b, n, c = x.shape
    assert c % num_heads == 0, "dim should be divisible by num_heads"
    d = c // num_heads
    scale = d ** (-0.5)

    # bf16 weights for full-rate MXU; accumulation stays f32 inside the kernel.
    w_qkv_bf = w_qkv.astype(jnp.bfloat16)
    w_proj_bf = w_proj.astype(jnp.bfloat16)
    b_qkv2d = b_qkv.reshape(1, 3 * c).astype(jnp.float32)
    b_proj2d = b_proj.reshape(1, c).astype(jnp.float32)

    tb = _pick_batch_tile(b, n, c, x.dtype.itemsize)
    grid = (b // tb,)

    kernel = functools.partial(_fused_attention_kernel,
                               num_heads=num_heads, scale=scale)

    return pl.pallas_call(
        kernel,
        out_shape=jax.ShapeDtypeStruct((b, n, c), x.dtype),
        grid=grid,
        in_specs=[
            pl.BlockSpec((tb, n, c), lambda i: (i, 0, 0)),       # x
            pl.BlockSpec((c, 3 * c), lambda i: (0, 0)),          # w_qkv (bf16)
            pl.BlockSpec((1, 3 * c), lambda i: (0, 0)),          # b_qkv
            pl.BlockSpec((c, c), lambda i: (0, 0)),              # w_proj (bf16)
            pl.BlockSpec((1, c), lambda i: (0, 0)),              # b_proj
        ],
        out_specs=pl.BlockSpec((tb, n, c), lambda i: (i, 0, 0)),
        compiler_params=pltpu.CompilerParams(
            dimension_semantics=("parallel",),
        ),
    )(x, w_qkv_bf, b_qkv2d, w_proj_bf, b_proj2d)


# ---------------------------------------------------------------------------
# Plain-JAX reference (mirrors the torch forward exactly, f32/HIGHEST).
# ---------------------------------------------------------------------------
def _reference_forward(x, w_qkv, b_qkv, w_proj, b_proj, *, num_heads):
    hp = jax.lax.Precision.HIGHEST
    b, n, c = x.shape
    d = c // num_heads
    scale = d ** (-0.5)

    qkv = jnp.einsum("bnc,cf->bnf", x, w_qkv, precision=hp) + b_qkv
    qkv = jnp.transpose(qkv.reshape(b, n, 3, num_heads, d), (2, 0, 3, 1, 4))
    q, k, v = qkv[0], qkv[1], qkv[2]                         # (B, H, N, D)

    attn = jnp.einsum("bhqd,bhkd->bhqk", q, k, precision=hp) * scale
    attn = jax.nn.softmax(attn, axis=-1)
    o = jnp.einsum("bhqk,bhkd->bhqd", attn, v, precision=hp)
    o = jnp.transpose(o, (0, 2, 1, 3)).reshape(b, n, c)
    return jnp.einsum("bnc,cf->bnf", o, w_proj, precision=hp) + b_proj


if __name__ == "__main__":
    key = jax.random.PRNGKey(0)
    kx, kw1, kw2, kb2 = jax.random.split(key, 4)

    # Small ViT-style shapes; head_dim = 128 keeps kernel stores lane-dense.
    B, N, DIM, HEADS = 2, 16, 512, 4          # head_dim = 128

    x = jax.random.normal(kx, (B, N, DIM), dtype=jnp.float32)
    w_qkv = jax.random.normal(kw1, (DIM, 3 * DIM), dtype=jnp.float32) / math.sqrt(DIM)
    b_qkv = jnp.zeros((3 * DIM,), dtype=jnp.float32)    # qkv_bias=False default
    w_proj = jax.random.normal(kw2, (DIM, DIM), dtype=jnp.float32) / math.sqrt(DIM)
    b_proj = jax.random.normal(kb2, (DIM,), dtype=jnp.float32) * 0.1

    out = test_attention_forward(x, w_qkv, b_qkv, w_proj, b_proj, num_heads=HEADS)
    out = jax.block_until_ready(out)

    ref = _reference_forward(x, w_qkv, b_qkv, w_proj, b_proj, num_heads=HEADS)
    assert out.shape == (B, N, DIM)
    # Kernel feeds the MXU bf16 operands (f32 accumulation, f32 softmax), so
    # the tolerance reflects bf16 operand rounding vs the f32/HIGHEST reference.
    assert jnp.allclose(out, ref, atol=3e-2, rtol=3e-2), "mismatch vs reference"

    print("KERNEL_OK")
</pallas_src>

<mosaic_0001>
module attributes {stable_mosaic.version = 11 : i64} {
  func.func @_fused_attention_kernel(%arg0: i32, %arg1: memref<2x16x512xf32, #tpu.memory_space<vmem>>, %arg2: memref<512x1536xbf16, #tpu.memory_space<vmem>>, %arg3: memref<1x1536xf32, #tpu.memory_space<vmem>>, %arg4: memref<512x512xbf16, #tpu.memory_space<vmem>>, %arg5: memref<1x512xf32, #tpu.memory_space<vmem>>, %arg6: memref<2x16x512xf32, #tpu.memory_space<vmem>>) attributes {dimension_semantics = [#tpu.dimension_semantics<parallel>], iteration_bounds = array<i64: 1>, scalar_prefetch = 0 : i64, scratch_operands = 0 : i64, tpu.core_type = #tpu.core_type<tc>, window_params = [{transform_indices = @transform_0, window_bounds = array<i64: 2, 16, 512>}, {pipeline_mode = #tpu.pipeline_mode<synchronous>, transform_indices = @transform_1, window_bounds = array<i64: 512, 1536>}, {pipeline_mode = #tpu.pipeline_mode<synchronous>, transform_indices = @transform_2, window_bounds = array<i64: 1, 1536>}, {pipeline_mode = #tpu.pipeline_mode<synchronous>, transform_indices = @transform_3, window_bounds = array<i64: 512, 512>}, {pipeline_mode = #tpu.pipeline_mode<synchronous>, transform_indices = @transform_4, window_bounds = array<i64: 1, 512>}, {transform_indices = @transform_5, window_bounds = array<i64: 2, 16, 512>}]} {
    %c0 = arith.constant 0 : index
    %c0_0 = arith.constant 0 : index
    %c0_1 = arith.constant 0 : index
    %0 = vector.load %arg1[%c0, %c0_0, %c0_1] : memref<2x16x512xf32, #tpu.memory_space<vmem>>, vector<2x16x512xf32>
    %1 = vector.shape_cast %0 : vector<2x16x512xf32> to vector<32x512xf32>
    %2 = arith.truncf %1 : vector<32x512xf32> to vector<32x512xbf16>
    %c0_2 = arith.constant 0 : index
    %c0_3 = arith.constant 0 : index
    %3 = vector.load %arg2[%c0_2, %c0_3] : memref<512x1536xbf16, #tpu.memory_space<vmem>>, vector<512x1536xbf16>
    %cst = arith.constant dense<0.000000e+00> : vector<32x1536xf32>
    %4 = tpu.matmul %2, %3, %cst {dimension_numbers = #tpu.dot_dimension_numbers<[1], [0], [0], [1], [0, 0, 1, 1], [], []>} : vector<32x512xbf16>, vector<512x1536xbf16>, vector<32x1536xf32> -> vector<32x1536xf32>
    %c0_4 = arith.constant 0 : index
    %c0_5 = arith.constant 0 : index
    %5 = vector.load %arg3[%c0_4, %c0_5] : memref<1x1536xf32, #tpu.memory_space<vmem>>, vector<1x1536xf32>
    %6 = vector.broadcast %5 : vector<1x1536xf32> to vector<32x1536xf32>
    %7 = arith.addf %4, %6 : vector<32x1536xf32>
    %8 = vector.shape_cast %7 : vector<32x1536xf32> to vector<2x16x1536xf32>
    %9 = vector.extract_strided_slice %8 {offsets = [0, 0, 0], sizes = [2, 16, 128], strides = [1, 1, 1]} : vector<2x16x1536xf32> to vector<2x16x128xf32>
    %10 = arith.truncf %9 : vector<2x16x128xf32> to vector<2x16x128xbf16>
    %11 = vector.extract_strided_slice %8 {offsets = [0, 0, 512], sizes = [2, 16, 128], strides = [1, 1, 1]} : vector<2x16x1536xf32> to vector<2x16x128xf32>
    %12 = arith.truncf %11 : vector<2x16x128xf32> to vector<2x16x128xbf16>
    %13 = vector.extract_strided_slice %8 {offsets = [0, 0, 1024], sizes = [2, 16, 128], strides = [1, 1, 1]} : vector<2x16x1536xf32> to vector<2x16x128xf32>
    %14 = arith.truncf %13 : vector<2x16x128xf32> to vector<2x16x128xbf16>
    "tpu.trace_start"() <{level = 10 : i32, message = "bqd,bkd->bqk"}> : () -> ()
    %cst_6 = arith.constant dense<0.000000e+00> : vector<2x16x16xf32>
    %15 = tpu.matmul %10, %12, %cst_6 {dimension_numbers = #tpu.dot_dimension_numbers<[2], [2], [1], [1], [0, 0, 0, 1, 1, 1], [0], [0]>} : vector<2x16x128xbf16>, vector<2x16x128xbf16>, vector<2x16x16xf32> -> vector<2x16x16xf32>
    "tpu.trace_stop"() : () -> ()
    %cst_7 = arith.constant dense<0xFF800000> : vector<2x16xf32>
    %16 = vector.multi_reduction <maximumf>, %15, %cst_7 [2] : vector<2x16x16xf32> to vector<2x16xf32>
    %17 = vector.shape_cast %16 : vector<2x16xf32> to vector<2x16x1xf32>
    %18 = vector.broadcast %17 : vector<2x16x1xf32> to vector<2x16x16xf32>
    %19 = arith.subf %15, %18 : vector<2x16x16xf32>
    %cst_8 = arith.constant 0.0883883461 : f32
    %20 = vector.broadcast %cst_8 : f32 to vector<2x16x16xf32>
    %21 = arith.mulf %19, %20 : vector<2x16x16xf32>
    %22 = math.exp %21 : vector<2x16x16xf32>
    %cst_9 = arith.constant dense<0.000000e+00> : vector<2x16xf32>
    %23 = vector.multi_reduction <add>, %22, %cst_9 [2] : vector<2x16x16xf32> to vector<2x16xf32>
    %24 = vector.shape_cast %23 : vector<2x16xf32> to vector<2x16x1xf32>
    %25 = tpu.reciprocal %24 : vector<2x16x1xf32> -> vector<2x16x1xf32>
    %26 = vector.broadcast %25 : vector<2x16x1xf32> to vector<2x16x16xf32>
    %27 = arith.mulf %22, %26 : vector<2x16x16xf32>
    %28 = arith.truncf %27 : vector<2x16x16xf32> to vector<2x16x16xbf16>
    "tpu.trace_start"() <{level = 10 : i32, message = "bqk,bkd->bqd"}> : () -> ()
    %cst_10 = arith.constant dense<0.000000e+00> : vector<2x16x128xf32>
    %29 = tpu.matmul %28, %14, %cst_10 {dimension_numbers = #tpu.dot_dimension_numbers<[2], [1], [1], [2], [0, 0, 0, 1, 1, 2], [0], [0]>} : vector<2x16x16xbf16>, vector<2x16x128xbf16>, vector<2x16x128xf32> -> vector<2x16x128xf32>
    "tpu.trace_stop"() : () -> ()
    %30 = vector.extract_strided_slice %8 {offsets = [0, 0, 128], sizes = [2, 16, 128], strides = [1, 1, 1]} : vector<2x16x1536xf32> to vector<2x16x128xf32>
    %31 = arith.truncf %30 : vector<2x16x128xf32> to vector<2x16x128xbf16>
    %32 = vector.extract_strided_slice %8 {offsets = [0, 0, 640], sizes = [2, 16, 128], strides = [1, 1, 1]} : vector<2x16x1536xf32> to vector<2x16x128xf32>
    %33 = arith.truncf %32 : vector<2x16x128xf32> to vector<2x16x128xbf16>
    %34 = vector.extract_strided_slice %8 {offsets = [0, 0, 1152], sizes = [2, 16, 128], strides = [1, 1, 1]} : vector<2x16x1536xf32> to vector<2x16x128xf32>
    %35 = arith.truncf %34 : vector<2x16x128xf32> to vector<2x16x128xbf16>
    "tpu.trace_start"() <{level = 10 : i32, message = "bqd,bkd->bqk"}> : () -> ()
    %cst_11 = arith.constant dense<0.000000e+00> : vector<2x16x16xf32>
    %36 = tpu.matmul %31, %33, %cst_11 {dimension_numbers = #tpu.dot_dimension_numbers<[2], [2], [1], [1], [0, 0, 0, 1, 1, 1], [0], [0]>} : vector<2x16x128xbf16>, vector<2x16x128xbf16>, vector<2x16x16xf32> -> vector<2x16x16xf32>
    "tpu.trace_stop"() : () -> ()
    %cst_12 = arith.constant dense<0xFF800000> : vector<2x16xf32>
    %37 = vector.multi_reduction <maximumf>, %36, %cst_12 [2] : vector<2x16x16xf32> to vector<2x16xf32>
    %38 = vector.shape_cast %37 : vector<2x16xf32> to vector<2x16x1xf32>
    %39 = vector.broadcast %38 : vector<2x16x1xf32> to vector<2x16x16xf32>
    %40 = arith.subf %36, %39 : vector<2x16x16xf32>
    %cst_13 = arith.constant 0.0883883461 : f32
    %41 = vector.broadcast %cst_13 : f32 to vector<2x16x16xf32>
    %42 = arith.mulf %40, %41 : vector<2x16x16xf32>
    %43 = math.exp %42 : vector<2x16x16xf32>
    %cst_14 = arith.constant dense<0.000000e+00> : vector<2x16xf32>
    %44 = vector.multi_reduction <add>, %43, %cst_14 [2] : vector<2x16x16xf32> to vector<2x16xf32>
    %45 = vector.shape_cast %44 : vector<2x16xf32> to vector<2x16x1xf32>
    %46 = tpu.reciprocal %45 : vector<2x16x1xf32> -> vector<2x16x1xf32>
    %47 = vector.broadcast %46 : vector<2x16x1xf32> to vector<2x16x16xf32>
    %48 = arith.mulf %43, %47 : vector<2x16x16xf32>
    %49 = arith.truncf %48 : vector<2x16x16xf32> to vector<2x16x16xbf16>
    "tpu.trace_start"() <{level = 10 : i32, message = "bqk,bkd->bqd"}> : () -> ()
    %cst_15 = arith.constant dense<0.000000e+00> : vector<2x16x128xf32>
    %50 = tpu.matmul %49, %35, %cst_15 {dimension_numbers = #tpu.dot_dimension_numbers<[2], [1], [1], [2], [0, 0, 0, 1, 1, 2], [0], [0]>} : vector<2x16x16xbf16>, vector<2x16x128xbf16>, vector<2x16x128xf32> -> vector<2x16x128xf32>
    "tpu.trace_stop"() : () -> ()
    %51 = vector.extract_strided_slice %8 {offsets = [0, 0, 256], sizes = [2, 16, 128], strides = [1, 1, 1]} : vector<2x16x1536xf32> to vector<2x16x128xf32>
    %52 = arith.truncf %51 : vector<2x16x128xf32> to vector<2x16x128xbf16>
    %53 = vector.extract_strided_slice %8 {offsets = [0, 0, 768], sizes = [2, 16, 128], strides = [1, 1, 1]} : vector<2x16x1536xf32> to vector<2x16x128xf32>
    %54 = arith.truncf %53 : vector<2x16x128xf32> to vector<2x16x128xbf16>
    %55 = vector.extract_strided_slice %8 {offsets = [0, 0, 1280], sizes = [2, 16, 128], strides = [1, 1, 1]} : vector<2x16x1536xf32> to vector<2x16x128xf32>
    %56 = arith.truncf %55 : vector<2x16x128xf32> to vector<2x16x128xbf16>
    "tpu.trace_start"() <{level = 10 : i32, message = "bqd,bkd->bqk"}> : () -> ()
    %cst_16 = arith.constant dense<0.000000e+00> : vector<2x16x16xf32>
    %57 = tpu.matmul %52, %54, %cst_16 {dimension_numbers = #tpu.dot_dimension_numbers<[2], [2], [1], [1], [0, 0, 0, 1, 1, 1], [0], [0]>} : vector<2x16x128xbf16>, vector<2x16x128xbf16>, vector<2x16x16xf32> -> vector<2x16x16xf32>
    "tpu.trace_stop"() : () -> ()
    %cst_17 = arith.constant dense<0xFF800000> : vector<2x16xf32>
    %58 = vector.multi_reduction <maximumf>, %57, %cst_17 [2] : vector<2x16x16xf32> to vector<2x16xf32>
    %59 = vector.shape_cast %58 : vector<2x16xf32> to vector<2x16x1xf32>
    %60 = vector.broadcast %59 : vector<2x16x1xf32> to vector<2x16x16xf32>
    %61 = arith.subf %57, %60 : vector<2x16x16xf32>
    %cst_18 = arith.constant 0.0883883461 : f32
    %62 = vector.broadcast %cst_18 : f32 to vector<2x16x16xf32>
    %63 = arith.mulf %61, %62 : vector<2x16x16xf32>
    %64 = math.exp %63 : vector<2x16x16xf32>
    %cst_19 = arith.constant dense<0.000000e+00> : vector<2x16xf32>
    %65 = vector.multi_reduction <add>, %64, %cst_19 [2] : vector<2x16x16xf32> to vector<2x16xf32>
    %66 = vector.shape_cast %65 : vector<2x16xf32> to vector<2x16x1xf32>
    %67 = tpu.reciprocal %66 : vector<2x16x1xf32> -> vector<2x16x1xf32>
    %68 = vector.broadcast %67 : vector<2x16x1xf32> to vector<2x16x16xf32>
    %69 = arith.mulf %64, %68 : vector<2x16x16xf32>
    %70 = arith.truncf %69 : vector<2x16x16xf32> to vector<2x16x16xbf16>
    "tpu.trace_start"() <{level = 10 : i32, message = "bqk,bkd->bqd"}> : () -> ()
    %cst_20 = arith.constant dense<0.000000e+00> : vector<2x16x128xf32>
    %71 = tpu.matmul %70, %56, %cst_20 {dimension_numbers = #tpu.dot_dimension_numbers<[2], [1], [1], [2], [0, 0, 0, 1, 1, 2], [0], [0]>} : vector<2x16x16xbf16>, vector<2x16x128xbf16>, vector<2x16x128xf32> -> vector<2x16x128xf32>
    "tpu.trace_stop"() : () -> ()
    %72 = vector.extract_strided_slice %8 {offsets = [0, 0, 384], sizes = [2, 16, 128], strides = [1, 1, 1]} : vector<2x16x1536xf32> to vector<2x16x128xf32>
    %73 = arith.truncf %72 : vector<2x16x128xf32> to vector<2x16x128xbf16>
    %74 = vector.extract_strided_slice %8 {offsets = [0, 0, 896], sizes = [2, 16, 128], strides = [1, 1, 1]} : vector<2x16x1536xf32> to vector<2x16x128xf32>
    %75 = arith.truncf %74 : vector<2x16x128xf32> to vector<2x16x128xbf16>
    %76 = vector.extract_strided_slice %8 {offsets = [0, 0, 1408], sizes = [2, 16, 128], strides = [1, 1, 1]} : vector<2x16x1536xf32> to vector<2x16x128xf32>
    %77 = arith.truncf %76 : vector<2x16x128xf32> to vector<2x16x128xbf16>
    "tpu.trace_start"() <{level = 10 : i32, message = "bqd,bkd->bqk"}> : () -> ()
    %cst_21 = arith.constant dense<0.000000e+00> : vector<2x16x16xf32>
    %78 = tpu.matmul %73, %75, %cst_21 {dimension_numbers = #tpu.dot_dimension_numbers<[2], [2], [1], [1], [0, 0, 0, 1, 1, 1], [0], [0]>} : vector<2x16x128xbf16>, vector<2x16x128xbf16>, vector<2x16x16xf32> -> vector<2x16x16xf32>
    "tpu.trace_stop"() : () -> ()
    %cst_22 = arith.constant dense<0xFF800000> : vector<2x16xf32>
    %79 = vector.multi_reduction <maximumf>, %78, %cst_22 [2] : vector<2x16x16xf32> to vector<2x16xf32>
    %80 = vector.shape_cast %79 : vector<2x16xf32> to vector<2x16x1xf32>
    %81 = vector.broadcast %80 : vector<2x16x1xf32> to vector<2x16x16xf32>
    %82 = arith.subf %78, %81 : vector<2x16x16xf32>
    %cst_23 = arith.constant 0.0883883461 : f32
    %83 = vector.broadcast %cst_23 : f32 to vector<2x16x16xf32>
    %84 = arith.mulf %82, %83 : vector<2x16x16xf32>
    %85 = math.exp %84 : vector<2x16x16xf32>
    %cst_24 = arith.constant dense<0.000000e+00> : vector<2x16xf32>
    %86 = vector.multi_reduction <add>, %85, %cst_24 [2] : vector<2x16x16xf32> to vector<2x16xf32>
    %87 = vector.shape_cast %86 : vector<2x16xf32> to vector<2x16x1xf32>
    %88 = tpu.reciprocal %87 : vector<2x16x1xf32> -> vector<2x16x1xf32>
    %89 = vector.broadcast %88 : vector<2x16x1xf32> to vector<2x16x16xf32>
    %90 = arith.mulf %85, %89 : vector<2x16x16xf32>
    %91 = arith.truncf %90 : vector<2x16x16xf32> to vector<2x16x16xbf16>
    "tpu.trace_start"() <{level = 10 : i32, message = "bqk,bkd->bqd"}> : () -> ()
    %cst_25 = arith.constant dense<0.000000e+00> : vector<2x16x128xf32>
    %92 = tpu.matmul %91, %77, %cst_25 {dimension_numbers = #tpu.dot_dimension_numbers<[2], [1], [1], [2], [0, 0, 0, 1, 1, 2], [0], [0]>} : vector<2x16x16xbf16>, vector<2x16x128xbf16>, vector<2x16x128xf32> -> vector<2x16x128xf32>
    "tpu.trace_stop"() : () -> ()
    %93 = tpu.concatenate %29, %50, %71, %92 in 2 : vector<2x16x128xf32>, vector<2x16x128xf32>, vector<2x16x128xf32>, vector<2x16x128xf32> -> vector<2x16x512xf32>
    %94 = vector.shape_cast %93 : vector<2x16x512xf32> to vector<32x512xf32>
    %95 = arith.truncf %94 : vector<32x512xf32> to vector<32x512xbf16>
    %c0_26 = arith.constant 0 : index
    %c0_27 = arith.constant 0 : index
    %96 = vector.load %arg4[%c0_26, %c0_27] : memref<512x512xbf16, #tpu.memory_space<vmem>>, vector<512x512xbf16>
    %cst_28 = arith.constant dense<0.000000e+00> : vector<32x512xf32>
    %97 = tpu.matmul %95, %96, %cst_28 {dimension_numbers = #tpu.dot_dimension_numbers<[1], [0], [0], [1], [0, 0, 1, 1], [], []>} : vector<32x512xbf16>, vector<512x512xbf16>, vector<32x512xf32> -> vector<32x512xf32>
    %c0_29 = arith.constant 0 : index
    %c0_30 = arith.constant 0 : index
    %98 = vector.load %arg5[%c0_29, %c0_30] : memref<1x512xf32, #tpu.memory_space<vmem>>, vector<1x512xf32>
    %99 = vector.broadcast %98 : vector<1x512xf32> to vector<32x512xf32>
    %100 = arith.addf %97, %99 : vector<32x512xf32>
    %101 = vector.shape_cast %100 : vector<32x512xf32> to vector<2x16x512xf32>
    %c0_31 = arith.constant 0 : index
    %c0_32 = arith.constant 0 : index
    %c0_33 = arith.constant 0 : index
    %102 = vector.load %arg6[%c0_31, %c0_32, %c0_33] : memref<2x16x512xf32, #tpu.memory_space<vmem>>, vector<2x16x512xf32>
    tpu.vector_store %arg6[%c0_31, %c0_32, %c0_33], %101 {strides = array<i32>} : memref<2x16x512xf32, #tpu.memory_space<vmem>>, vector<2x16x512xf32>,
    return
  }
  func.func @transform_0(%arg0: i32) -> (i32, i32, i32) {
    %c0_i32 = arith.constant 0 : i32
    %c0_i32_0 = arith.constant 0 : i32
    %c0_i32_1 = arith.constant 0 : i32
    return %arg0, %c0_i32, %c0_i32_0 : i32, i32, i32
  }
  func.func @transform_1(%arg0: i32) -> (i32, i32) {
    %c0_i32 = arith.constant 0 : i32
    %c0_i32_0 = arith.constant 0 : i32
    %c0_i32_1 = arith.constant 0 : i32
    return %c0_i32, %c0_i32_0 : i32, i32
  }
  func.func @transform_2(%arg0: i32) -> (i32, i32) {
    %c0_i32 = arith.constant 0 : i32
    %c0_i32_0 = arith.constant 0 : i32
    %c0_i32_1 = arith.constant 0 : i32
    return %c0_i32, %c0_i32_0 : i32, i32
  }
  func.func @transform_3(%arg0: i32) -> (i32, i32) {
    %c0_i32 = arith.constant 0 : i32
    %c0_i32_0 = arith.constant 0 : i32
    %c0_i32_1 = arith.constant 0 : i32
    return %c0_i32, %c0_i32_0 : i32, i32
  }
  func.func @transform_4(%arg0: i32) -> (i32, i32) {
    %c0_i32 = arith.constant 0 : i32
    %c0_i32_0 = arith.constant 0 : i32
    %c0_i32_1 = arith.constant 0 : i32
    return %c0_i32, %c0_i32_0 : i32, i32
  }
  func.func @transform_5(%arg0: i32) -> (i32, i32, i32) {
    %c0_i32 = arith.constant 0 : i32
    %c0_i32_0 = arith.constant 0 : i32
    %c0_i32_1 = arith.constant 0 : i32
    return %arg0, %c0_i32, %c0_i32_0 : i32, i32, i32
  }
}

</mosaic_0001>

<llo_original>
// kernel: test_attention_forward.1
$region0: #{test_attention_forward.1}
  #allocation0 [shape = 'u32[]', space=smem, size = 0x4, offset = 0x4, fixed_abs, tag = 'smem constant byte address 0x4 - core index']
  #allocation1 [shape = 'u32[72,128]{1,0:T(1,128)}', space=vmem, size = 0x9000, scoped, tag = 'internal scratch']
  %s0 = inlined_call_operand.vmem [shape: f32[2,16,512], index: 0, kind: input, shape index: {}]
  %s1 = inlined_call_operand.vmem [shape: bf16[512,1536], index: 1, kind: input, shape index: {}]
  %s2 = inlined_call_operand.vmem [shape: f32[1,1536], index: 2, kind: input, shape index: {}]
  %s3 = inlined_call_operand.vmem [shape: bf16[512,512], index: 3, kind: input, shape index: {}]
  %s4 = inlined_call_operand.vmem [shape: f32[1,512], index: 4, kind: input, shape index: {}]
  %s5 = inlined_call_operand.hbm [shape: f32[2,16,512], index: 5, kind: output, shape index: {}]
  %s6 = sld [smem:[#allocation0]]
  $region30: #{test_attention_forward.1} parent=0
    _
  %s8 = ssub.s32 1, %s6
  %s9 = scalar_select 0, %s8, %s6
  $region1: #{test_attention_forward.1} parent=0
    #allocation2 [shape = 'u8[65536]{0}', space=vmem, size = 0x10000, scoped, tag = 'output window, operand 0, single buffered']
    #allocation3 [shape = 's32[1]{0}', space=sflag, size = 0x4, scoped, tag = 'scoped memory for test_attention_forward.1']
    %10 = vsyncpa [#allocation3], 0
    // Predicated region
    $region2: #{test_attention_forward.1} parent=1 // pred_check
      _
    $region3: #{test_attention_forward.1} parent=1 // pred_check_branch
      %12 = sbr.rel (0) target = $region5
    $region4: #{test_attention_forward.1} parent=1 // pred_region
      _
    $region5: #{test_attention_forward.1} parent=1 // pred_fallthru
      _
    // Predicated region
    $region6: #{test_attention_forward.1} parent=1 // pred_check
      _
    $region7: #{test_attention_forward.1} parent=1 // pred_check_branch
      %14 = sbr.rel (0) target = $region9
    $region8: #{test_attention_forward.1} parent=1 // pred_region
      _
    $region9: #{test_attention_forward.1} parent=1 // pred_fallthru
      _
    // Predicated region
    $region10: #{test_attention_forward.1} parent=1 // pred_check
      _
    $region11: #{test_attention_forward.1} parent=1 // pred_check_branch
      %16 = sbr.rel (0) target = $region13
    $region12: #{test_attention_forward.1} parent=1 // pred_region
      _
    $region13: #{test_attention_forward.1} parent=1 // pred_fallthru
      _
    // Predicated region
    $region14: #{test_attention_forward.1} parent=1 // pred_check
      _
    $region15: #{test_attention_forward.1} parent=1 // pred_check_branch
      %18 = sbr.rel (0) target = $region17
    $region16: #{test_attention_forward.1} parent=1 // pred_region
      _
    $region17: #{test_attention_forward.1} parent=1 // pred_fallthru
      _
    // Predicated region
    $region18: #{test_attention_forward.1} parent=1 // pred_check
      _
    $region19: #{test_attention_forward.1} parent=1 // pred_check_branch
      %20 = sbr.rel (0) target = $region21
    $region20: #{test_attention_forward.1} parent=1 // pred_region
      _
    $region21: #{test_attention_forward.1} parent=1 // pred_fallthru
      _
    %v22 = vld [vmem:[%s0] sm:$0xff]
    %v23 = vld [vmem:[%s0 + $0x8] sm:$0xff]
    %v24 = vld [vmem:[%s0 + $0x10] sm:$0xff]
    %v25 = vld [vmem:[%s0 + $0x18] sm:$0xff]
    %v26 = vld [vmem:[%s0 + $0x20] sm:$0xff]
    %v27 = vld [vmem:[%s0 + $0x28] sm:$0xff]
    %v28 = vld [vmem:[%s0 + $0x30] sm:$0xff]
    %v29 = vld [vmem:[%s0 + $0x38] sm:$0xff]
    %v30 = vld [vmem:[%s0 + $0x40] sm:$0xff]
    %v31 = vld [vmem:[%s0 + $0x48] sm:$0xff]
    %v32 = vld [vmem:[%s0 + $0x50] sm:$0xff]
    %v33 = vld [vmem:[%s0 + $0x58] sm:$0xff]
    %v34 = vld [vmem:[%s0 + $0x60] sm:$0xff]
    %v35 = vld [vmem:[%s0 + $0x68] sm:$0xff]
    %v36 = vld [vmem:[%s0 + $0x70] sm:$0xff]
    %v37 = vld [vmem:[%s0 + $0x78] sm:$0xff]
    %v38 = vpack.c.bf16 %v26, %v22
    %v39 = vpack.c.bf16 %v27, %v23
    %v40 = vpack.c.bf16 %v28, %v24
    %v41 = vpack.c.bf16 %v29, %v25
    %v42 = vpack.c.bf16 %v34, %v30
    %v43 = vpack.c.bf16 %v35, %v31
    %v44 = vpack.c.bf16 %v36, %v32
    %v45 = vpack.c.bf16 %v37, %v33
    %v46 = vld [vmem:[%s1] sm:$0xff]
    %v47 = vld [vmem:[%s1 + $0x8] sm:$0xff]
    %v48 = vld [vmem:[%s1 + $0x10] sm:$0xff]
    %v49 = vld [vmem:[%s1 + $0x18] sm:$0xff]
    %v50 = vld [vmem:[%s1 + $0x20] sm:$0xff]
    %v51 = vld [vmem:[%s1 + $0x28] sm:$0xff]
    %v52 = vld [vmem:[%s1 + $0x30] sm:$0xff]
    %v53 = vld [vmem:[%s1 + $0x38] sm:$0xff]
    %v54 = vld [vmem:[%s1 + $0x40] sm:$0xff]
    %v55 = vld [vmem:[%s1 + $0x48] sm:$0xff]
    %v56 = vld [vmem:[%s1 + $0x50] sm:$0xff]
    %v57 = vld [vmem:[%s1 + $0x58] sm:$0xff]
    %v58 = vld [vmem:[%s1 + $0x60] sm:$0xff]
    %v59 = vld [vmem:[%s1 + $0x68] sm:$0xff]
    %v60 = vld [vmem:[%s1 + $0x70] sm:$0xff]
    %v61 = vld [vmem:[%s1 + $0x78] sm:$0xff]
    %v62 = vld [vmem:[%s1 + $0x80] sm:$0xff]
    %v63 = vld [vmem:[%s1 + $0x88] sm:$0xff]
    %v64 = vld [vmem:[%s1 + $0x90] sm:$0xff]
    %v65 = vld [vmem:[%s1 + $0x98] sm:$0xff]
    %v66 = vld [vmem:[%s1 + $0xa0] sm:$0xff]
    %v67 = vld [vmem:[%s1 + $0xa8] sm:$0xff]
    %v68 = vld [vmem:[%s1 + $0xb0] sm:$0xff]
    %v69 = vld [vmem:[%s1 + $0xb8] sm:$0xff]
    %v70 = vld [vmem:[%s1 + $0xc0] sm:$0xff]
    %v71 = vld [vmem:[%s1 + $0xc8] sm:$0xff]
    %v72 = vld [vmem:[%s1 + $0xd0] sm:$0xff]
    %v73 = vld [vmem:[%s1 + $0xd8] sm:$0xff]
    %v74 = vld [vmem:[%s1 + $0xe0] sm:$0xff]
    %v75 = vld [vmem:[%s1 + $0xe8] sm:$0xff]
    %v76 = vld [vmem:[%s1 + $0xf0] sm:$0xff]
    %v77 = vld [vmem:[%s1 + $0xf8] sm:$0xff]
    %v78 = vld [vmem:[%s1 + $0x100] sm:$0xff]
    %v79 = vld [vmem:[%s1 + $0x108] sm:$0xff]
    %v80 = vld [vmem:[%s1 + $0x110] sm:$0xff]
    %v81 = vld [vmem:[%s1 + $0x118] sm:$0xff]
    %v82 = vld [vmem:[%s1 + $0x120] sm:$0xff]
    %v83 = vld [vmem:[%s1 + $0x128] sm:$0xff]
    %v84 = vld [vmem:[%s1 + $0x130] sm:$0xff]
    %v85 = vld [vmem:[%s1 + $0x138] sm:$0xff]
    %v86 = vld [vmem:[%s1 + $0x140] sm:$0xff]
    %v87 = vld [vmem:[%s1 + $0x148] sm:$0xff]
    %v88 = vld [vmem:[%s1 + $0x150] sm:$0xff]
    %v89 = vld [vmem:[%s1 + $0x158] sm:$0xff]
    %v90 = vld [vmem:[%s1 + $0x160] sm:$0xff]
    %v91 = vld [vmem:[%s1 + $0x168] sm:$0xff]
    %v92 = vld [vmem:[%s1 + $0x170] sm:$0xff]
    %v93 = vld [vmem:[%s1 + $0x178] sm:$0xff]
    %v94 = vld [vmem:[%s1 + $0x180] sm:$0xff]
    %v95 = vld [vmem:[%s1 + $0x188] sm:$0xff]
    %v96 = vld [vmem:[%s1 + $0x190] sm:$0xff]
    %v97 = vld [vmem:[%s1 + $0x198] sm:$0xff]
    %v98 = vld [vmem:[%s1 + $0x1a0] sm:$0xff]
    %v99 = vld [vmem:[%s1 + $0x1a8] sm:$0xff]
    %v100 = vld [vmem:[%s1 + $0x1b0] sm:$0xff]
    %v101 = vld [vmem:[%s1 + $0x1b8] sm:$0xff]
    %v102 = vld [vmem:[%s1 + $0x1c0] sm:$0xff]
    %v103 = vld [vmem:[%s1 + $0x1c8] sm:$0xff]
    %v104 = vld [vmem:[%s1 + $0x1d0] sm:$0xff]
    %v105 = vld [vmem:[%s1 + $0x1d8] sm:$0xff]
    %v106 = vld [vmem:[%s1 + $0x1e0] sm:$0xff]
    %v107 = vld [vmem:[%s1 + $0x1e8] sm:$0xff]
    %v108 = vld [vmem:[%s1 + $0x1f0] sm:$0xff]
    %v109 = vld [vmem:[%s1 + $0x1f8] sm:$0xff]
    %v110 = vld [vmem:[%s1 + $0x200] sm:$0xff]
    %v111 = vld [vmem:[%s1 + $0x208] sm:$0xff]
    %v112 = vld [vmem:[%s1 + $0x210] sm:$0xff]
    %v113 = vld [vmem:[%s1 + $0x218] sm:$0xff]
    %v114 = vld [vmem:[%s1 + $0x220] sm:$0xff]
    %v115 = vld [vmem:[%s1 + $0x228] sm:$0xff]
    %v116 = vld [vmem:[%s1 + $0x230] sm:$0xff]
    %v117 = vld [vmem:[%s1 + $0x238] sm:$0xff]
    %v118 = vld [vmem:[%s1 + $0x240] sm:$0xff]
    %v119 = vld [vmem:[%s1 + $0x248] sm:$0xff]
    %v120 = vld [vmem:[%s1 + $0x250] sm:$0xff]
    %v121 = vld [vmem:[%s1 + $0x258] sm:$0xff]
    %v122 = vld [vmem:[%s1 + $0x260] sm:$0xff]
    %v123 = vld [vmem:[%s1 + $0x268] sm:$0xff]
    %v124 = vld [vmem:[%s1 + $0x270] sm:$0xff]
    %v125 = vld [vmem:[%s1 + $0x278] sm:$0xff]
    %v126 = vld [vmem:[%s1 + $0x280] sm:$0xff]
    %v127 = vld [vmem:[%s1 + $0x288] sm:$0xff]
    %v128 = vld [vmem:[%s1 + $0x290] sm:$0xff]
    %v129 = vld [vmem:[%s1 + $0x298] sm:$0xff]
    %v130 = vld [vmem:[%s1 + $0x2a0] sm:$0xff]
    %v131 = vld [vmem:[%s1 + $0x2a8] sm:$0xff]
    %v132 = vld [vmem:[%s1 + $0x2b0] sm:$0xff]
    %v133 = vld [vmem:[%s1 + $0x2b8] sm:$0xff]
    %v134 = vld [vmem:[%s1 + $0x2c0] sm:$0xff]
    %v135 = vld [vmem:[%s1 + $0x2c8] sm:$0xff]
    %v136 = vld [vmem:[%s1 + $0x2d0] sm:$0xff]
    %v137 = vld [vmem:[%s1 + $0x2d8] sm:$0xff]
    %v138 = vld [vmem:[%s1 + $0x2e0] sm:$0xff]
    %v139 = vld [vmem:[%s1 + $0x2e8] sm:$0xff]
    %v140 = vld [vmem:[%s1 + $0x2f0] sm:$0xff]
    %v141 = vld [vmem:[%s1 + $0x2f8] sm:$0xff]
    %v142 = vld [vmem:[%s1 + $0x300] sm:$0xff]
    %v143 = vld [vmem:[%s1 + $0x308] sm:$0xff]
    %v144 = vld [vmem:[%s1 + $0x310] sm:$0xff]
    %v145 = vld [vmem:[%s1 + $0x318] sm:$0xff]
    %v146 = vld [vmem:[%s1 + $0x320] sm:$0xff]
    %v147 = vld [vmem:[%s1 + $0x328] sm:$0xff]
    %v148 = vld [vmem:[%s1 + $0x330] sm:$0xff]
    %v149 = vld [vmem:[%s1 + $0x338] sm:$0xff]
    %v150 = vld [vmem:[%s1 + $0x340] sm:$0xff]
    %v151 = vld [vmem:[%s1 + $0x348] sm:$0xff]
    %v152 = vld [vmem:[%s1 + $0x350] sm:$0xff]
    %v153 = vld [vmem:[%s1 + $0x358] sm:$0xff]
    %v154 = vld [vmem:[%s1 + $0x360] sm:$0xff]
    %v155 = vld [vmem:[%s1 + $0x368] sm:$0xff]
    %v156 = vld [vmem:[%s1 + $0x370] sm:$0xff]
    %v157 = vld [vmem:[%s1 + $0x378] sm:$0xff]
    %v158 = vld [vmem:[%s1 + $0x380] sm:$0xff]
    %v159 = vld [vmem:[%s1 + $0x388] sm:$0xff]
    %v160 = vld [vmem:[%s1 + $0x390] sm:$0xff]
    %v161 = vld [vmem:[%s1 + $0x398] sm:$0xff]
    %v162 = vld [vmem:[%s1 + $0x3a0] sm:$0xff]
    %v163 = vld [vmem:[%s1 + $0x3a8] sm:$0xff]
    %v164 = vld [vmem:[%s1 + $0x3b0] sm:$0xff]
    %v165 = vld [vmem:[%s1 + $0x3b8] sm:$0xff]
    %v166 = vld [vmem:[%s1 + $0x3c0] sm:$0xff]
    %v167 = vld [vmem:[%s1 + $0x3c8] sm:$0xff]
    %v168 = vld [vmem:[%s1 + $0x3d0] sm:$0xff]
    %v169 = vld [vmem:[%s1 + $0x3d8] sm:$0xff]
    %v170 = vld [vmem:[%s1 + $0x3e0] sm:$0xff]
    %v171 = vld [vmem:[%s1 + $0x3e8] sm:$0xff]
    %v172 = vld [vmem:[%s1 + $0x3f0] sm:$0xff]
    %v173 = vld [vmem:[%s1 + $0x3f8] sm:$0xff]
    %v174 = vld [vmem:[%s1 + $0x400] sm:$0xff]
    %v175 = vld [vmem:[%s1 + $0x408] sm:$0xff]
    %v176 = vld [vmem:[%s1 + $0x410] sm:$0xff]
    %v177 = vld [vmem:[%s1 + $0x418] sm:$0xff]
    %v178 = vld [vmem:[%s1 + $0x420] sm:$0xff]
    %v179 = vld [vmem:[%s1 + $0x428] sm:$0xff]
    %v180 = vld [vmem:[%s1 + $0x430] sm:$0xff]
    %v181 = vld [vmem:[%s1 + $0x438] sm:$0xff]
    %v182 = vld [vmem:[%s1 + $0x440] sm:$0xff]
    %v183 = vld [vmem:[%s1 + $0x448] sm:$0xff]
    %v184 = vld [vmem:[%s1 + $0x450] sm:$0xff]
    %v185 = vld [vmem:[%s1 + $0x458] sm:$0xff]
    %v186 = vld [vmem:[%s1 + $0x460] sm:$0xff]
    %v187 = vld [vmem:[%s1 + $0x468] sm:$0xff]
    %v188 = vld [vmem:[%s1 + $0x470] sm:$0xff]
    %v189 = vld [vmem:[%s1 + $0x478] sm:$0xff]
    %v190 = vld [vmem:[%s1 + $0x480] sm:$0xff]
    %v191 = vld [vmem:[%s1 + $0x488] sm:$0xff]
    %v192 = vld [vmem:[%s1 + $0x490] sm:$0xff]
    %v193 = vld [vmem:[%s1 + $0x498] sm:$0xff]
    %v194 = vld [vmem:[%s1 + $0x4a0] sm:$0xff]
    %v195 = vld [vmem:[%s1 + $0x4a8] sm:$0xff]
    %v196 = vld [vmem:[%s1 + $0x4b0] sm:$0xff]
    %v197 = vld [vmem:[%s1 + $0x4b8] sm:$0xff]
    %v198 = vld [vmem:[%s1 + $0x4c0] sm:$0xff]
    %v199 = vld [vmem:[%s1 + $0x4c8] sm:$0xff]
    %v200 = vld [vmem:[%s1 + $0x4d0] sm:$0xff]
    %v201 = vld [vmem:[%s1 + $0x4d8] sm:$0xff]
    %v202 = vld [vmem:[%s1 + $0x4e0] sm:$0xff]
    %v203 = vld [vmem:[%s1 + $0x4e8] sm:$0xff]
    %v204 = vld [vmem:[%s1 + $0x4f0] sm:$0xff]
    %v205 = vld [vmem:[%s1 + $0x4f8] sm:$0xff]
    %v206 = vld [vmem:[%s1 + $0x500] sm:$0xff]
    %v207 = vld [vmem:[%s1 + $0x508] sm:$0xff]
    %v208 = vld [vmem:[%s1 + $0x510] sm:$0xff]
    %v209 = vld [vmem:[%s1 + $0x518] sm:$0xff]
    %v210 = vld [vmem:[%s1 + $0x520] sm:$0xff]
    %v211 = vld [vmem:[%s1 + $0x528] sm:$0xff]
    %v212 = vld [vmem:[%s1 + $0x530] sm:$0xff]
    %v213 = vld [vmem:[%s1 + $0x538] sm:$0xff]
    %v214 = vld [vmem:[%s1 + $0x540] sm:$0xff]
    %v215 = vld [vmem:[%s1 + $0x548] sm:$0xff]
    %v216 = vld [vmem:[%s1 + $0x550] sm:$0xff]
    %v217 = vld [vmem:[%s1 + $0x558] sm:$0xff]
    %v218 = vld [vmem:[%s1 + $0x560] sm:$0xff]
    %v219 = vld [vmem:[%s1 + $0x568] sm:$0xff]
    %v220 = vld [vmem:[%s1 + $0x570] sm:$0xff]
    %v221 = vld [vmem:[%s1 + $0x578] sm:$0xff]
    %v222 = vld [vmem:[%s1 + $0x580] sm:$0xff]
    %v223 = vld [vmem:[%s1 + $0x588] sm:$0xff]
    %v224 = vld [vmem:[%s1 + $0x590] sm:$0xff]
    %v225 = vld [vmem:[%s1 + $0x598] sm:$0xff]
    %v226 = vld [vmem:[%s1 + $0x5a0] sm:$0xff]
    %v227 = vld [vmem:[%s1 + $0x5a8] sm:$0xff]
    %v228 = vld [vmem:[%s1 + $0x5b0] sm:$0xff]
    %v229 = vld [vmem:[%s1 + $0x5b8] sm:$0xff]
    %v230 = vld [vmem:[%s1 + $0x5c0] sm:$0xff]
    %v231 = vld [vmem:[%s1 + $0x5c8] sm:$0xff]
    %v232 = vld [vmem:[%s1 + $0x5d0] sm:$0xff]
    %v233 = vld [vmem:[%s1 + $0x5d8] sm:$0xff]
    %v234 = vld [vmem:[%s1 + $0x5e0] sm:$0xff]
    %v235 = vld [vmem:[%s1 + $0x5e8] sm:$0xff]
    %v236 = vld [vmem:[%s1 + $0x5f0] sm:$0xff]
    %v237 = vld [vmem:[%s1 + $0x5f8] sm:$0xff]
    %v238 = vld [vmem:[%s1 + $0x600] sm:$0xff]
    %v239 = vld [vmem:[%s1 + $0x608] sm:$0xff]
    %v240 = vld [vmem:[%s1 + $0x610] sm:$0xff]
    %v241 = vld [vmem:[%s1 + $0x618] sm:$0xff]
    %v242 = vld [vmem:[%s1 + $0x620] sm:$0xff]
    %v243 = vld [vmem:[%s1 + $0x628] sm:$0xff]
    %v244 = vld [vmem:[%s1 + $0x630] sm:$0xff]
    %v245 = vld [vmem:[%s1 + $0x638] sm:$0xff]
    %v246 = vld [vmem:[%s1 + $0x640] sm:$0xff]
    %v247 = vld [vmem:[%s1 + $0x648] sm:$0xff]
    %v248 = vld [vmem:[%s1 + $0x650] sm:$0xff]
    %v249 = vld [vmem:[%s1 + $0x658] sm:$0xff]
    %v250 = vld [vmem:[%s1 + $0x660] sm:$0xff]
    %v251 = vld [vmem:[%s1 + $0x668] sm:$0xff]
    %v252 = vld [vmem:[%s1 + $0x670] sm:$0xff]
    %v253 = vld [vmem:[%s1 + $0x678] sm:$0xff]
    %v254 = vld [vmem:[%s1 + $0x680] sm:$0xff]
    %v255 = vld [vmem:[%s1 + $0x688] sm:$0xff]
    %v256 = vld [vmem:[%s1 + $0x690] sm:$0xff]
    %v257 = vld [vmem:[%s1 + $0x698] sm:$0xff]
    %v258 = vld [vmem:[%s1 + $0x6a0] sm:$0xff]
    %v259 = vld [vmem:[%s1 + $0x6a8] sm:$0xff]
    %v260 = vld [vmem:[%s1 + $0x6b0] sm:$0xff]
    %v261 = vld [vmem:[%s1 + $0x6b8] sm:$0xff]
    %v262 = vld [vmem:[%s1 + $0x6c0] sm:$0xff]
    %v263 = vld [vmem:[%s1 + $0x6c8] sm:$0xff]
    %v264 = vld [vmem:[%s1 + $0x6d0] sm:$0xff]
    %v265 = vld [vmem:[%s1 + $0x6d8] sm:$0xff]
    %v266 = vld [vmem:[%s1 + $0x6e0] sm:$0xff]
    %v267 = vld [vmem:[%s1 + $0x6e8] sm:$0xff]
    %v268 = vld [vmem:[%s1 + $0x6f0] sm:$0xff]
    %v269 = vld [vmem:[%s1 + $0x6f8] sm:$0xff]
    %v270 = vld [vmem:[%s1 + $0x700] sm:$0xff]
    %v271 = vld [vmem:[%s1 + $0x708] sm:$0xff]
    %v272 = vld [vmem:[%s1 + $0x710] sm:$0xff]
    %v273 = vld [vmem:[%s1 + $0x718] sm:$0xff]
    %v274 = vld [vmem:[%s1 + $0x720] sm:$0xff]
    %v275 = vld [vmem:[%s1 + $0x728] sm:$0xff]
    %v276 = vld [vmem:[%s1 + $0x730] sm:$0xff]
    %v277 = vld [vmem:[%s1 + $0x738] sm:$0xff]
    %v278 = vld [vmem:[%s1 + $0x740] sm:$0xff]
    %v279 = vld [vmem:[%s1 + $0x748] sm:$0xff]
    %v280 = vld [vmem:[%s1 + $0x750] sm:$0xff]
    %v281 = vld [vmem:[%s1 + $0x758] sm:$0xff]
    %v282 = vld [vmem:[%s1 + $0x760] sm:$0xff]
    %v283 = vld [vmem:[%s1 + $0x768] sm:$0xff]
    %v284 = vld [vmem:[%s1 + $0x770] sm:$0xff]
    %v285 = vld [vmem:[%s1 + $0x778] sm:$0xff]
    %v286 = vld [vmem:[%s1 + $0x780] sm:$0xff]
    %v287 = vld [vmem:[%s1 + $0x788] sm:$0xff]
    %v288 = vld [vmem:[%s1 + $0x790] sm:$0xff]
    %v289 = vld [vmem:[%s1 + $0x798] sm:$0xff]
    %v290 = vld [vmem:[%s1 + $0x7a0] sm:$0xff]
    %v291 = vld [vmem:[%s1 + $0x7a8] sm:$0xff]
    %v292 = vld [vmem:[%s1 + $0x7b0] sm:$0xff]
    %v293 = vld [vmem:[%s1 + $0x7b8] sm:$0xff]
    %v294 = vld [vmem:[%s1 + $0x7c0] sm:$0xff]
    %v295 = vld [vmem:[%s1 + $0x7c8] sm:$0xff]
    %v296 = vld [vmem:[%s1 + $0x7d0] sm:$0xff]
    %v297 = vld [vmem:[%s1 + $0x7d8] sm:$0xff]
    %v298 = vld [vmem:[%s1 + $0x7e0] sm:$0xff]
    %v299 = vld [vmem:[%s1 + $0x7e8] sm:$0xff]
    %v300 = vld [vmem:[%s1 + $0x7f0] sm:$0xff]
    %v301 = vld [vmem:[%s1 + $0x7f8] sm:$0xff]
    %v302 = vld [vmem:[%s1 + $0x800] sm:$0xff]
    %v303 = vld [vmem:[%s1 + $0x808] sm:$0xff]
    %v304 = vld [vmem:[%s1 + $0x810] sm:$0xff]
    %v305 = vld [vmem:[%s1 + $0x818] sm:$0xff]
    %v306 = vld [vmem:[%s1 + $0x820] sm:$0xff]
    %v307 = vld [vmem:[%s1 + $0x828] sm:$0xff]
    %v308 = vld [vmem:[%s1 + $0x830] sm:$0xff]
    %v309 = vld [vmem:[%s1 + $0x838] sm:$0xff]
    %v310 = vld [vmem:[%s1 + $0x840] sm:$0xff]
    %v311 = vld [vmem:[%s1 + $0x848] sm:$0xff]
    %v312 = vld [vmem:[%s1 + $0x850] sm:$0xff]
    %v313 = vld [vmem:[%s1 + $0x858] sm:$0xff]
    %v314 = vld [vmem:[%s1 + $0x860] sm:$0xff]
    %v315 = vld [vmem:[%s1 + $0x868] sm:$0xff]
    %v316 = vld [vmem:[%s1 + $0x870] sm:$0xff]
    %v317 = vld [vmem:[%s1 + $0x878] sm:$0xff]
    %v318 = vld [vmem:[%s1 + $0x880] sm:$0xff]
    %v319 = vld [vmem:[%s1 + $0x888] sm:$0xff]
    %v320 = vld [vmem:[%s1 + $0x890] sm:$0xff]
    %v321 = vld [vmem:[%s1 + $0x898] sm:$0xff]
    %v322 = vld [vmem:[%s1 + $0x8a0] sm:$0xff]
    %v323 = vld [vmem:[%s1 + $0x8a8] sm:$0xff]
    %v324 = vld [vmem:[%s1 + $0x8b0] sm:$0xff]
    %v325 = vld [vmem:[%s1 + $0x8b8] sm:$0xff]
    %v326 = vld [vmem:[%s1 + $0x8c0] sm:$0xff]
    %v327 = vld [vmem:[%s1 + $0x8c8] sm:$0xff]
    %v328 = vld [vmem:[%s1 + $0x8d0] sm:$0xff]
    %v329 = vld [vmem:[%s1 + $0x8d8] sm:$0xff]
    %v330 = vld [vmem:[%s1 + $0x8e0] sm:$0xff]
    %v331 = vld [vmem:[%s1 + $0x8e8] sm:$0xff]
    %v332 = vld [vmem:[%s1 + $0x8f0] sm:$0xff]
    %v333 = vld [vmem:[%s1 + $0x8f8] sm:$0xff]
    %v334 = vld [vmem:[%s1 + $0x900] sm:$0xff]
    %v335 = vld [vmem:[%s1 + $0x908] sm:$0xff]
    %v336 = vld [vmem:[%s1 + $0x910] sm:$0xff]
    %v337 = vld [vmem:[%s1 + $0x918] sm:$0xff]
    %v338 = vld [vmem:[%s1 + $0x920] sm:$0xff]
    %v339 = vld [vmem:[%s1 + $0x928] sm:$0xff]
    %v340 = vld [vmem:[%s1 + $0x930] sm:$0xff]
    %v341 = vld [vmem:[%s1 + $0x938] sm:$0xff]
    %v342 = vld [vmem:[%s1 + $0x940] sm:$0xff]
    %v343 = vld [vmem:[%s1 + $0x948] sm:$0xff]
    %v344 = vld [vmem:[%s1 + $0x950] sm:$0xff]
    %v345 = vld [vmem:[%s1 + $0x958] sm:$0xff]
    %v346 = vld [vmem:[%s1 + $0x960] sm:$0xff]
    %v347 = vld [vmem:[%s1 + $0x968] sm:$0xff]
    %v348 = vld [vmem:[%s1 + $0x970] sm:$0xff]
    %v349 = vld [vmem:[%s1 + $0x978] sm:$0xff]
    %v350 = vld [vmem:[%s1 + $0x980] sm:$0xff]
    %v351 = vld [vmem:[%s1 + $0x988] sm:$0xff]
    %v352 = vld [vmem:[%s1 + $0x990] sm:$0xff]
    %v353 = vld [vmem:[%s1 + $0x998] sm:$0xff]
    %v354 = vld [vmem:[%s1 + $0x9a0] sm:$0xff]
    %v355 = vld [vmem:[%s1 + $0x9a8] sm:$0xff]
    %v356 = vld [vmem:[%s1 + $0x9b0] sm:$0xff]
    %v357 = vld [vmem:[%s1 + $0x9b8] sm:$0xff]
    %v358 = vld [vmem:[%s1 + $0x9c0] sm:$0xff]
    %v359 = vld [vmem:[%s1 + $0x9c8] sm:$0xff]
    %v360 = vld [vmem:[%s1 + $0x9d0] sm:$0xff]
    %v361 = vld [vmem:[%s1 + $0x9d8] sm:$0xff]
    %v362 = vld [vmem:[%s1 + $0x9e0] sm:$0xff]
    %v363 = vld [vmem:[%s1 + $0x9e8] sm:$0xff]
    %v364 = vld [vmem:[%s1 + $0x9f0] sm:$0xff]
    %v365 = vld [vmem:[%s1 + $0x9f8] sm:$0xff]
    %v366 = vld [vmem:[%s1 + $0xa00] sm:$0xff]
    %v367 = vld [vmem:[%s1 + $0xa08] sm:$0xff]
    %v368 = vld [vmem:[%s1 + $0xa10] sm:$0xff]
    %v369 = vld [vmem:[%s1 + $0xa18] sm:$0xff]
    %v370 = vld [vmem:[%s1 + $0xa20] sm:$0xff]
    %v371 = vld [vmem:[%s1 + $0xa28] sm:$0xff]
    %v372 = vld [vmem:[%s1 + $0xa30] sm:$0xff]
    %v373 = vld [vmem:[%s1 + $0xa38] sm:$0xff]
    %v374 = vld [vmem:[%s1 + $0xa40] sm:$0xff]
    %v375 = vld [vmem:[%s1 + $0xa48] sm:$0xff]
    %v376 = vld [vmem:[%s1 + $0xa50] sm:$0xff]
    %v377 = vld [vmem:[%s1 + $0xa58] sm:$0xff]
    %v378 = vld [vmem:[%s1 + $0xa60] sm:$0xff]
    %v379 = vld [vmem:[%s1 + $0xa68] sm:$0xff]
    %v380 = vld [vmem:[%s1 + $0xa70] sm:$0xff]
    %v381 = vld [vmem:[%s1 + $0xa78] sm:$0xff]
    %v382 = vld [vmem:[%s1 + $0xa80] sm:$0xff]
    %v383 = vld [vmem:[%s1 + $0xa88] sm:$0xff]
    %v384 = vld [vmem:[%s1 + $0xa90] sm:$0xff]
    %v385 = vld [vmem:[%s1 + $0xa98] sm:$0xff]
    %v386 = vld [vmem:[%s1 + $0xaa0] sm:$0xff]
    %v387 = vld [vmem:[%s1 + $0xaa8] sm:$0xff]
    %v388 = vld [vmem:[%s1 + $0xab0] sm:$0xff]
    %v389 = vld [vmem:[%s1 + $0xab8] sm:$0xff]
    %v390 = vld [vmem:[%s1 + $0xac0] sm:$0xff]
    %v391 = vld [vmem:[%s1 + $0xac8] sm:$0xff]
    %v392 = vld [vmem:[%s1 + $0xad0] sm:$0xff]
    %v393 = vld [vmem:[%s1 + $0xad8] sm:$0xff]
    %v394 = vld [vmem:[%s1 + $0xae0] sm:$0xff]
    %v395 = vld [vmem:[%s1 + $0xae8] sm:$0xff]
    %v396 = vld [vmem:[%s1 + $0xaf0] sm:$0xff]
    %v397 = vld [vmem:[%s1 + $0xaf8] sm:$0xff]
    %v398 = vld [vmem:[%s1 + $0xb00] sm:$0xff]
    %v399 = vld [vmem:[%s1 + $0xb08] sm:$0xff]
    %v400 = vld [vmem:[%s1 + $0xb10] sm:$0xff]
    %v401 = vld [vmem:[%s1 + $0xb18] sm:$0xff]
    %v402 = vld [vmem:[%s1 + $0xb20] sm:$0xff]
    %v403 = vld [vmem:[%s1 + $0xb28] sm:$0xff]
    %v404 = vld [vmem:[%s1 + $0xb30] sm:$0xff]
    %v405 = vld [vmem:[%s1 + $0xb38] sm:$0xff]
    %v406 = vld [vmem:[%s1 + $0xb40] sm:$0xff]
    %v407 = vld [vmem:[%s1 + $0xb48] sm:$0xff]
    %v408 = vld [vmem:[%s1 + $0xb50] sm:$0xff]
    %v409 = vld [vmem:[%s1 + $0xb58] sm:$0xff]
    %v410 = vld [vmem:[%s1 + $0xb60] sm:$0xff]
    %v411 = vld [vmem:[%s1 + $0xb68] sm:$0xff]
    %v412 = vld [vmem:[%s1 + $0xb70] sm:$0xff]
    %v413 = vld [vmem:[%s1 + $0xb78] sm:$0xff]
    %v414 = vld [vmem:[%s1 + $0xb80] sm:$0xff]
    %v415 = vld [vmem:[%s1 + $0xb88] sm:$0xff]
    %v416 = vld [vmem:[%s1 + $0xb90] sm:$0xff]
    %v417 = vld [vmem:[%s1 + $0xb98] sm:$0xff]
    %v418 = vld [vmem:[%s1 + $0xba0] sm:$0xff]
    %v419 = vld [vmem:[%s1 + $0xba8] sm:$0xff]
    %v420 = vld [vmem:[%s1 + $0xbb0] sm:$0xff]
    %v421 = vld [vmem:[%s1 + $0xbb8] sm:$0xff]
    %v422 = vld [vmem:[%s1 + $0xbc0] sm:$0xff]
    %v423 = vld [vmem:[%s1 + $0xbc8] sm:$0xff]
    %v424 = vld [vmem:[%s1 + $0xbd0] sm:$0xff]
    %v425 = vld [vmem:[%s1 + $0xbd8] sm:$0xff]
    %v426 = vld [vmem:[%s1 + $0xbe0] sm:$0xff]
    %v427 = vld [vmem:[%s1 + $0xbe8] sm:$0xff]
    %v428 = vld [vmem:[%s1 + $0xbf0] sm:$0xff]
    %v429 = vld [vmem:[%s1 + $0xbf8] sm:$0xff]
    %v430 = vld [vmem:[%s2] sm:$0xff]
    %v431 = vld [vmem:[%s2 + $0x8] sm:$0xf]
    %v434 = vperm.slane %v430, 0
    %v435 = vperm.slane %v430, 1
    %v436 = vperm.slane %v430, 2
    %v437 = vperm.slane %v430, 3
    %v438 = vperm.slane %v430, 4
    %v439 = vperm.slane %v430, 5
    %v440 = vperm.slane %v430, 6
    %v441 = vperm.slane %v430, 7
    %v442 = vperm.slane %v431, 0
    %v443 = vperm.slane %v431, 1
    %v444 = vperm.slane %v431, 2
    %v445 = vperm.slane %v431, 3
    %v842 = vunpack.c.l.b16 %v46
    %v843 = vunpack.c.h.b16 %v46
    %v844 = vunpack.c.l.b16 %v47
    %v845 = vunpack.c.h.b16 %v47
    %v846 = vunpack.c.l.b16 %v48
    %v847 = vunpack.c.h.b16 %v48
    %v848 = vunpack.c.l.b16 %v49
    %v849 = vunpack.c.h.b16 %v49
    %v850 = vunpack.c.l.b16 %v50
    %v851 = vunpack.c.h.b16 %v50
    %v852 = vunpack.c.l.b16 %v51
    %v853 = vunpack.c.h.b16 %v51
    %v854 = vunpack.c.l.b16 %v52
    %v855 = vunpack.c.h.b16 %v52
    %v856 = vunpack.c.l.b16 %v53
    %v857 = vunpack.c.h.b16 %v53
    %v858 = vunpack.c.l.b16 %v54
    %v859 = vunpack.c.h.b16 %v54
    %v860 = vunpack.c.l.b16 %v55
    %v861 = vunpack.c.h.b16 %v55
    %v862 = vunpack.c.l.b16 %v56
    %v863 = vunpack.c.h.b16 %v56
    %v864 = vunpack.c.l.b16 %v57
    %v865 = vunpack.c.h.b16 %v57
    %v866 = vunpack.c.l.b16 %v58
    %v867 = vunpack.c.h.b16 %v58
    %v868 = vunpack.c.l.b16 %v59
    %v869 = vunpack.c.h.b16 %v59
    %v870 = vunpack.c.l.b16 %v60
    %v871 = vunpack.c.h.b16 %v60
    %v872 = vunpack.c.l.b16 %v61
    %v873 = vunpack.c.h.b16 %v61
    %v874 = vunpack.c.l.b16 %v62
    %v875 = vunpack.c.h.b16 %v62
    %v876 = vunpack.c.l.b16 %v63
    %v877 = vunpack.c.h.b16 %v63
    %v878 = vunpack.c.l.b16 %v64
    %v879 = vunpack.c.h.b16 %v64
    %v880 = vunpack.c.l.b16 %v65
    %v881 = vunpack.c.h.b16 %v65
    %v882 = vunpack.c.l.b16 %v66
    %v883 = vunpack.c.h.b16 %v66
    %v884 = vunpack.c.l.b16 %v67
    %v885 = vunpack.c.h.b16 %v67
    %v886 = vunpack.c.l.b16 %v68
    %v887 = vunpack.c.h.b16 %v68
    %v888 = vunpack.c.l.b16 %v69
    %v889 = vunpack.c.h.b16 %v69
    %v890 = vunpack.c.l.b16 %v70
    %v891 = vunpack.c.h.b16 %v70
    %v892 = vunpack.c.l.b16 %v71
    %v893 = vunpack.c.h.b16 %v71
    %v894 = vunpack.c.l.b16 %v72
    %v895 = vunpack.c.h.b16 %v72
    %v896 = vunpack.c.l.b16 %v73
    %v897 = vunpack.c.h.b16 %v73
    %v898 = vunpack.c.l.b16 %v74
    %v899 = vunpack.c.h.b16 %v74
    %v900 = vunpack.c.l.b16 %v75
    %v901 = vunpack.c.h.b16 %v75
    %v902 = vunpack.c.l.b16 %v76
    %v903 = vunpack.c.h.b16 %v76
    %v904 = vunpack.c.l.b16 %v77
    %v905 = vunpack.c.h.b16 %v77
    %v906 = vunpack.c.l.b16 %v78
    %v907 = vunpack.c.h.b16 %v78
    %v908 = vunpack.c.l.b16 %v79
    %v909 = vunpack.c.h.b16 %v79
    %v910 = vunpack.c.l.b16 %v80
    %v911 = vunpack.c.h.b16 %v80
    %v912 = vunpack.c.l.b16 %v81
    %v913 = vunpack.c.h.b16 %v81
    %v914 = vunpack.c.l.b16 %v82
    %v915 = vunpack.c.h.b16 %v82
    %v916 = vunpack.c.l.b16 %v83
    %v917 = vunpack.c.h.b16 %v83
    %v918 = vunpack.c.l.b16 %v84
    %v919 = vunpack.c.h.b16 %v84
    %v920 = vunpack.c.l.b16 %v85
    %v921 = vunpack.c.h.b16 %v85
    %v922 = vunpack.c.l.b16 %v86
    %v923 = vunpack.c.h.b16 %v86
    %v924 = vunpack.c.l.b16 %v87
    %v925 = vunpack.c.h.b16 %v87
    %v926 = vunpack.c.l.b16 %v88
    %v927 = vunpack.c.h.b16 %v88
    %v928 = vunpack.c.l.b16 %v89
    %v929 = vunpack.c.h.b16 %v89
    %v930 = vunpack.c.l.b16 %v90
    %v931 = vunpack.c.h.b16 %v90
    %v932 = vunpack.c.l.b16 %v91
    %v933 = vunpack.c.h.b16 %v91
    %v934 = vunpack.c.l.b16 %v92
    %v935 = vunpack.c.h.b16 %v92
    %v936 = vunpack.c.l.b16 %v93
    %v937 = vunpack.c.h.b16 %v93
    %v938 = vunpack.c.l.b16 %v94
    %v939 = vunpack.c.h.b16 %v94
    %v940 = vunpack.c.l.b16 %v95
    %v941 = vunpack.c.h.b16 %v95
    %v942 = vunpack.c.l.b16 %v96
    %v943 = vunpack.c.h.b16 %v96
    %v944 = vunpack.c.l.b16 %v97
    %v945 = vunpack.c.h.b16 %v97
    %v946 = vunpack.c.l.b16 %v98
    %v947 = vunpack.c.h.b16 %v98
    %v948 = vunpack.c.l.b16 %v99
    %v949 = vunpack.c.h.b16 %v99
    %v950 = vunpack.c.l.b16 %v100
    %v951 = vunpack.c.h.b16 %v100
    %v952 = vunpack.c.l.b16 %v101
    %v953 = vunpack.c.h.b16 %v101
    %v954 = vunpack.c.l.b16 %v102
    %v955 = vunpack.c.h.b16 %v102
    %v956 = vunpack.c.l.b16 %v103
    %v957 = vunpack.c.h.b16 %v103
    %v958 = vunpack.c.l.b16 %v104
    %v959 = vunpack.c.h.b16 %v104
    %v960 = vunpack.c.l.b16 %v105
    %v961 = vunpack.c.h.b16 %v105
    %v962 = vunpack.c.l.b16 %v106
    %v963 = vunpack.c.h.b16 %v106
    %v964 = vunpack.c.l.b16 %v107
    %v965 = vunpack.c.h.b16 %v107
    %v966 = vunpack.c.l.b16 %v108
    %v967 = vunpack.c.h.b16 %v108
    %v968 = vunpack.c.l.b16 %v109
    %v969 = vunpack.c.h.b16 %v109
    %v970 = vunpack.c.l.b16 %v110
    %v971 = vunpack.c.h.b16 %v110
    %v972 = vunpack.c.l.b16 %v111
    %v973 = vunpack.c.h.b16 %v111
    %v974 = vunpack.c.l.b16 %v112
    %v975 = vunpack.c.h.b16 %v112
    %v976 = vunpack.c.l.b16 %v113
    %v977 = vunpack.c.h.b16 %v113
    %v978 = vunpack.c.l.b16 %v114
    %v979 = vunpack.c.h.b16 %v114
    %v980 = vunpack.c.l.b16 %v115
    %v981 = vunpack.c.h.b16 %v115
    %v982 = vunpack.c.l.b16 %v116
    %v983 = vunpack.c.h.b16 %v116
    %v984 = vunpack.c.l.b16 %v117
    %v985 = vunpack.c.h.b16 %v117
    %v986 = vunpack.c.l.b16 %v118
    %v987 = vunpack.c.h.b16 %v118
    %v988 = vunpack.c.l.b16 %v119
    %v989 = vunpack.c.h.b16 %v119
    %v990 = vunpack.c.l.b16 %v120
    %v991 = vunpack.c.h.b16 %v120
    %v992 = vunpack.c.l.b16 %v121
    %v993 = vunpack.c.h.b16 %v121
    %v994 = vunpack.c.l.b16 %v122
    %v995 = vunpack.c.h.b16 %v122
    %v996 = vunpack.c.l.b16 %v123
    %v997 = vunpack.c.h.b16 %v123
    %v998 = vunpack.c.l.b16 %v124
    %v999 = vunpack.c.h.b16 %v124
    %v1000 = vunpack.c.l.b16 %v125
    %v1001 = vunpack.c.h.b16 %v125
    %v1002 = vunpack.c.l.b16 %v126
    %v1003 = vunpack.c.h.b16 %v126
    %v1004 = vunpack.c.l.b16 %v127
    %v1005 = vunpack.c.h.b16 %v127
    %v1006 = vunpack.c.l.b16 %v128
    %v1007 = vunpack.c.h.b16 %v128
    %v1008 = vunpack.c.l.b16 %v129
    %v1009 = vunpack.c.h.b16 %v129
    %v1010 = vunpack.c.l.b16 %v130
    %v1011 = vunpack.c.h.b16 %v130
    %v1012 = vunpack.c.l.b16 %v131
    %v1013 = vunpack.c.h.b16 %v131
    %v1014 = vunpack.c.l.b16 %v132
    %v1015 = vunpack.c.h.b16 %v132
    %v1016 = vunpack.c.l.b16 %v133
    %v1017 = vunpack.c.h.b16 %v133
    %v1018 = vunpack.c.l.b16 %v134
    %v1019 = vunpack.c.h.b16 %v134
    %v1020 = vunpack.c.l.b16 %v135
    %v1021 = vunpack.c.h.b16 %v135
    %v1022 = vunpack.c.l.b16 %v136
    %v1023 = vunpack.c.h.b16 %v136
    %v1024 = vunpack.c.l.b16 %v137
    %v1025 = vunpack.c.h.b16 %v137
    %v1026 = vunpack.c.l.b16 %v138
    %v1027 = vunpack.c.h.b16 %v138
    %v1028 = vunpack.c.l.b16 %v139
    %v1029 = vunpack.c.h.b16 %v139
    %v1030 = vunpack.c.l.b16 %v140
    %v1031 = vunpack.c.h.b16 %v140
    %v1032 = vunpack.c.l.b16 %v141
    %v1033 = vunpack.c.h.b16 %v141
    %v1034 = vunpack.c.l.b16 %v142
    %v1035 = vunpack.c.h.b16 %v142
    %v1036 = vunpack.c.l.b16 %v143
    %v1037 = vunpack.c.h.b16 %v143
    %v1038 = vunpack.c.l.b16 %v144
    %v1039 = vunpack.c.h.b16 %v144
    %v1040 = vunpack.c.l.b16 %v145
    %v1041 = vunpack.c.h.b16 %v145
    %v1042 = vunpack.c.l.b16 %v146
    %v1043 = vunpack.c.h.b16 %v146
    %v1044 = vunpack.c.l.b16 %v147
    %v1045 = vunpack.c.h.b16 %v147
    %v1046 = vunpack.c.l.b16 %v148
    %v1047 = vunpack.c.h.b16 %v148
    %v1048 = vunpack.c.l.b16 %v149
    %v1049 = vunpack.c.h.b16 %v149
    %v1050 = vunpack.c.l.b16 %v150
    %v1051 = vunpack.c.h.b16 %v150
    %v1052 = vunpack.c.l.b16 %v151
    %v1053 = vunpack.c.h.b16 %v151
    %v1054 = vunpack.c.l.b16 %v152
    %v1055 = vunpack.c.h.b16 %v152
    %v1056 = vunpack.c.l.b16 %v153
    %v1057 = vunpack.c.h.b16 %v153
    %v1058 = vunpack.c.l.b16 %v154
    %v1059 = vunpack.c.h.b16 %v154
    %v1060 = vunpack.c.l.b16 %v155
    %v1061 = vunpack.c.h.b16 %v155
    %v1062 = vunpack.c.l.b16 %v156
    %v1063 = vunpack.c.h.b16 %v156
    %v1064 = vunpack.c.l.b16 %v157
    %v1065 = vunpack.c.h.b16 %v157
    %v1066 = vunpack.c.l.b16 %v158
    %v1067 = vunpack.c.h.b16 %v158
    %v1068 = vunpack.c.l.b16 %v159
    %v1069 = vunpack.c.h.b16 %v159
    %v1070 = vunpack.c.l.b16 %v160
    %v1071 = vunpack.c.h.b16 %v160
    %v1072 = vunpack.c.l.b16 %v161
    %v1073 = vunpack.c.h.b16 %v161
    %v1074 = vunpack.c.l.b16 %v162
    %v1075 = vunpack.c.h.b16 %v162
    %v1076 = vunpack.c.l.b16 %v163
    %v1077 = vunpack.c.h.b16 %v163
    %v1078 = vunpack.c.l.b16 %v164
    %v1079 = vunpack.c.h.b16 %v164
    %v1080 = vunpack.c.l.b16 %v165
    %v1081 = vunpack.c.h.b16 %v165
    %v1082 = vunpack.c.l.b16 %v166
    %v1083 = vunpack.c.h.b16 %v166
    %v1084 = vunpack.c.l.b16 %v167
    %v1085 = vunpack.c.h.b16 %v167
    %v1086 = vunpack.c.l.b16 %v168
    %v1087 = vunpack.c.h.b16 %v168
    %v1088 = vunpack.c.l.b16 %v169
    %v1089 = vunpack.c.h.b16 %v169
    %v1090 = vunpack.c.l.b16 %v170
    %v1091 = vunpack.c.h.b16 %v170
    %v1092 = vunpack.c.l.b16 %v171
    %v1093 = vunpack.c.h.b16 %v171
    %v1094 = vunpack.c.l.b16 %v172
    %v1095 = vunpack.c.h.b16 %v172
    %v1096 = vunpack.c.l.b16 %v173
    %v1097 = vunpack.c.h.b16 %v173
    %v1098 = vunpack.c.l.b16 %v174
    %v1099 = vunpack.c.h.b16 %v174
    %v1100 = vunpack.c.l.b16 %v175
    %v1101 = vunpack.c.h.b16 %v175
    %v1102 = vunpack.c.l.b16 %v176
    %v1103 = vunpack.c.h.b16 %v176
    %v1104 = vunpack.c.l.b16 %v177
    %v1105 = vunpack.c.h.b16 %v177
    %v1106 = vunpack.c.l.b16 %v178
    %v1107 = vunpack.c.h.b16 %v178
    %v1108 = vunpack.c.l.b16 %v179
    %v1109 = vunpack.c.h.b16 %v179
    %v1110 = vunpack.c.l.b16 %v180
    %v1111 = vunpack.c.h.b16 %v180
    %v1112 = vunpack.c.l.b16 %v181
    %v1113 = vunpack.c.h.b16 %v181
    %v1114 = vunpack.c.l.b16 %v182
    %v1115 = vunpack.c.h.b16 %v182
    %v1116 = vunpack.c.l.b16 %v183
    %v1117 = vunpack.c.h.b16 %v183
    %v1118 = vunpack.c.l.b16 %v184
    %v1119 = vunpack.c.h.b16 %v184
    %v1120 = vunpack.c.l.b16 %v185
    %v1121 = vunpack.c.h.b16 %v185
    %v1122 = vunpack.c.l.b16 %v186
    %v1123 = vunpack.c.h.b16 %v186
    %v1124 = vunpack.c.l.b16 %v187
    %v1125 = vunpack.c.h.b16 %v187
    %v1126 = vunpack.c.l.b16 %v188
    %v1127 = vunpack.c.h.b16 %v188
    %v1128 = vunpack.c.l.b16 %v189
    %v1129 = vunpack.c.h.b16 %v189
    %v1130 = vunpack.c.l.b16 %v190
    %v1131 = vunpack.c.h.b16 %v190
    %v1132 = vunpack.c.l.b16 %v191
    %v1133 = vunpack.c.h.b16 %v191
    %v1134 = vunpack.c.l.b16 %v192
    %v1135 = vunpack.c.h.b16 %v192
    %v1136 = vunpack.c.l.b16 %v193
    %v1137 = vunpack.c.h.b16 %v193
    %v1138 = vunpack.c.l.b16 %v194
    %v1139 = vunpack.c.h.b16 %v194
    %v1140 = vunpack.c.l.b16 %v195
    %v1141 = vunpack.c.h.b16 %v195
    %v1142 = vunpack.c.l.b16 %v196
    %v1143 = vunpack.c.h.b16 %v196
    %v1144 = vunpack.c.l.b16 %v197
    %v1145 = vunpack.c.h.b16 %v197
    %v1146 = vunpack.c.l.b16 %v198
    %v1147 = vunpack.c.h.b16 %v198
    %v1148 = vunpack.c.l.b16 %v199
    %v1149 = vunpack.c.h.b16 %v199
    %v1150 = vunpack.c.l.b16 %v200
    %v1151 = vunpack.c.h.b16 %v200
    %v1152 = vunpack.c.l.b16 %v201
    %v1153 = vunpack.c.h.b16 %v201
    %v1154 = vunpack.c.l.b16 %v202
    %v1155 = vunpack.c.h.b16 %v202
    %v1156 = vunpack.c.l.b16 %v203
    %v1157 = vunpack.c.h.b16 %v203
    %v1158 = vunpack.c.l.b16 %v204
    %v1159 = vunpack.c.h.b16 %v204
    %v1160 = vunpack.c.l.b16 %v205
    %v1161 = vunpack.c.h.b16 %v205
    %v1162 = vunpack.c.l.b16 %v206
    %v1163 = vunpack.c.h.b16 %v206
    %v1164 = vunpack.c.l.b16 %v207
    %v1165 = vunpack.c.h.b16 %v207
    %v1166 = vunpack.c.l.b16 %v208
    %v1167 = vunpack.c.h.b16 %v208
    %v1168 = vunpack.c.l.b16 %v209
    %v1169 = vunpack.c.h.b16 %v209
    %v1170 = vunpack.c.l.b16 %v210
    %v1171 = vunpack.c.h.b16 %v210
    %v1172 = vunpack.c.l.b16 %v211
    %v1173 = vunpack.c.h.b16 %v211
    %v1174 = vunpack.c.l.b16 %v212
    %v1175 = vunpack.c.h.b16 %v212
    %v1176 = vunpack.c.l.b16 %v213
    %v1177 = vunpack.c.h.b16 %v213
    %v1178 = vunpack.c.l.b16 %v214
    %v1179 = vunpack.c.h.b16 %v214
    %v1180 = vunpack.c.l.b16 %v215
    %v1181 = vunpack.c.h.b16 %v215
    %v1182 = vunpack.c.l.b16 %v216
    %v1183 = vunpack.c.h.b16 %v216
    %v1184 = vunpack.c.l.b16 %v217
    %v1185 = vunpack.c.h.b16 %v217
    %v1186 = vunpack.c.l.b16 %v218
    %v1187 = vunpack.c.h.b16 %v218
    %v1188 = vunpack.c.l.b16 %v219
    %v1189 = vunpack.c.h.b16 %v219
    %v1190 = vunpack.c.l.b16 %v220
    %v1191 = vunpack.c.h.b16 %v220
    %v1192 = vunpack.c.l.b16 %v221
    %v1193 = vunpack.c.h.b16 %v221
    %v1194 = vunpack.c.l.b16 %v222
    %v1195 = vunpack.c.h.b16 %v222
    %v1196 = vunpack.c.l.b16 %v223
    %v1197 = vunpack.c.h.b16 %v223
    %v1198 = vunpack.c.l.b16 %v224
    %v1199 = vunpack.c.h.b16 %v224
    %v1200 = vunpack.c.l.b16 %v225
    %v1201 = vunpack.c.h.b16 %v225
    %v1202 = vunpack.c.l.b16 %v226
    %v1203 = vunpack.c.h.b16 %v226
    %v1204 = vunpack.c.l.b16 %v227
    %v1205 = vunpack.c.h.b16 %v227
    %v1206 = vunpack.c.l.b16 %v228
    %v1207 = vunpack.c.h.b16 %v228
    %v1208 = vunpack.c.l.b16 %v229
    %v1209 = vunpack.c.h.b16 %v229
    %v1210 = vunpack.c.l.b16 %v230
    %v1211 = vunpack.c.h.b16 %v230
    %v1212 = vunpack.c.l.b16 %v231
    %v1213 = vunpack.c.h.b16 %v231
    %v1214 = vunpack.c.l.b16 %v232
    %v1215 = vunpack.c.h.b16 %v232
    %v1216 = vunpack.c.l.b16 %v233
    %v1217 = vunpack.c.h.b16 %v233
    %v1218 = vunpack.c.l.b16 %v234
    %v1219 = vunpack.c.h.b16 %v234
    %v1220 = vunpack.c.l.b16 %v235
    %v1221 = vunpack.c.h.b16 %v235
    %v1222 = vunpack.c.l.b16 %v236
    %v1223 = vunpack.c.h.b16 %v236
    %v1224 = vunpack.c.l.b16 %v237
    %v1225 = vunpack.c.h.b16 %v237
    %v1226 = vunpack.c.l.b16 %v238
    %v1227 = vunpack.c.h.b16 %v238
    %v1228 = vunpack.c.l.b16 %v239
    %v1229 = vunpack.c.h.b16 %v239
    %v1230 = vunpack.c.l.b16 %v240
    %v1231 = vunpack.c.h.b16 %v240
    %v1232 = vunpack.c.l.b16 %v241
    %v1233 = vunpack.c.h.b16 %v241
    %v1234 = vunpack.c.l.b16 %v242
    %v1235 = vunpack.c.h.b16 %v242
    %v1236 = vunpack.c.l.b16 %v243
    %v1237 = vunpack.c.h.b16 %v243
    %v1238 = vunpack.c.l.b16 %v244
    %v1239 = vunpack.c.h.b16 %v244
    %v1240 = vunpack.c.l.b16 %v245
    %v1241 = vunpack.c.h.b16 %v245
    %v1242 = vunpack.c.l.b16 %v246
    %v1243 = vunpack.c.h.b16 %v246
    %v1244 = vunpack.c.l.b16 %v247
    %v1245 = vunpack.c.h.b16 %v247
    %v1246 = vunpack.c.l.b16 %v248
    %v1247 = vunpack.c.h.b16 %v248
    %v1248 = vunpack.c.l.b16 %v249
    %v1249 = vunpack.c.h.b16 %v249
    %v1250 = vunpack.c.l.b16 %v250
    %v1251 = vunpack.c.h.b16 %v250
    %v1252 = vunpack.c.l.b16 %v251
    %v1253 = vunpack.c.h.b16 %v251
    %v1254 = vunpack.c.l.b16 %v252
    %v1255 = vunpack.c.h.b16 %v252
    %v1256 = vunpack.c.l.b16 %v253
    %v1257 = vunpack.c.h.b16 %v253
    %v1258 = vunpack.c.l.b16 %v254
    %v1259 = vunpack.c.h.b16 %v254
    %v1260 = vunpack.c.l.b16 %v255
    %v1261 = vunpack.c.h.b16 %v255
    %v1262 = vunpack.c.l.b16 %v256
    %v1263 = vunpack.c.h.b16 %v256
    %v1264 = vunpack.c.l.b16 %v257
    %v1265 = vunpack.c.h.b16 %v257
    %v1266 = vunpack.c.l.b16 %v258
    %v1267 = vunpack.c.h.b16 %v258
    %v1268 = vunpack.c.l.b16 %v259
    %v1269 = vunpack.c.h.b16 %v259
    %v1270 = vunpack.c.l.b16 %v260
    %v1271 = vunpack.c.h.b16 %v260
    %v1272 = vunpack.c.l.b16 %v261
    %v1273 = vunpack.c.h.b16 %v261
    %v1274 = vunpack.c.l.b16 %v262
    %v1275 = vunpack.c.h.b16 %v262
    %v1276 = vunpack.c.l.b16 %v263
    %v1277 = vunpack.c.h.b16 %v263
    %v1278 = vunpack.c.l.b16 %v264
    %v1279 = vunpack.c.h.b16 %v264
    %v1280 = vunpack.c.l.b16 %v265
    %v1281 = vunpack.c.h.b16 %v265
    %v1282 = vunpack.c.l.b16 %v266
    %v1283 = vunpack.c.h.b16 %v266
    %v1284 = vunpack.c.l.b16 %v267
    %v1285 = vunpack.c.h.b16 %v267
    %v1286 = vunpack.c.l.b16 %v268
    %v1287 = vunpack.c.h.b16 %v268
    %v1288 = vunpack.c.l.b16 %v269
    %v1289 = vunpack.c.h.b16 %v269
    %v1290 = vunpack.c.l.b16 %v270
    %v1291 = vunpack.c.h.b16 %v270
    %v1292 = vunpack.c.l.b16 %v271
    %v1293 = vunpack.c.h.b16 %v271
    %v1294 = vunpack.c.l.b16 %v272
    %v1295 = vunpack.c.h.b16 %v272
    %v1296 = vunpack.c.l.b16 %v273
    %v1297 = vunpack.c.h.b16 %v273
    %v1298 = vunpack.c.l.b16 %v274
    %v1299 = vunpack.c.h.b16 %v274
    %v1300 = vunpack.c.l.b16 %v275
    %v1301 = vunpack.c.h.b16 %v275
    %v1302 = vunpack.c.l.b16 %v276
    %v1303 = vunpack.c.h.b16 %v276
    %v1304 = vunpack.c.l.b16 %v277
    %v1305 = vunpack.c.h.b16 %v277
    %v1306 = vunpack.c.l.b16 %v278
    %v1307 = vunpack.c.h.b16 %v278
    %v1308 = vunpack.c.l.b16 %v279
    %v1309 = vunpack.c.h.b16 %v279
    %v1310 = vunpack.c.l.b16 %v280
    %v1311 = vunpack.c.h.b16 %v280
    %v1312 = vunpack.c.l.b16 %v281
    %v1313 = vunpack.c.h.b16 %v281
    %v1314 = vunpack.c.l.b16 %v282
    %v1315 = vunpack.c.h.b16 %v282
    %v1316 = vunpack.c.l.b16 %v283
    %v1317 = vunpack.c.h.b16 %v283
    %v1318 = vunpack.c.l.b16 %v284
    %v1319 = vunpack.c.h.b16 %v284
    %v1320 = vunpack.c.l.b16 %v285
    %v1321 = vunpack.c.h.b16 %v285
    %v1322 = vunpack.c.l.b16 %v286
    %v1323 = vunpack.c.h.b16 %v286
    %v1324 = vunpack.c.l.b16 %v287
    %v1325 = vunpack.c.h.b16 %v287
    %v1326 = vunpack.c.l.b16 %v288
    %v1327 = vunpack.c.h.b16 %v288
    %v1328 = vunpack.c.l.b16 %v289
    %v1329 = vunpack.c.h.b16 %v289
    %v1330 = vunpack.c.l.b16 %v290
    %v1331 = vunpack.c.h.b16 %v290
    %v1332 = vunpack.c.l.b16 %v291
    %v1333 = vunpack.c.h.b16 %v291
    %v1334 = vunpack.c.l.b16 %v292
    %v1335 = vunpack.c.h.b16 %v292
    %v1336 = vunpack.c.l.b16 %v293
    %v1337 = vunpack.c.h.b16 %v293
    %v1338 = vunpack.c.l.b16 %v294
    %v1339 = vunpack.c.h.b16 %v294
    %v1340 = vunpack.c.l.b16 %v295
    %v1341 = vunpack.c.h.b16 %v295
    %v1342 = vunpack.c.l.b16 %v296
    %v1343 = vunpack.c.h.b16 %v296
    %v1344 = vunpack.c.l.b16 %v297
    %v1345 = vunpack.c.h.b16 %v297
    %v1346 = vunpack.c.l.b16 %v298
    %v1347 = vunpack.c.h.b16 %v298
    %v1348 = vunpack.c.l.b16 %v299
    %v1349 = vunpack.c.h.b16 %v299
    %v1350 = vunpack.c.l.b16 %v300
    %v1351 = vunpack.c.h.b16 %v300
    %v1352 = vunpack.c.l.b16 %v301
    %v1353 = vunpack.c.h.b16 %v301
    %v1354 = vunpack.c.l.b16 %v302
    %v1355 = vunpack.c.h.b16 %v302
    %v1356 = vunpack.c.l.b16 %v303
    %v1357 = vunpack.c.h.b16 %v303
    %v1358 = vunpack.c.l.b16 %v304
    %v1359 = vunpack.c.h.b16 %v304
    %v1360 = vunpack.c.l.b16 %v305
    %v1361 = vunpack.c.h.b16 %v305
    %v1362 = vunpack.c.l.b16 %v306
    %v1363 = vunpack.c.h.b16 %v306
    %v1364 = vunpack.c.l.b16 %v307
    %v1365 = vunpack.c.h.b16 %v307
    %v1366 = vunpack.c.l.b16 %v308
    %v1367 = vunpack.c.h.b16 %v308
    %v1368 = vunpack.c.l.b16 %v309
    %v1369 = vunpack.c.h.b16 %v309
    %v1370 = vunpack.c.l.b16 %v310
    %v1371 = vunpack.c.h.b16 %v310
    %v1372 = vunpack.c.l.b16 %v311
    %v1373 = vunpack.c.h.b16 %v311
    %v1374 = vunpack.c.l.b16 %v312
    %v1375 = vunpack.c.h.b16 %v312
    %v1376 = vunpack.c.l.b16 %v313
    %v1377 = vunpack.c.h.b16 %v313
    %v1378 = vunpack.c.l.b16 %v314
    %v1379 = vunpack.c.h.b16 %v314
    %v1380 = vunpack.c.l.b16 %v315
    %v1381 = vunpack.c.h.b16 %v315
    %v1382 = vunpack.c.l.b16 %v316
    %v1383 = vunpack.c.h.b16 %v316
    %v1384 = vunpack.c.l.b16 %v317
    %v1385 = vunpack.c.h.b16 %v317
    %v1386 = vunpack.c.l.b16 %v318
    %v1387 = vunpack.c.h.b16 %v318
    %v1388 = vunpack.c.l.b16 %v319
    %v1389 = vunpack.c.h.b16 %v319
    %v1390 = vunpack.c.l.b16 %v320
    %v1391 = vunpack.c.h.b16 %v320
    %v1392 = vunpack.c.l.b16 %v321
    %v1393 = vunpack.c.h.b16 %v321
    %v1394 = vunpack.c.l.b16 %v322
    %v1395 = vunpack.c.h.b16 %v322
    %v1396 = vunpack.c.l.b16 %v323
    %v1397 = vunpack.c.h.b16 %v323
    %v1398 = vunpack.c.l.b16 %v324
    %v1399 = vunpack.c.h.b16 %v324
    %v1400 = vunpack.c.l.b16 %v325
    %v1401 = vunpack.c.h.b16 %v325
    %v1402 = vunpack.c.l.b16 %v326
    %v1403 = vunpack.c.h.b16 %v326
    %v1404 = vunpack.c.l.b16 %v327
    %v1405 = vunpack.c.h.b16 %v327
    %v1406 = vunpack.c.l.b16 %v328
    %v1407 = vunpack.c.h.b16 %v328
    %v1408 = vunpack.c.l.b16 %v329
    %v1409 = vunpack.c.h.b16 %v329
    %v1410 = vunpack.c.l.b16 %v330
    %v1411 = vunpack.c.h.b16 %v330
    %v1412 = vunpack.c.l.b16 %v331
    %v1413 = vunpack.c.h.b16 %v331
    %v1414 = vunpack.c.l.b16 %v332
    %v1415 = vunpack.c.h.b16 %v332
    %v1416 = vunpack.c.l.b16 %v333
    %v1417 = vunpack.c.h.b16 %v333
    %v1418 = vunpack.c.l.b16 %v334
    %v1419 = vunpack.c.h.b16 %v334
    %v1420 = vunpack.c.l.b16 %v335
    %v1421 = vunpack.c.h.b16 %v335
    %v1422 = vunpack.c.l.b16 %v336
    %v1423 = vunpack.c.h.b16 %v336
    %v1424 = vunpack.c.l.b16 %v337
    %v1425 = vunpack.c.h.b16 %v337
    %v1426 = vunpack.c.l.b16 %v338
    %v1427 = vunpack.c.h.b16 %v338
    %v1428 = vunpack.c.l.b16 %v339
    %v1429 = vunpack.c.h.b16 %v339
    %v1430 = vunpack.c.l.b16 %v340
    %v1431 = vunpack.c.h.b16 %v340
    %v1432 = vunpack.c.l.b16 %v341
    %v1433 = vunpack.c.h.b16 %v341
    %v1434 = vunpack.c.l.b16 %v342
    %v1435 = vunpack.c.h.b16 %v342
    %v1436 = vunpack.c.l.b16 %v343
    %v1437 = vunpack.c.h.b16 %v343
    %v1438 = vunpack.c.l.b16 %v344
    %v1439 = vunpack.c.h.b16 %v344
    %v1440 = vunpack.c.l.b16 %v345
    %v1441 = vunpack.c.h.b16 %v345
    %v1442 = vunpack.c.l.b16 %v346
    %v1443 = vunpack.c.h.b16 %v346
    %v1444 = vunpack.c.l.b16 %v347
    %v1445 = vunpack.c.h.b16 %v347
    %v1446 = vunpack.c.l.b16 %v348
    %v1447 = vunpack.c.h.b16 %v348
    %v1448 = vunpack.c.l.b16 %v349
    %v1449 = vunpack.c.h.b16 %v349
    %v1450 = vunpack.c.l.b16 %v350
    %v1451 = vunpack.c.h.b16 %v350
    %v1452 = vunpack.c.l.b16 %v351
    %v1453 = vunpack.c.h.b16 %v351
    %v1454 = vunpack.c.l.b16 %v352
    %v1455 = vunpack.c.h.b16 %v352
    %v1456 = vunpack.c.l.b16 %v353
    %v1457 = vunpack.c.h.b16 %v353
    %v1458 = vunpack.c.l.b16 %v354
    %v1459 = vunpack.c.h.b16 %v354
    %v1460 = vunpack.c.l.b16 %v355
    %v1461 = vunpack.c.h.b16 %v355
    %v1462 = vunpack.c.l.b16 %v356
    %v1463 = vunpack.c.h.b16 %v356
    %v1464 = vunpack.c.l.b16 %v357
    %v1465 = vunpack.c.h.b16 %v357
    %v1466 = vunpack.c.l.b16 %v358
    %v1467 = vunpack.c.h.b16 %v358
    %v1468 = vunpack.c.l.b16 %v359
    %v1469 = vunpack.c.h.b16 %v359
    %v1470 = vunpack.c.l.b16 %v360
    %v1471 = vunpack.c.h.b16 %v360
    %v1472 = vunpack.c.l.b16 %v361
    %v1473 = vunpack.c.h.b16 %v361
    %v1474 = vunpack.c.l.b16 %v362
    %v1475 = vunpack.c.h.b16 %v362
    %v1476 = vunpack.c.l.b16 %v363
    %v1477 = vunpack.c.h.b16 %v363
    %v1478 = vunpack.c.l.b16 %v364
    %v1479 = vunpack.c.h.b16 %v364
    %v1480 = vunpack.c.l.b16 %v365
    %v1481 = vunpack.c.h.b16 %v365
    %v1482 = vunpack.c.l.b16 %v366
    %v1483 = vunpack.c.h.b16 %v366
    %v1484 = vunpack.c.l.b16 %v367
    %v1485 = vunpack.c.h.b16 %v367
    %v1486 = vunpack.c.l.b16 %v368
    %v1487 = vunpack.c.h.b16 %v368
    %v1488 = vunpack.c.l.b16 %v369
    %v1489 = vunpack.c.h.b16 %v369
    %v1490 = vunpack.c.l.b16 %v370
    %v1491 = vunpack.c.h.b16 %v370
    %v1492 = vunpack.c.l.b16 %v371
    %v1493 = vunpack.c.h.b16 %v371
    %v1494 = vunpack.c.l.b16 %v372
    %v1495 = vunpack.c.h.b16 %v372
    %v1496 = vunpack.c.l.b16 %v373
    %v1497 = vunpack.c.h.b16 %v373
    %v1498 = vunpack.c.l.b16 %v374
    %v1499 = vunpack.c.h.b16 %v374
    %v1500 = vunpack.c.l.b16 %v375
    %v1501 = vunpack.c.h.b16 %v375
    %v1502 = vunpack.c.l.b16 %v376
    %v1503 = vunpack.c.h.b16 %v376
    %v1504 = vunpack.c.l.b16 %v377
    %v1505 = vunpack.c.h.b16 %v377
    %v1506 = vunpack.c.l.b16 %v378
    %v1507 = vunpack.c.h.b16 %v378
    %v1508 = vunpack.c.l.b16 %v379
    %v1509 = vunpack.c.h.b16 %v379
    %v1510 = vunpack.c.l.b16 %v380
    %v1511 = vunpack.c.h.b16 %v380
    %v1512 = vunpack.c.l.b16 %v381
    %v1513 = vunpack.c.h.b16 %v381
    %v1514 = vunpack.c.l.b16 %v382
    %v1515 = vunpack.c.h.b16 %v382
    %v1516 = vunpack.c.l.b16 %v383
    %v1517 = vunpack.c.h.b16 %v383
    %v1518 = vunpack.c.l.b16 %v384
    %v1519 = vunpack.c.h.b16 %v384
    %v1520 = vunpack.c.l.b16 %v385
    %v1521 = vunpack.c.h.b16 %v385
    %v1522 = vunpack.c.l.b16 %v386
    %v1523 = vunpack.c.h.b16 %v386
    %v1524 = vunpack.c.l.b16 %v387
    %v1525 = vunpack.c.h.b16 %v387
    %v1526 = vunpack.c.l.b16 %v388
    %v1527 = vunpack.c.h.b16 %v388
    %v1528 = vunpack.c.l.b16 %v389
    %v1529 = vunpack.c.h.b16 %v389
    %v1530 = vunpack.c.l.b16 %v390
    %v1531 = vunpack.c.h.b16 %v390
    %v1532 = vunpack.c.l.b16 %v391
    %v1533 = vunpack.c.h.b16 %v391
    %v1534 = vunpack.c.l.b16 %v392
    %v1535 = vunpack.c.h.b16 %v392
    %v1536 = vunpack.c.l.b16 %v393
    %v1537 = vunpack.c.h.b16 %v393
    %v1538 = vunpack.c.l.b16 %v394
    %v1539 = vunpack.c.h.b16 %v394
    %v1540 = vunpack.c.l.b16 %v395
    %v1541 = vunpack.c.h.b16 %v395
    %v1542 = vunpack.c.l.b16 %v396
    %v1543 = vunpack.c.h.b16 %v396
    %v1544 = vunpack.c.l.b16 %v397
    %v1545 = vunpack.c.h.b16 %v397
    %v1546 = vunpack.c.l.b16 %v398
    %v1547 = vunpack.c.h.b16 %v398
    %v1548 = vunpack.c.l.b16 %v399
    %v1549 = vunpack.c.h.b16 %v399
    %v1550 = vunpack.c.l.b16 %v400
    %v1551 = vunpack.c.h.b16 %v400
    %v1552 = vunpack.c.l.b16 %v401
    %v1553 = vunpack.c.h.b16 %v401
    %v1554 = vunpack.c.l.b16 %v402
    %v1555 = vunpack.c.h.b16 %v402
    %v1556 = vunpack.c.l.b16 %v403
    %v1557 = vunpack.c.h.b16 %v403
    %v1558 = vunpack.c.l.b16 %v404
    %v1559 = vunpack.c.h.b16 %v404
    %v1560 = vunpack.c.l.b16 %v405
    %v1561 = vunpack.c.h.b16 %v405
    %v1562 = vunpack.c.l.b16 %v406
    %v1563 = vunpack.c.h.b16 %v406
    %v1564 = vunpack.c.l.b16 %v407
    %v1565 = vunpack.c.h.b16 %v407
    %v1566 = vunpack.c.l.b16 %v408
    %v1567 = vunpack.c.h.b16 %v408
    %v1568 = vunpack.c.l.b16 %v409
    %v1569 = vunpack.c.h.b16 %v409
    %v1570 = vunpack.c.l.b16 %v410
    %v1571 = vunpack.c.h.b16 %v410
    %v1572 = vunpack.c.l.b16 %v411
    %v1573 = vunpack.c.h.b16 %v411
    %v1574 = vunpack.c.l.b16 %v412
    %v1575 = vunpack.c.h.b16 %v412
    %v1576 = vunpack.c.l.b16 %v413
    %v1577 = vunpack.c.h.b16 %v413
    %v1578 = vunpack.c.l.b16 %v414
    %v1579 = vunpack.c.h.b16 %v414
    %v1580 = vunpack.c.l.b16 %v415
    %v1581 = vunpack.c.h.b16 %v415
    %v1582 = vunpack.c.l.b16 %v416
    %v1583 = vunpack.c.h.b16 %v416
    %v1584 = vunpack.c.l.b16 %v417
    %v1585 = vunpack.c.h.b16 %v417
    %v1586 = vunpack.c.l.b16 %v418
    %v1587 = vunpack.c.h.b16 %v418
    %v1588 = vunpack.c.l.b16 %v419
    %v1589 = vunpack.c.h.b16 %v419
    %v1590 = vunpack.c.l.b16 %v420
    %v1591 = vunpack.c.h.b16 %v420
    %v1592 = vunpack.c.l.b16 %v421
    %v1593 = vunpack.c.h.b16 %v421
    %v1594 = vunpack.c.l.b16 %v422
    %v1595 = vunpack.c.h.b16 %v422
    %v1596 = vunpack.c.l.b16 %v423
    %v1597 = vunpack.c.h.b16 %v423
    %v1598 = vunpack.c.l.b16 %v424
    %v1599 = vunpack.c.h.b16 %v424
    %v1600 = vunpack.c.l.b16 %v425
    %v1601 = vunpack.c.h.b16 %v425
    %v1602 = vunpack.c.l.b16 %v426
    %v1603 = vunpack.c.h.b16 %v426
    %v1604 = vunpack.c.l.b16 %v427
    %v1605 = vunpack.c.h.b16 %v427
    %v1606 = vunpack.c.l.b16 %v428
    %v1607 = vunpack.c.h.b16 %v428
    %v1608 = vunpack.c.l.b16 %v429
    %v1609 = vunpack.c.h.b16 %v429
    %v1610 = vpack.c.b16 %v854, %v842
    %v1611 = vpack.c.b16 %v855, %v843
    %v1612 = vpack.c.b16 %v856, %v844
    %v1613 = vpack.c.b16 %v857, %v845
    %v1614 = vpack.c.b16 %v858, %v846
    %v1615 = vpack.c.b16 %v859, %v847
    %v1616 = vpack.c.b16 %v860, %v848
    %v1617 = vpack.c.b16 %v861, %v849
    %v1618 = vpack.c.b16 %v862, %v850
    %v1619 = vpack.c.b16 %v863, %v851
    %v1620 = vpack.c.b16 %v864, %v852
    %v1621 = vpack.c.b16 %v865, %v853
    %v1622 = vpack.c.b16 %v878, %v866
    %v1623 = vpack.c.b16 %v879, %v867
    %v1624 = vpack.c.b16 %v880, %v868
    %v1625 = vpack.c.b16 %v881, %v869
    %v1626 = vpack.c.b16 %v882, %v870
    %v1627 = vpack.c.b16 %v883, %v871
    %v1628 = vpack.c.b16 %v884, %v872
    %v1629 = vpack.c.b16 %v885, %v873
    %v1630 = vpack.c.b16 %v886, %v874
    %v1631 = vpack.c.b16 %v887, %v875
    %v1632 = vpack.c.b16 %v888, %v876
    %v1633 = vpack.c.b16 %v889, %v877
    %v1634 = vpack.c.b16 %v902, %v890
    %v1635 = vpack.c.b16 %v903, %v891
    %v1636 = vpack.c.b16 %v904, %v892
    %v1637 = vpack.c.b16 %v905, %v893
    %v1638 = vpack.c.b16 %v906, %v894
    %v1639 = vpack.c.b16 %v907, %v895
    %v1640 = vpack.c.b16 %v908, %v896
    %v1641 = vpack.c.b16 %v909, %v897
    %v1642 = vpack.c.b16 %v910, %v898
    %v1643 = vpack.c.b16 %v911, %v899
    %v1644 = vpack.c.b16 %v912, %v900
    %v1645 = vpack.c.b16 %v913, %v901
    %v1646 = vpack.c.b16 %v926, %v914
    %v1647 = vpack.c.b16 %v927, %v915
    %v1648 = vpack.c.b16 %v928, %v916
    %v1649 = vpack.c.b16 %v929, %v917
    %v1650 = vpack.c.b16 %v930, %v918
    %v1651 = vpack.c.b16 %v931, %v919
    %v1652 = vpack.c.b16 %v932, %v920
    %v1653 = vpack.c.b16 %v933, %v921
    %v1654 = vpack.c.b16 %v934, %v922
    %v1655 = vpack.c.b16 %v935, %v923
    %v1656 = vpack.c.b16 %v936, %v924
    %v1657 = vpack.c.b16 %v937, %v925
    %v1658 = vpack.c.b16 %v950, %v938
    %v1659 = vpack.c.b16 %v951, %v939
    %v1660 = vpack.c.b16 %v952, %v940
    %v1661 = vpack.c.b16 %v953, %v941
    %v1662 = vpack.c.b16 %v954, %v942
    %v1663 = vpack.c.b16 %v955, %v943
    %v1664 = vpack.c.b16 %v956, %v944
    %v1665 = vpack.c.b16 %v957, %v945
    %v1666 = vpack.c.b16 %v958, %v946
    %v1667 = vpack.c.b16 %v959, %v947
    %v1668 = vpack.c.b16 %v960, %v948
    %v1669 = vpack.c.b16 %v961, %v949
    %v1670 = vpack.c.b16 %v974, %v962
    %v1671 = vpack.c.b16 %v975, %v963
    %v1672 = vpack.c.b16 %v976, %v964
    %v1673 = vpack.c.b16 %v977, %v965
    %v1674 = vpack.c.b16 %v978, %v966
    %v1675 = vpack.c.b16 %v979, %v967
    %v1676 = vpack.c.b16 %v980, %v968
    %v1677 = vpack.c.b16 %v981, %v969
    %v1678 = vpack.c.b16 %v982, %v970
    %v1679 = vpack.c.b16 %v983, %v971
    %v1680 = vpack.c.b16 %v984, %v972
    %v1681 = vpack.c.b16 %v985, %v973
    %v1682 = vpack.c.b16 %v998, %v986
    %v1683 = vpack.c.b16 %v999, %v987
    %v1684 = vpack.c.b16 %v1000, %v988
    %v1685 = vpack.c.b16 %v1001, %v989
    %v1686 = vpack.c.b16 %v1002, %v990
    %v1687 = vpack.c.b16 %v1003, %v991
    %v1688 = vpack.c.b16 %v1004, %v992
    %v1689 = vpack.c.b16 %v1005, %v993
    %v1690 = vpack.c.b16 %v1006, %v994
    %v1691 = vpack.c.b16 %v1007, %v995
    %v1692 = vpack.c.b16 %v1008, %v996
    %v1693 = vpack.c.b16 %v1009, %v997
    %v1694 = vpack.c.b16 %v1022, %v1010
    %v1695 = vpack.c.b16 %v1023, %v1011
    %v1696 = vpack.c.b16 %v1024, %v1012
    %v1697 = vpack.c.b16 %v1025, %v1013
    %v1698 = vpack.c.b16 %v1026, %v1014
    %v1699 = vpack.c.b16 %v1027, %v1015
    %v1700 = vpack.c.b16 %v1028, %v1016
    %v1701 = vpack.c.b16 %v1029, %v1017
    %v1702 = vpack.c.b16 %v1030, %v1018
    %v1703 = vpack.c.b16 %v1031, %v1019
    %v1704 = vpack.c.b16 %v1032, %v1020
    %v1705 = vpack.c.b16 %v1033, %v1021
    %v1706 = vpack.c.b16 %v1046, %v1034
    %v1707 = vpack.c.b16 %v1047, %v1035
    %v1708 = vpack.c.b16 %v1048, %v1036
    %v1709 = vpack.c.b16 %v1049, %v1037
    %v1710 = vpack.c.b16 %v1050, %v1038
    %v1711 = vpack.c.b16 %v1051, %v1039
    %v1712 = vpack.c.b16 %v1052, %v1040
    %v1713 = vpack.c.b16 %v1053, %v1041
    %v1714 = vpack.c.b16 %v1054, %v1042
    %v1715 = vpack.c.b16 %v1055, %v1043
    %v1716 = vpack.c.b16 %v1056, %v1044
    %v1717 = vpack.c.b16 %v1057, %v1045
    %v1718 = vpack.c.b16 %v1070, %v1058
    %v1719 = vpack.c.b16 %v1071, %v1059
    %v1720 = vpack.c.b16 %v1072, %v1060
    %v1721 = vpack.c.b16 %v1073, %v1061
    %v1722 = vpack.c.b16 %v1074, %v1062
    %v1723 = vpack.c.b16 %v1075, %v1063
    %v1724 = vpack.c.b16 %v1076, %v1064
    %v1725 = vpack.c.b16 %v1077, %v1065
    %v1726 = vpack.c.b16 %v1078, %v1066
    %v1727 = vpack.c.b16 %v1079, %v1067
    %v1728 = vpack.c.b16 %v1080, %v1068
    %v1729 = vpack.c.b16 %v1081, %v1069
    %v1730 = vpack.c.b16 %v1094, %v1082
    %v1731 = vpack.c.b16 %v1095, %v1083
    %v1732 = vpack.c.b16 %v1096, %v1084
    %v1733 = vpack.c.b16 %v1097, %v1085
    %v1734 = vpack.c.b16 %v1098, %v1086
    %v1735 = vpack.c.b16 %v1099, %v1087
    %v1736 = vpack.c.b16 %v1100, %v1088
    %v1737 = vpack.c.b16 %v1101, %v1089
    %v1738 = vpack.c.b16 %v1102, %v1090
    %v1739 = vpack.c.b16 %v1103, %v1091
    %v1740 = vpack.c.b16 %v1104, %v1092
    %v1741 = vpack.c.b16 %v1105, %v1093
    %v1742 = vpack.c.b16 %v1118, %v1106
    %v1743 = vpack.c.b16 %v1119, %v1107
    %v1744 = vpack.c.b16 %v1120, %v1108
    %v1745 = vpack.c.b16 %v1121, %v1109
    %v1746 = vpack.c.b16 %v1122, %v1110
    %v1747 = vpack.c.b16 %v1123, %v1111
    %v1748 = vpack.c.b16 %v1124, %v1112
    %v1749 = vpack.c.b16 %v1125, %v1113
    %v1750 = vpack.c.b16 %v1126, %v1114
    %v1751 = vpack.c.b16 %v1127, %v1115
    %v1752 = vpack.c.b16 %v1128, %v1116
    %v1753 = vpack.c.b16 %v1129, %v1117
    %v1754 = vpack.c.b16 %v1142, %v1130
    %v1755 = vpack.c.b16 %v1143, %v1131
    %v1756 = vpack.c.b16 %v1144, %v1132
    %v1757 = vpack.c.b16 %v1145, %v1133
    %v1758 = vpack.c.b16 %v1146, %v1134
    %v1759 = vpack.c.b16 %v1147, %v1135
    %v1760 = vpack.c.b16 %v1148, %v1136
    %v1761 = vpack.c.b16 %v1149, %v1137
    %v1762 = vpack.c.b16 %v1150, %v1138
    %v1763 = vpack.c.b16 %v1151, %v1139
    %v1764 = vpack.c.b16 %v1152, %v1140
    %v1765 = vpack.c.b16 %v1153, %v1141
    %v1766 = vpack.c.b16 %v1166, %v1154
    %v1767 = vpack.c.b16 %v1167, %v1155
    %v1768 = vpack.c.b16 %v1168, %v1156
    %v1769 = vpack.c.b16 %v1169, %v1157
    %v1770 = vpack.c.b16 %v1170, %v1158
    %v1771 = vpack.c.b16 %v1171, %v1159
    %v1772 = vpack.c.b16 %v1172, %v1160
    %v1773 = vpack.c.b16 %v1173, %v1161
    %v1774 = vpack.c.b16 %v1174, %v1162
    %v1775 = vpack.c.b16 %v1175, %v1163
    %v1776 = vpack.c.b16 %v1176, %v1164
    %v1777 = vpack.c.b16 %v1177, %v1165
    %v1778 = vpack.c.b16 %v1190, %v1178
    %v1779 = vpack.c.b16 %v1191, %v1179
    %v1780 = vpack.c.b16 %v1192, %v1180
    %v1781 = vpack.c.b16 %v1193, %v1181
    %v1782 = vpack.c.b16 %v1194, %v1182
    %v1783 = vpack.c.b16 %v1195, %v1183
    %v1784 = vpack.c.b16 %v1196, %v1184
    %v1785 = vpack.c.b16 %v1197, %v1185
    %v1786 = vpack.c.b16 %v1198, %v1186
    %v1787 = vpack.c.b16 %v1199, %v1187
    %v1788 = vpack.c.b16 %v1200, %v1188
    %v1789 = vpack.c.b16 %v1201, %v1189
    %v1790 = vpack.c.b16 %v1214, %v1202
    %v1791 = vpack.c.b16 %v1215, %v1203
    %v1792 = vpack.c.b16 %v1216, %v1204
    %v1793 = vpack.c.b16 %v1217, %v1205
    %v1794 = vpack.c.b16 %v1218, %v1206
    %v1795 = vpack.c.b16 %v1219, %v1207
    %v1796 = vpack.c.b16 %v1220, %v1208
    %v1797 = vpack.c.b16 %v1221, %v1209
    %v1798 = vpack.c.b16 %v1222, %v1210
    %v1799 = vpack.c.b16 %v1223, %v1211
    %v1800 = vpack.c.b16 %v1224, %v1212
    %v1801 = vpack.c.b16 %v1225, %v1213
    %v1802 = vpack.c.b16 %v1238, %v1226
    %v1803 = vpack.c.b16 %v1239, %v1227
    %v1804 = vpack.c.b16 %v1240, %v1228
    %v1805 = vpack.c.b16 %v1241, %v1229
    %v1806 = vpack.c.b16 %v1242, %v1230
    %v1807 = vpack.c.b16 %v1243, %v1231
    %v1808 = vpack.c.b16 %v1244, %v1232
    %v1809 = vpack.c.b16 %v1245, %v1233
    %v1810 = vpack.c.b16 %v1246, %v1234
    %v1811 = vpack.c.b16 %v1247, %v1235
    %v1812 = vpack.c.b16 %v1248, %v1236
    %v1813 = vpack.c.b16 %v1249, %v1237
    %v1814 = vpack.c.b16 %v1262, %v1250
    %v1815 = vpack.c.b16 %v1263, %v1251
    %v1816 = vpack.c.b16 %v1264, %v1252
    %v1817 = vpack.c.b16 %v1265, %v1253
    %v1818 = vpack.c.b16 %v1266, %v1254
    %v1819 = vpack.c.b16 %v1267, %v1255
    %v1820 = vpack.c.b16 %v1268, %v1256
    %v1821 = vpack.c.b16 %v1269, %v1257
    %v1822 = vpack.c.b16 %v1270, %v1258
    %v1823 = vpack.c.b16 %v1271, %v1259
    %v1824 = vpack.c.b16 %v1272, %v1260
    %v1825 = vpack.c.b16 %v1273, %v1261
    %v1826 = vpack.c.b16 %v1286, %v1274
    %v1827 = vpack.c.b16 %v1287, %v1275
    %v1828 = vpack.c.b16 %v1288, %v1276
    %v1829 = vpack.c.b16 %v1289, %v1277
    %v1830 = vpack.c.b16 %v1290, %v1278
    %v1831 = vpack.c.b16 %v1291, %v1279
    %v1832 = vpack.c.b16 %v1292, %v1280
    %v1833 = vpack.c.b16 %v1293, %v1281
    %v1834 = vpack.c.b16 %v1294, %v1282
    %v1835 = vpack.c.b16 %v1295, %v1283
    %v1836 = vpack.c.b16 %v1296, %v1284
    %v1837 = vpack.c.b16 %v1297, %v1285
    %v1838 = vpack.c.b16 %v1310, %v1298
    %v1839 = vpack.c.b16 %v1311, %v1299
    %v1840 = vpack.c.b16 %v1312, %v1300
    %v1841 = vpack.c.b16 %v1313, %v1301
    %v1842 = vpack.c.b16 %v1314, %v1302
    %v1843 = vpack.c.b16 %v1315, %v1303
    %v1844 = vpack.c.b16 %v1316, %v1304
    %v1845 = vpack.c.b16 %v1317, %v1305
    %v1846 = vpack.c.b16 %v1318, %v1306
    %v1847 = vpack.c.b16 %v1319, %v1307
    %v1848 = vpack.c.b16 %v1320, %v1308
    %v1849 = vpack.c.b16 %v1321, %v1309
    %v1850 = vpack.c.b16 %v1334, %v1322
    %v1851 = vpack.c.b16 %v1335, %v1323
    %v1852 = vpack.c.b16 %v1336, %v1324
    %v1853 = vpack.c.b16 %v1337, %v1325
    %v1854 = vpack.c.b16 %v1338, %v1326
    %v1855 = vpack.c.b16 %v1339, %v1327
    %v1856 = vpack.c.b16 %v1340, %v1328
    %v1857 = vpack.c.b16 %v1341, %v1329
    %v1858 = vpack.c.b16 %v1342, %v1330
    %v1859 = vpack.c.b16 %v1343, %v1331
    %v1860 = vpack.c.b16 %v1344, %v1332
    %v1861 = vpack.c.b16 %v1345, %v1333
    %v1862 = vpack.c.b16 %v1358, %v1346
    %v1863 = vpack.c.b16 %v1359, %v1347
    %v1864 = vpack.c.b16 %v1360, %v1348
    %v1865 = vpack.c.b16 %v1361, %v1349
    %v1866 = vpack.c.b16 %v1362, %v1350
    %v1867 = vpack.c.b16 %v1363, %v1351
    %v1868 = vpack.c.b16 %v1364, %v1352
    %v1869 = vpack.c.b16 %v1365, %v1353
    %v1870 = vpack.c.b16 %v1366, %v1354
    %v1871 = vpack.c.b16 %v1367, %v1355
    %v1872 = vpack.c.b16 %v1368, %v1356
    %v1873 = vpack.c.b16 %v1369, %v1357
    %v1874 = vpack.c.b16 %v1382, %v1370
    %v1875 = vpack.c.b16 %v1383, %v1371
    %v1876 = vpack.c.b16 %v1384, %v1372
    %v1877 = vpack.c.b16 %v1385, %v1373
    %v1878 = vpack.c.b16 %v1386, %v1374
    %v1879 = vpack.c.b16 %v1387, %v1375
    %v1880 = vpack.c.b16 %v1388, %v1376
    %v1881 = vpack.c.b16 %v1389, %v1377
    %v1882 = vpack.c.b16 %v1390, %v1378
    %v1883 = vpack.c.b16 %v1391, %v1379
    %v1884 = vpack.c.b16 %v1392, %v1380
    %v1885 = vpack.c.b16 %v1393, %v1381
    %v1886 = vpack.c.b16 %v1406, %v1394
    %v1887 = vpack.c.b16 %v1407, %v1395
    %v1888 = vpack.c.b16 %v1408, %v1396
    %v1889 = vpack.c.b16 %v1409, %v1397
    %v1890 = vpack.c.b16 %v1410, %v1398
    %v1891 = vpack.c.b16 %v1411, %v1399
    %v1892 = vpack.c.b16 %v1412, %v1400
    %v1893 = vpack.c.b16 %v1413, %v1401
    %v1894 = vpack.c.b16 %v1414, %v1402
    %v1895 = vpack.c.b16 %v1415, %v1403
    %v1896 = vpack.c.b16 %v1416, %v1404
    %v1897 = vpack.c.b16 %v1417, %v1405
    %v1898 = vpack.c.b16 %v1430, %v1418
    %v1899 = vpack.c.b16 %v1431, %v1419
    %v1900 = vpack.c.b16 %v1432, %v1420
    %v1901 = vpack.c.b16 %v1433, %v1421
    %v1902 = vpack.c.b16 %v1434, %v1422
    %v1903 = vpack.c.b16 %v1435, %v1423
    %v1904 = vpack.c.b16 %v1436, %v1424
    %v1905 = vpack.c.b16 %v1437, %v1425
    %v1906 = vpack.c.b16 %v1438, %v1426
    %v1907 = vpack.c.b16 %v1439, %v1427
    %v1908 = vpack.c.b16 %v1440, %v1428
    %v1909 = vpack.c.b16 %v1441, %v1429
    %v1910 = vpack.c.b16 %v1454, %v1442
    %v1911 = vpack.c.b16 %v1455, %v1443
    %v1912 = vpack.c.b16 %v1456, %v1444
    %v1913 = vpack.c.b16 %v1457, %v1445
    %v1914 = vpack.c.b16 %v1458, %v1446
    %v1915 = vpack.c.b16 %v1459, %v1447
    %v1916 = vpack.c.b16 %v1460, %v1448
    %v1917 = vpack.c.b16 %v1461, %v1449
    %v1918 = vpack.c.b16 %v1462, %v1450
    %v1919 = vpack.c.b16 %v1463, %v1451
    %v1920 = vpack.c.b16 %v1464, %v1452
    %v1921 = vpack.c.b16 %v1465, %v1453
    %v1922 = vpack.c.b16 %v1478, %v1466
    %v1923 = vpack.c.b16 %v1479, %v1467
    %v1924 = vpack.c.b16 %v1480, %v1468
    %v1925 = vpack.c.b16 %v1481, %v1469
    %v1926 = vpack.c.b16 %v1482, %v1470
    %v1927 = vpack.c.b16 %v1483, %v1471
    %v1928 = vpack.c.b16 %v1484, %v1472
    %v1929 = vpack.c.b16 %v1485, %v1473
    %v1930 = vpack.c.b16 %v1486, %v1474
    %v1931 = vpack.c.b16 %v1487, %v1475
    %v1932 = vpack.c.b16 %v1488, %v1476
    %v1933 = vpack.c.b16 %v1489, %v1477
    %v1934 = vpack.c.b16 %v1502, %v1490
    %v1935 = vpack.c.b16 %v1503, %v1491
    %v1936 = vpack.c.b16 %v1504, %v1492
    %v1937 = vpack.c.b16 %v1505, %v1493
    %v1938 = vpack.c.b16 %v1506, %v1494
    %v1939 = vpack.c.b16 %v1507, %v1495
    %v1940 = vpack.c.b16 %v1508, %v1496
    %v1941 = vpack.c.b16 %v1509, %v1497
    %v1942 = vpack.c.b16 %v1510, %v1498
    %v1943 = vpack.c.b16 %v1511, %v1499
    %v1944 = vpack.c.b16 %v1512, %v1500
    %v1945 = vpack.c.b16 %v1513, %v1501
    %v1946 = vpack.c.b16 %v1526, %v1514
    %v1947 = vpack.c.b16 %v1527, %v1515
    %v1948 = vpack.c.b16 %v1528, %v1516
    %v1949 = vpack.c.b16 %v1529, %v1517
    %v1950 = vpack.c.b16 %v1530, %v1518
    %v1951 = vpack.c.b16 %v1531, %v1519
    %v1952 = vpack.c.b16 %v1532, %v1520
    %v1953 = vpack.c.b16 %v1533, %v1521
    %v1954 = vpack.c.b16 %v1534, %v1522
    %v1955 = vpack.c.b16 %v1535, %v1523
    %v1956 = vpack.c.b16 %v1536, %v1524
    %v1957 = vpack.c.b16 %v1537, %v1525
    %v1958 = vpack.c.b16 %v1550, %v1538
    %v1959 = vpack.c.b16 %v1551, %v1539
    %v1960 = vpack.c.b16 %v1552, %v1540
    %v1961 = vpack.c.b16 %v1553, %v1541
    %v1962 = vpack.c.b16 %v1554, %v1542
    %v1963 = vpack.c.b16 %v1555, %v1543
    %v1964 = vpack.c.b16 %v1556, %v1544
    %v1965 = vpack.c.b16 %v1557, %v1545
    %v1966 = vpack.c.b16 %v1558, %v1546
    %v1967 = vpack.c.b16 %v1559, %v1547
    %v1968 = vpack.c.b16 %v1560, %v1548
    %v1969 = vpack.c.b16 %v1561, %v1549
    %v1970 = vpack.c.b16 %v1574, %v1562
    %v1971 = vpack.c.b16 %v1575, %v1563
    %v1972 = vpack.c.b16 %v1576, %v1564
    %v1973 = vpack.c.b16 %v1577, %v1565
    %v1974 = vpack.c.b16 %v1578, %v1566
    %v1975 = vpack.c.b16 %v1579, %v1567
    %v1976 = vpack.c.b16 %v1580, %v1568
    %v1977 = vpack.c.b16 %v1581, %v1569
    %v1978 = vpack.c.b16 %v1582, %v1570
    %v1979 = vpack.c.b16 %v1583, %v1571
    %v1980 = vpack.c.b16 %v1584, %v1572
    %v1981 = vpack.c.b16 %v1585, %v1573
    %v1982 = vpack.c.b16 %v1598, %v1586
    %v1983 = vpack.c.b16 %v1599, %v1587
    %v1984 = vpack.c.b16 %v1600, %v1588
    %v1985 = vpack.c.b16 %v1601, %v1589
    %v1986 = vpack.c.b16 %v1602, %v1590
    %v1987 = vpack.c.b16 %v1603, %v1591
    %v1988 = vpack.c.b16 %v1604, %v1592
    %v1989 = vpack.c.b16 %v1605, %v1593
    %v1990 = vpack.c.b16 %v1606, %v1594
    %v1991 = vpack.c.b16 %v1607, %v1595
    %v1992 = vpack.c.b16 %v1608, %v1596
    %v1993 = vpack.c.b16 %v1609, %v1597
    %2378 = vmatpush.bf16.msra.mxu0 %v1694
    %2379 = vmatpush.bf16.msra.mxu0 %v1682
    %2380 = vmatpush.bf16.msra.mxu0 %v1670
    %2381 = vmatpush.bf16.msra.mxu0 %v1658
    %2382 = vmatpush.bf16.msra.mxu0 %v1646
    %2383 = vmatpush.bf16.msra.mxu0 %v1634
    %2384 = vmatpush.bf16.msra.mxu0 %v1622
    %2385 = vmatpush.bf16.msra.mxu0 %v1610
    %2386 = vmatmul.bf16.gmra.mxu0 %v38
    %v2387 = vpop.f32.mrf.mxu0
    %v2388 = vadd.f32 %v434, %v2387
    %v2389 = vpop.f32.mrf.mxu0
    %v2390 = vadd.f32 %v434, %v2389
    %2391 = vmatmul.bf16.gmra.mxu0 %v42
    %v2392 = vpop.f32.mrf.mxu0
    %v2393 = vadd.f32 %v434, %v2392
    %v2394 = vpop.f32.mrf.mxu0
    %v2395 = vadd.f32 %v434, %v2394
    %2396 = vdwg.mxu0
    %2397 = vmatpush.bf16.msra.mxu0 %v1790
    %2398 = vmatpush.bf16.msra.mxu0 %v1778
    %2399 = vmatpush.bf16.msra.mxu0 %v1766
    %2400 = vmatpush.bf16.msra.mxu0 %v1754
    %2401 = vmatpush.bf16.msra.mxu0 %v1742
    %2402 = vmatpush.bf16.msra.mxu0 %v1730
    %2403 = vmatpush.bf16.msra.mxu0 %v1718
    %2404 = vmatpush.bf16.msra.mxu0 %v1706
    %2405 = vmatmul.bf16.gmra.mxu0 %v39
    %v2406 = vpop.f32.mrf.mxu0
    %v2407 = vadd.f32 %v2388, %v2406
    %v2408 = vpop.f32.mrf.mxu0
    %v2409 = vadd.f32 %v2390, %v2408
    %2410 = vmatmul.bf16.gmra.mxu0 %v43
    %v2411 = vpop.f32.mrf.mxu0
    %v2412 = vadd.f32 %v2393, %v2411
    %v2413 = vpop.f32.mrf.mxu0
    %v2414 = vadd.f32 %v2395, %v2413
    %2415 = vdwg.mxu0
    %2416 = vmatpush.bf16.msra.mxu0 %v1886
    %2417 = vmatpush.bf16.msra.mxu0 %v1874
    %2418 = vmatpush.bf16.msra.mxu0 %v1862
    %2419 = vmatpush.bf16.msra.mxu0 %v1850
    %2420 = vmatpush.bf16.msra.mxu0 %v1838
    %2421 = vmatpush.bf16.msra.mxu0 %v1826
    %2422 = vmatpush.bf16.msra.mxu0 %v1814
    %2423 = vmatpush.bf16.msra.mxu0 %v1802
    %2424 = vmatmul.bf16.gmra.mxu0 %v40
    %v2425 = vpop.f32.mrf.mxu0
    %v2426 = vadd.f32 %v2407, %v2425
    %v2427 = vpop.f32.mrf.mxu0
    %v2428 = vadd.f32 %v2409, %v2427
    %2429 = vmatmul.bf16.gmra.mxu0 %v44
    %v2430 = vpop.f32.mrf.mxu0
    %v2431 = vadd.f32 %v2412, %v2430
    %v2432 = vpop.f32.mrf.mxu0
    %v2433 = vadd.f32 %v2414, %v2432
    %2434 = vdwg.mxu0
    %2435 = vmatpush.bf16.msra.mxu0 %v1982
    %2436 = vmatpush.bf16.msra.mxu0 %v1970
    %2437 = vmatpush.bf16.msra.mxu0 %v1958
    %2438 = vmatpush.bf16.msra.mxu0 %v1946
    %2439 = vmatpush.bf16.msra.mxu0 %v1934
    %2440 = vmatpush.bf16.msra.mxu0 %v1922
    %2441 = vmatpush.bf16.msra.mxu0 %v1910
    %2442 = vmatpush.bf16.msra.mxu0 %v1898
    %2443 = vmatmul.bf16.gmra.mxu0 %v41
    %v2444 = vpop.f32.mrf.mxu0
    %v2445 = vadd.f32 %v2426, %v2444
    %v2446 = vpop.f32.mrf.mxu0
    %v2447 = vadd.f32 %v2428, %v2446
    %2448 = vmatmul.bf16.gmra.mxu0 %v45
    %v2449 = vpop.f32.mrf.mxu0
    %v2450 = vadd.f32 %v2431, %v2449
    %v2451 = vpop.f32.mrf.mxu0
    %v2452 = vadd.f32 %v2433, %v2451
    %2453 = vdwg.mxu0
    %2454 = vmatpush.bf16.msra.mxu0 %v1695
    %2455 = vmatpush.bf16.msra.mxu0 %v1683
    %2456 = vmatpush.bf16.msra.mxu0 %v1671
    %2457 = vmatpush.bf16.msra.mxu0 %v1659
    %2458 = vmatpush.bf16.msra.mxu0 %v1647
    %2459 = vmatpush.bf16.msra.mxu0 %v1635
    %2460 = vmatpush.bf16.msra.mxu0 %v1623
    %2461 = vmatpush.bf16.msra.mxu0 %v1611
    %2462 = vmatmul.bf16.gmra.mxu0 %v38
    %v2463 = vpop.f32.mrf.mxu0
    %v2464 = vadd.f32 %v435, %v2463
    %v2465 = vpop.f32.mrf.mxu0
    %v2466 = vadd.f32 %v435, %v2465
    %2467 = vmatmul.bf16.gmra.mxu0 %v42
    %v2468 = vpop.f32.mrf.mxu0
    %v2469 = vadd.f32 %v435, %v2468
    %v2470 = vpop.f32.mrf.mxu0
    %v2471 = vadd.f32 %v435, %v2470
    %2472 = vdwg.mxu0
    %2473 = vmatpush.bf16.msra.mxu0 %v1791
    %2474 = vmatpush.bf16.msra.mxu0 %v1779
    %2475 = vmatpush.bf16.msra.mxu0 %v1767
    %2476 = vmatpush.bf16.msra.mxu0 %v1755
    %2477 = vmatpush.bf16.msra.mxu0 %v1743
    %2478 = vmatpush.bf16.msra.mxu0 %v1731
    %2479 = vmatpush.bf16.msra.mxu0 %v1719
    %2480 = vmatpush.bf16.msra.mxu0 %v1707
    %2481 = vmatmul.bf16.gmra.mxu0 %v39
    %v2482 = vpop.f32.mrf.mxu0
    %v2483 = vadd.f32 %v2464, %v2482
    %v2484 = vpop.f32.mrf.mxu0
    %v2485 = vadd.f32 %v2466, %v2484
    %2486 = vmatmul.bf16.gmra.mxu0 %v43
    %v2487 = vpop.f32.mrf.mxu0
    %v2488 = vadd.f32 %v2469, %v2487
    %v2489 = vpop.f32.mrf.mxu0
    %v2490 = vadd.f32 %v2471, %v2489
    %2491 = vdwg.mxu0
    %2492 = vmatpush.bf16.msra.mxu0 %v1887
    %2493 = vmatpush.bf16.msra.mxu0 %v1875
    %2494 = vmatpush.bf16.msra.mxu0 %v1863
    %2495 = vmatpush.bf16.msra.mxu0 %v1851
    %2496 = vmatpush.bf16.msra.mxu0 %v1839
    %2497 = vmatpush.bf16.msra.mxu0 %v1827
    %2498 = vmatpush.bf16.msra.mxu0 %v1815
    %2499 = vmatpush.bf16.msra.mxu0 %v1803
    %2500 = vmatmul.bf16.gmra.mxu0 %v40
    %v2501 = vpop.f32.mrf.mxu0
    %v2502 = vadd.f32 %v2483, %v2501
    %v2503 = vpop.f32.mrf.mxu0
    %v2504 = vadd.f32 %v2485, %v2503
    %2505 = vmatmul.bf16.gmra.mxu0 %v44
    %v2506 = vpop.f32.mrf.mxu0
    %v2507 = vadd.f32 %v2488, %v2506
    %v2508 = vpop.f32.mrf.mxu0
    %v2509 = vadd.f32 %v2490, %v2508
    %2510 = vdwg.mxu0
    %2511 = vmatpush.bf16.msra.mxu0 %v1983
    %2512 = vmatpush.bf16.msra.mxu0 %v1971
    %2513 = vmatpush.bf16.msra.mxu0 %v1959
    %2514 = vmatpush.bf16.msra.mxu0 %v1947
    %2515 = vmatpush.bf16.msra.mxu0 %v1935
    %2516 = vmatpush.bf16.msra.mxu0 %v1923
    %2517 = vmatpush.bf16.msra.mxu0 %v1911
    %2518 = vmatpush.bf16.msra.mxu0 %v1899
    %2519 = vmatmul.bf16.gmra.mxu0 %v41
    %v2520 = vpop.f32.mrf.mxu0
    %v2521 = vadd.f32 %v2502, %v2520
    %v2522 = vpop.f32.mrf.mxu0
    %v2523 = vadd.f32 %v2504, %v2522
    %2524 = vmatmul.bf16.gmra.mxu0 %v45
    %v2525 = vpop.f32.mrf.mxu0
    %v2526 = vadd.f32 %v2507, %v2525
    %v2527 = vpop.f32.mrf.mxu0
    %v2528 = vadd.f32 %v2509, %v2527
    %2529 = vdwg.mxu0
    %2530 = vmatpush.bf16.msra.mxu0 %v1696
    %2531 = vmatpush.bf16.msra.mxu0 %v1684
    %2532 = vmatpush.bf16.msra.mxu0 %v1672
    %2533 = vmatpush.bf16.msra.mxu0 %v1660
    %2534 = vmatpush.bf16.msra.mxu0 %v1648
    %2535 = vmatpush.bf16.msra.mxu0 %v1636
    %2536 = vmatpush.bf16.msra.mxu0 %v1624
    %2537 = vmatpush.bf16.msra.mxu0 %v1612
    %2538 = vmatmul.bf16.gmra.mxu0 %v38
    %v2539 = vpop.f32.mrf.mxu0
    %v2540 = vadd.f32 %v436, %v2539
    %v2541 = vpop.f32.mrf.mxu0
    %v2542 = vadd.f32 %v436, %v2541
    %2543 = vmatmul.bf16.gmra.mxu0 %v42
    %v2544 = vpop.f32.mrf.mxu0
    %v2545 = vadd.f32 %v436, %v2544
    %v2546 = vpop.f32.mrf.mxu0
    %v2547 = vadd.f32 %v436, %v2546
    %2548 = vdwg.mxu0
    %2549 = vmatpush.bf16.msra.mxu0 %v1792
    %2550 = vmatpush.bf16.msra.mxu0 %v1780
    %2551 = vmatpush.bf16.msra.mxu0 %v1768
    %2552 = vmatpush.bf16.msra.mxu0 %v1756
    %2553 = vmatpush.bf16.msra.mxu0 %v1744
    %2554 = vmatpush.bf16.msra.mxu0 %v1732
    %2555 = vmatpush.bf16.msra.mxu0 %v1720
    %2556 = vmatpush.bf16.msra.mxu0 %v1708
    %2557 = vmatmul.bf16.gmra.mxu0 %v39
    %v2558 = vpop.f32.mrf.mxu0
    %v2559 = vadd.f32 %v2540, %v2558
    %v2560 = vpop.f32.mrf.mxu0
    %v2561 = vadd.f32 %v2542, %v2560
    %2562 = vmatmul.bf16.gmra.mxu0 %v43
    %v2563 = vpop.f32.mrf.mxu0
    %v2564 = vadd.f32 %v2545, %v2563
    %v2565 = vpop.f32.mrf.mxu0
    %v2566 = vadd.f32 %v2547, %v2565
    %2567 = vdwg.mxu0
    %2568 = vmatpush.bf16.msra.mxu0 %v1888
    %2569 = vmatpush.bf16.msra.mxu0 %v1876
    %2570 = vmatpush.bf16.msra.mxu0 %v1864
    %2571 = vmatpush.bf16.msra.mxu0 %v1852
    %2572 = vmatpush.bf16.msra.mxu0 %v1840
    %2573 = vmatpush.bf16.msra.mxu0 %v1828
    %2574 = vmatpush.bf16.msra.mxu0 %v1816
    %2575 = vmatpush.bf16.msra.mxu0 %v1804
    %2576 = vmatmul.bf16.gmra.mxu0 %v40
    %v2577 = vpop.f32.mrf.mxu0
    %v2578 = vadd.f32 %v2559, %v2577
    %v2579 = vpop.f32.mrf.mxu0
    %v2580 = vadd.f32 %v2561, %v2579
    %2581 = vmatmul.bf16.gmra.mxu0 %v44
    %v2582 = vpop.f32.mrf.mxu0
    %v2583 = vadd.f32 %v2564, %v2582
    %v2584 = vpop.f32.mrf.mxu0
    %v2585 = vadd.f32 %v2566, %v2584
    %2586 = vdwg.mxu0
    %2587 = vmatpush.bf16.msra.mxu0 %v1984
    %2588 = vmatpush.bf16.msra.mxu0 %v1972
    %2589 = vmatpush.bf16.msra.mxu0 %v1960
    %2590 = vmatpush.bf16.msra.mxu0 %v1948
    %2591 = vmatpush.bf16.msra.mxu0 %v1936
    %2592 = vmatpush.bf16.msra.mxu0 %v1924
    %2593 = vmatpush.bf16.msra.mxu0 %v1912
    %2594 = vmatpush.bf16.msra.mxu0 %v1900
    %2595 = vmatmul.bf16.gmra.mxu0 %v41
    %v2596 = vpop.f32.mrf.mxu0
    %v2597 = vadd.f32 %v2578, %v2596
    %v2598 = vpop.f32.mrf.mxu0
    %v2599 = vadd.f32 %v2580, %v2598
    %2600 = vmatmul.bf16.gmra.mxu0 %v45
    %v2601 = vpop.f32.mrf.mxu0
    %v2602 = vadd.f32 %v2583, %v2601
    %v2603 = vpop.f32.mrf.mxu0
    %v2604 = vadd.f32 %v2585, %v2603
    %2605 = vdwg.mxu0
    %2606 = vmatpush.bf16.msra.mxu0 %v1697
    %2607 = vmatpush.bf16.msra.mxu0 %v1685
    %2608 = vmatpush.bf16.msra.mxu0 %v1673
    %2609 = vmatpush.bf16.msra.mxu0 %v1661
    %2610 = vmatpush.bf16.msra.mxu0 %v1649
    %2611 = vmatpush.bf16.msra.mxu0 %v1637
    %2612 = vmatpush.bf16.msra.mxu0 %v1625
    %2613 = vmatpush.bf16.msra.mxu0 %v1613
    %2614 = vmatmul.bf16.gmra.mxu0 %v38
    %v2615 = vpop.f32.mrf.mxu0
    %v2616 = vadd.f32 %v437, %v2615
    %v2617 = vpop.f32.mrf.mxu0
    %v2618 = vadd.f32 %v437, %v2617
    %2619 = vmatmul.bf16.gmra.mxu0 %v42
    %v2620 = vpop.f32.mrf.mxu0
    %v2621 = vadd.f32 %v437, %v2620
    %v2622 = vpop.f32.mrf.mxu0
    %v2623 = vadd.f32 %v437, %v2622
    %2624 = vdwg.mxu0
    %2625 = vmatpush.bf16.msra.mxu0 %v1793
    %2626 = vmatpush.bf16.msra.mxu0 %v1781
    %2627 = vmatpush.bf16.msra.mxu0 %v1769
    %2628 = vmatpush.bf16.msra.mxu0 %v1757
    %2629 = vmatpush.bf16.msra.mxu0 %v1745
    %2630 = vmatpush.bf16.msra.mxu0 %v1733
    %2631 = vmatpush.bf16.msra.mxu0 %v1721
    %2632 = vmatpush.bf16.msra.mxu0 %v1709
    %2633 = vmatmul.bf16.gmra.mxu0 %v39
    %v2634 = vpop.f32.mrf.mxu0
    %v2635 = vadd.f32 %v2616, %v2634
    %v2636 = vpop.f32.mrf.mxu0
    %v2637 = vadd.f32 %v2618, %v2636
    %2638 = vmatmul.bf16.gmra.mxu0 %v43
    %v2639 = vpop.f32.mrf.mxu0
    %v2640 = vadd.f32 %v2621, %v2639
    %v2641 = vpop.f32.mrf.mxu0
    %v2642 = vadd.f32 %v2623, %v2641
    %2643 = vdwg.mxu0
    %2644 = vmatpush.bf16.msra.mxu0 %v1889
    %2645 = vmatpush.bf16.msra.mxu0 %v1877
    %2646 = vmatpush.bf16.msra.mxu0 %v1865
    %2647 = vmatpush.bf16.msra.mxu0 %v1853
    %2648 = vmatpush.bf16.msra.mxu0 %v1841
    %2649 = vmatpush.bf16.msra.mxu0 %v1829
    %2650 = vmatpush.bf16.msra.mxu0 %v1817
    %2651 = vmatpush.bf16.msra.mxu0 %v1805
    %2652 = vmatmul.bf16.gmra.mxu0 %v40
    %v2653 = vpop.f32.mrf.mxu0
    %v2654 = vadd.f32 %v2635, %v2653
    %v2655 = vpop.f32.mrf.mxu0
    %v2656 = vadd.f32 %v2637, %v2655
    %2657 = vmatmul.bf16.gmra.mxu0 %v44
    %v2658 = vpop.f32.mrf.mxu0
    %v2659 = vadd.f32 %v2640, %v2658
    %v2660 = vpop.f32.mrf.mxu0
    %v2661 = vadd.f32 %v2642, %v2660
    %2662 = vdwg.mxu0
    %2663 = vmatpush.bf16.msra.mxu0 %v1985
    %2664 = vmatpush.bf16.msra.mxu0 %v1973
    %2665 = vmatpush.bf16.msra.mxu0 %v1961
    %2666 = vmatpush.bf16.msra.mxu0 %v1949
    %2667 = vmatpush.bf16.msra.mxu0 %v1937
    %2668 = vmatpush.bf16.msra.mxu0 %v1925
    %2669 = vmatpush.bf16.msra.mxu0 %v1913
    %2670 = vmatpush.bf16.msra.mxu0 %v1901
    %2671 = vmatmul.bf16.gmra.mxu0 %v41
    %v2672 = vpop.f32.mrf.mxu0
    %v2673 = vadd.f32 %v2654, %v2672
    %v2674 = vpop.f32.mrf.mxu0
    %v2675 = vadd.f32 %v2656, %v2674
    %2676 = vmatmul.bf16.gmra.mxu0 %v45
    %v2677 = vpop.f32.mrf.mxu0
    %v2678 = vadd.f32 %v2659, %v2677
    %v2679 = vpop.f32.mrf.mxu0
    %v2680 = vadd.f32 %v2661, %v2679
    %2681 = vdwg.mxu0
    %2682 = vmatpush.bf16.msra.mxu0 %v1698
    %2683 = vmatpush.bf16.msra.mxu0 %v1686
    %2684 = vmatpush.bf16.msra.mxu0 %v1674
    %2685 = vmatpush.bf16.msra.mxu0 %v1662
    %2686 = vmatpush.bf16.msra.mxu0 %v1650
    %2687 = vmatpush.bf16.msra.mxu0 %v1638
    %2688 = vmatpush.bf16.msra.mxu0 %v1626
    %2689 = vmatpush.bf16.msra.mxu0 %v1614
    %2690 = vmatmul.bf16.gmra.mxu0 %v38
    %v2691 = vpop.f32.mrf.mxu0
    %v2692 = vadd.f32 %v438, %v2691
    %v2693 = vpop.f32.mrf.mxu0
    %v2694 = vadd.f32 %v438, %v2693
    %2695 = vmatmul.bf16.gmra.mxu0 %v42
    %v2696 = vpop.f32.mrf.mxu0
    %v2697 = vadd.f32 %v438, %v2696
    %v2698 = vpop.f32.mrf.mxu0
    %v2699 = vadd.f32 %v438, %v2698
    %2700 = vdwg.mxu0
    %2701 = vmatpush.bf16.msra.mxu0 %v1794
    %2702 = vmatpush.bf16.msra.mxu0 %v1782
    %2703 = vmatpush.bf16.msra.mxu0 %v1770
    %2704 = vmatpush.bf16.msra.mxu0 %v1758
    %2705 = vmatpush.bf16.msra.mxu0 %v1746
    %2706 = vmatpush.bf16.msra.mxu0 %v1734
    %2707 = vmatpush.bf16.msra.mxu0 %v1722
    %2708 = vmatpush.bf16.msra.mxu0 %v1710
    %2709 = vmatmul.bf16.gmra.mxu0 %v39
    %v2710 = vpop.f32.mrf.mxu0
    %v2711 = vadd.f32 %v2692, %v2710
    %v2712 = vpop.f32.mrf.mxu0
    %v2713 = vadd.f32 %v2694, %v2712
    %2714 = vmatmul.bf16.gmra.mxu0 %v43
    %v2715 = vpop.f32.mrf.mxu0
    %v2716 = vadd.f32 %v2697, %v2715
    %v2717 = vpop.f32.mrf.mxu0
    %v2718 = vadd.f32 %v2699, %v2717
    %2719 = vdwg.mxu0
    %2720 = vmatpush.bf16.msra.mxu0 %v1890
    %2721 = vmatpush.bf16.msra.mxu0 %v1878
    %2722 = vmatpush.bf16.msra.mxu0 %v1866
    %2723 = vmatpush.bf16.msra.mxu0 %v1854
    %2724 = vmatpush.bf16.msra.mxu0 %v1842
    %2725 = vmatpush.bf16.msra.mxu0 %v1830
    %2726 = vmatpush.bf16.msra.mxu0 %v1818
    %2727 = vmatpush.bf16.msra.mxu0 %v1806
    %2728 = vmatmul.bf16.gmra.mxu0 %v40
    %v2729 = vpop.f32.mrf.mxu0
    %v2730 = vadd.f32 %v2711, %v2729
    %v2731 = vpop.f32.mrf.mxu0
    %v2732 = vadd.f32 %v2713, %v2731
    %2733 = vmatmul.bf16.gmra.mxu0 %v44
    %v2734 = vpop.f32.mrf.mxu0
    %v2735 = vadd.f32 %v2716, %v2734
    %v2736 = vpop.f32.mrf.mxu0
    %v2737 = vadd.f32 %v2718, %v2736
    %2738 = vdwg.mxu0
    %2739 = vmatpush.bf16.msra.mxu0 %v1986
    %2740 = vmatpush.bf16.msra.mxu0 %v1974
    %2741 = vmatpush.bf16.msra.mxu0 %v1962
    %2742 = vmatpush.bf16.msra.mxu0 %v1950
    %2743 = vmatpush.bf16.msra.mxu0 %v1938
    %2744 = vmatpush.bf16.msra.mxu0 %v1926
    %2745 = vmatpush.bf16.msra.mxu0 %v1914
    %2746 = vmatpush.bf16.msra.mxu0 %v1902
    %2747 = vmatmul.bf16.gmra.mxu0 %v41
    %v2748 = vpop.f32.mrf.mxu0
    %v2749 = vadd.f32 %v2730, %v2748
    %v2750 = vpop.f32.mrf.mxu0
    %v2751 = vadd.f32 %v2732, %v2750
    %2752 = vmatmul.bf16.gmra.mxu0 %v45
    %v2753 = vpop.f32.mrf.mxu0
    %v2754 = vadd.f32 %v2735, %v2753
    %v2755 = vpop.f32.mrf.mxu0
    %v2756 = vadd.f32 %v2737, %v2755
    %2757 = vdwg.mxu0
    %2758 = vmatpush.bf16.msra.mxu0 %v1699
    %2759 = vmatpush.bf16.msra.mxu0 %v1687
    %2760 = vmatpush.bf16.msra.mxu0 %v1675
    %2761 = vmatpush.bf16.msra.mxu0 %v1663
    %2762 = vmatpush.bf16.msra.mxu0 %v1651
    %2763 = vmatpush.bf16.msra.mxu0 %v1639
    %2764 = vmatpush.bf16.msra.mxu0 %v1627
    %2765 = vmatpush.bf16.msra.mxu0 %v1615
    %2766 = vmatmul.bf16.gmra.mxu0 %v38
    %v2767 = vpop.f32.mrf.mxu0
    %v2768 = vadd.f32 %v439, %v2767
    %v2769 = vpop.f32.mrf.mxu0
    %v2770 = vadd.f32 %v439, %v2769
    %2771 = vmatmul.bf16.gmra.mxu0 %v42
    %v2772 = vpop.f32.mrf.mxu0
    %v2773 = vadd.f32 %v439, %v2772
    %v2774 = vpop.f32.mrf.mxu0
    %v2775 = vadd.f32 %v439, %v2774
    %2776 = vdwg.mxu0
    %2777 = vmatpush.bf16.msra.mxu0 %v1795
    %2778 = vmatpush.bf16.msra.mxu0 %v1783
    %2779 = vmatpush.bf16.msra.mxu0 %v1771
    %2780 = vmatpush.bf16.msra.mxu0 %v1759
    %2781 = vmatpush.bf16.msra.mxu0 %v1747
    %2782 = vmatpush.bf16.msra.mxu0 %v1735
    %2783 = vmatpush.bf16.msra.mxu0 %v1723
    %2784 = vmatpush.bf16.msra.mxu0 %v1711
    %2785 = vmatmul.bf16.gmra.mxu0 %v39
    %v2786 = vpop.f32.mrf.mxu0
    %v2787 = vadd.f32 %v2768, %v2786
    %v2788 = vpop.f32.mrf.mxu0
    %v2789 = vadd.f32 %v2770, %v2788
    %2790 = vmatmul.bf16.gmra.mxu0 %v43
    %v2791 = vpop.f32.mrf.mxu0
    %v2792 = vadd.f32 %v2773, %v2791
    %v2793 = vpop.f32.mrf.mxu0
    %v2794 = vadd.f32 %v2775, %v2793
    %2795 = vdwg.mxu0
    %2796 = vmatpush.bf16.msra.mxu0 %v1891
    %2797 = vmatpush.bf16.msra.mxu0 %v1879
    %2798 = vmatpush.bf16.msra.mxu0 %v1867
    %2799 = vmatpush.bf16.msra.mxu0 %v1855
    %2800 = vmatpush.bf16.msra.mxu0 %v1843
    %2801 = vmatpush.bf16.msra.mxu0 %v1831
    %2802 = vmatpush.bf16.msra.mxu0 %v1819
    %2803 = vmatpush.bf16.msra.mxu0 %v1807
    %2804 = vmatmul.bf16.gmra.mxu0 %v40
    %v2805 = vpop.f32.mrf.mxu0
    %v2806 = vadd.f32 %v2787, %v2805
    %v2807 = vpop.f32.mrf.mxu0
    %v2808 = vadd.f32 %v2789, %v2807
    %2809 = vmatmul.bf16.gmra.mxu0 %v44
    %v2810 = vpop.f32.mrf.mxu0
    %v2811 = vadd.f32 %v2792, %v2810
    %v2812 = vpop.f32.mrf.mxu0
    %v2813 = vadd.f32 %v2794, %v2812
    %2814 = vdwg.mxu0
    %2815 = vmatpush.bf16.msra.mxu0 %v1987
    %2816 = vmatpush.bf16.msra.mxu0 %v1975
    %2817 = vmatpush.bf16.msra.mxu0 %v1963
    %2818 = vmatpush.bf16.msra.mxu0 %v1951
    %2819 = vmatpush.bf16.msra.mxu0 %v1939
    %2820 = vmatpush.bf16.msra.mxu0 %v1927
    %2821 = vmatpush.bf16.msra.mxu0 %v1915
    %2822 = vmatpush.bf16.msra.mxu0 %v1903
    %2823 = vmatmul.bf16.gmra.mxu0 %v41
    %v2824 = vpop.f32.mrf.mxu0
    %v2825 = vadd.f32 %v2806, %v2824
    %v2826 = vpop.f32.mrf.mxu0
    %v2827 = vadd.f32 %v2808, %v2826
    %2828 = vmatmul.bf16.gmra.mxu0 %v45
    %v2829 = vpop.f32.mrf.mxu0
    %v2830 = vadd.f32 %v2811, %v2829
    %v2831 = vpop.f32.mrf.mxu0
    %v2832 = vadd.f32 %v2813, %v2831
    %2833 = vdwg.mxu0
    %2834 = vmatpush.bf16.msra.mxu0 %v1700
    %2835 = vmatpush.bf16.msra.mxu0 %v1688
    %2836 = vmatpush.bf16.msra.mxu0 %v1676
    %2837 = vmatpush.bf16.msra.mxu0 %v1664
    %2838 = vmatpush.bf16.msra.mxu0 %v1652
    %2839 = vmatpush.bf16.msra.mxu0 %v1640
    %2840 = vmatpush.bf16.msra.mxu0 %v1628
    %2841 = vmatpush.bf16.msra.mxu0 %v1616
    %2842 = vmatmul.bf16.gmra.mxu0 %v38
    %v2843 = vpop.f32.mrf.mxu0
    %v2844 = vadd.f32 %v440, %v2843
    %v2845 = vpop.f32.mrf.mxu0
    %v2846 = vadd.f32 %v440, %v2845
    %2847 = vmatmul.bf16.gmra.mxu0 %v42
    %v2848 = vpop.f32.mrf.mxu0
    %v2849 = vadd.f32 %v440, %v2848
    %v2850 = vpop.f32.mrf.mxu0
    %v2851 = vadd.f32 %v440, %v2850
    %2852 = vdwg.mxu0
    %2853 = vmatpush.bf16.msra.mxu0 %v1796
    %2854 = vmatpush.bf16.msra.mxu0 %v1784
    %2855 = vmatpush.bf16.msra.mxu0 %v1772
    %2856 = vmatpush.bf16.msra.mxu0 %v1760
    %2857 = vmatpush.bf16.msra.mxu0 %v1748
    %2858 = vmatpush.bf16.msra.mxu0 %v1736
    %2859 = vmatpush.bf16.msra.mxu0 %v1724
    %2860 = vmatpush.bf16.msra.mxu0 %v1712
    %2861 = vmatmul.bf16.gmra.mxu0 %v39
    %v2862 = vpop.f32.mrf.mxu0
    %v2863 = vadd.f32 %v2844, %v2862
    %v2864 = vpop.f32.mrf.mxu0
    %v2865 = vadd.f32 %v2846, %v2864
    %2866 = vmatmul.bf16.gmra.mxu0 %v43
    %v2867 = vpop.f32.mrf.mxu0
    %v2868 = vadd.f32 %v2849, %v2867
    %v2869 = vpop.f32.mrf.mxu0
    %v2870 = vadd.f32 %v2851, %v2869
    %2871 = vdwg.mxu0
    %2872 = vmatpush.bf16.msra.mxu0 %v1892
    %2873 = vmatpush.bf16.msra.mxu0 %v1880
    %2874 = vmatpush.bf16.msra.mxu0 %v1868
    %2875 = vmatpush.bf16.msra.mxu0 %v1856
    %2876 = vmatpush.bf16.msra.mxu0 %v1844
    %2877 = vmatpush.bf16.msra.mxu0 %v1832
    %2878 = vmatpush.bf16.msra.mxu0 %v1820
    %2879 = vmatpush.bf16.msra.mxu0 %v1808
    %2880 = vmatmul.bf16.gmra.mxu0 %v40
    %v2881 = vpop.f32.mrf.mxu0
    %v2882 = vadd.f32 %v2863, %v2881
    %v2883 = vpop.f32.mrf.mxu0
    %v2884 = vadd.f32 %v2865, %v2883
    %2885 = vmatmul.bf16.gmra.mxu0 %v44
    %v2886 = vpop.f32.mrf.mxu0
    %v2887 = vadd.f32 %v2868, %v2886
    %v2888 = vpop.f32.mrf.mxu0
    %v2889 = vadd.f32 %v2870, %v2888
    %2890 = vdwg.mxu0
    %2891 = vmatpush.bf16.msra.mxu0 %v1988
    %2892 = vmatpush.bf16.msra.mxu0 %v1976
    %2893 = vmatpush.bf16.msra.mxu0 %v1964
    %2894 = vmatpush.bf16.msra.mxu0 %v1952
    %2895 = vmatpush.bf16.msra.mxu0 %v1940
    %2896 = vmatpush.bf16.msra.mxu0 %v1928
    %2897 = vmatpush.bf16.msra.mxu0 %v1916
    %2898 = vmatpush.bf16.msra.mxu0 %v1904
    %2899 = vmatmul.bf16.gmra.mxu0 %v41
    %v2900 = vpop.f32.mrf.mxu0
    %v2901 = vadd.f32 %v2882, %v2900
    %v2902 = vpop.f32.mrf.mxu0
    %v2903 = vadd.f32 %v2884, %v2902
    %2904 = vmatmul.bf16.gmra.mxu0 %v45
    %v2905 = vpop.f32.mrf.mxu0
    %v2906 = vadd.f32 %v2887, %v2905
    %v2907 = vpop.f32.mrf.mxu0
    %v2908 = vadd.f32 %v2889, %v2907
    %2909 = vdwg.mxu0
    %2910 = vmatpush.bf16.msra.mxu0 %v1701
    %2911 = vmatpush.bf16.msra.mxu0 %v1689
    %2912 = vmatpush.bf16.msra.mxu0 %v1677
    %2913 = vmatpush.bf16.msra.mxu0 %v1665
    %2914 = vmatpush.bf16.msra.mxu0 %v1653
    %2915 = vmatpush.bf16.msra.mxu0 %v1641
    %2916 = vmatpush.bf16.msra.mxu0 %v1629
    %2917 = vmatpush.bf16.msra.mxu0 %v1617
    %2918 = vmatmul.bf16.gmra.mxu0 %v38
    %v2919 = vpop.f32.mrf.mxu0
    %v2920 = vadd.f32 %v441, %v2919
    %v2921 = vpop.f32.mrf.mxu0
    %v2922 = vadd.f32 %v441, %v2921
    %2923 = vmatmul.bf16.gmra.mxu0 %v42
    %v2924 = vpop.f32.mrf.mxu0
    %v2925 = vadd.f32 %v441, %v2924
    %v2926 = vpop.f32.mrf.mxu0
    %v2927 = vadd.f32 %v441, %v2926
    %2928 = vdwg.mxu0
    %2929 = vmatpush.bf16.msra.mxu0 %v1797
    %2930 = vmatpush.bf16.msra.mxu0 %v1785
    %2931 = vmatpush.bf16.msra.mxu0 %v1773
    %2932 = vmatpush.bf16.msra.mxu0 %v1761
    %2933 = vmatpush.bf16.msra.mxu0 %v1749
    %2934 = vmatpush.bf16.msra.mxu0 %v1737
    %2935 = vmatpush.bf16.msra.mxu0 %v1725
    %2936 = vmatpush.bf16.msra.mxu0 %v1713
    %2937 = vmatmul.bf16.gmra.mxu0 %v39
    %v2938 = vpop.f32.mrf.mxu0
    %v2939 = vadd.f32 %v2920, %v2938
    %v2940 = vpop.f32.mrf.mxu0
    %v2941 = vadd.f32 %v2922, %v2940
    %2942 = vmatmul.bf16.gmra.mxu0 %v43
    %v2943 = vpop.f32.mrf.mxu0
    %v2944 = vadd.f32 %v2925, %v2943
    %v2945 = vpop.f32.mrf.mxu0
    %v2946 = vadd.f32 %v2927, %v2945
    %2947 = vdwg.mxu0
    %2948 = vmatpush.bf16.msra.mxu0 %v1893
    %2949 = vmatpush.bf16.msra.mxu0 %v1881
    %2950 = vmatpush.bf16.msra.mxu0 %v1869
    %2951 = vmatpush.bf16.msra.mxu0 %v1857
    %2952 = vmatpush.bf16.msra.mxu0 %v1845
    %2953 = vmatpush.bf16.msra.mxu0 %v1833
    %2954 = vmatpush.bf16.msra.mxu0 %v1821
    %2955 = vmatpush.bf16.msra.mxu0 %v1809
    %2956 = vmatmul.bf16.gmra.mxu0 %v40
    %v2957 = vpop.f32.mrf.mxu0
    %v2958 = vadd.f32 %v2939, %v2957
    %v2959 = vpop.f32.mrf.mxu0
    %v2960 = vadd.f32 %v2941, %v2959
    %2961 = vmatmul.bf16.gmra.mxu0 %v44
    %v2962 = vpop.f32.mrf.mxu0
    %v2963 = vadd.f32 %v2944, %v2962
    %v2964 = vpop.f32.mrf.mxu0
    %v2965 = vadd.f32 %v2946, %v2964
    %2966 = vdwg.mxu0
    %2967 = vmatpush.bf16.msra.mxu0 %v1989
    %2968 = vmatpush.bf16.msra.mxu0 %v1977
    %2969 = vmatpush.bf16.msra.mxu0 %v1965
    %2970 = vmatpush.bf16.msra.mxu0 %v1953
    %2971 = vmatpush.bf16.msra.mxu0 %v1941
    %2972 = vmatpush.bf16.msra.mxu0 %v1929
    %2973 = vmatpush.bf16.msra.mxu0 %v1917
    %2974 = vmatpush.bf16.msra.mxu0 %v1905
    %2975 = vmatmul.bf16.gmra.mxu0 %v41
    %v2976 = vpop.f32.mrf.mxu0
    %v2977 = vadd.f32 %v2958, %v2976
    %v2978 = vpop.f32.mrf.mxu0
    %v2979 = vadd.f32 %v2960, %v2978
    %2980 = vmatmul.bf16.gmra.mxu0 %v45
    %v2981 = vpop.f32.mrf.mxu0
    %v2982 = vadd.f32 %v2963, %v2981
    %v2983 = vpop.f32.mrf.mxu0
    %v2984 = vadd.f32 %v2965, %v2983
    %2985 = vdwg.mxu0
    %2986 = vmatpush.bf16.msra.mxu0 %v1702
    %2987 = vmatpush.bf16.msra.mxu0 %v1690
    %2988 = vmatpush.bf16.msra.mxu0 %v1678
    %2989 = vmatpush.bf16.msra.mxu0 %v1666
    %2990 = vmatpush.bf16.msra.mxu0 %v1654
    %2991 = vmatpush.bf16.msra.mxu0 %v1642
    %2992 = vmatpush.bf16.msra.mxu0 %v1630
    %2993 = vmatpush.bf16.msra.mxu0 %v1618
    %2994 = vmatmul.bf16.gmra.mxu0 %v38
    %v2995 = vpop.f32.mrf.mxu0
    %v2996 = vadd.f32 %v442, %v2995
    %v2997 = vpop.f32.mrf.mxu0
    %v2998 = vadd.f32 %v442, %v2997
    %2999 = vmatmul.bf16.gmra.mxu0 %v42
    %v3000 = vpop.f32.mrf.mxu0
    %v3001 = vadd.f32 %v442, %v3000
    %v3002 = vpop.f32.mrf.mxu0
    %v3003 = vadd.f32 %v442, %v3002
    %3004 = vdwg.mxu0
    %3005 = vmatpush.bf16.msra.mxu0 %v1798
    %3006 = vmatpush.bf16.msra.mxu0 %v1786
    %3007 = vmatpush.bf16.msra.mxu0 %v1774
    %3008 = vmatpush.bf16.msra.mxu0 %v1762
    %3009 = vmatpush.bf16.msra.mxu0 %v1750
    %3010 = vmatpush.bf16.msra.mxu0 %v1738
    %3011 = vmatpush.bf16.msra.mxu0 %v1726
    %3012 = vmatpush.bf16.msra.mxu0 %v1714
    %3013 = vmatmul.bf16.gmra.mxu0 %v39
    %v3014 = vpop.f32.mrf.mxu0
    %v3015 = vadd.f32 %v2996, %v3014
    %v3016 = vpop.f32.mrf.mxu0
    %v3017 = vadd.f32 %v2998, %v3016
    %3018 = vmatmul.bf16.gmra.mxu0 %v43
    %v3019 = vpop.f32.mrf.mxu0
    %v3020 = vadd.f32 %v3001, %v3019
    %v3021 = vpop.f32.mrf.mxu0
    %v3022 = vadd.f32 %v3003, %v3021
    %3023 = vdwg.mxu0
    %3024 = vmatpush.bf16.msra.mxu0 %v1894
    %3025 = vmatpush.bf16.msra.mxu0 %v1882
    %3026 = vmatpush.bf16.msra.mxu0 %v1870
    %3027 = vmatpush.bf16.msra.mxu0 %v1858
    %3028 = vmatpush.bf16.msra.mxu0 %v1846
    %3029 = vmatpush.bf16.msra.mxu0 %v1834
    %3030 = vmatpush.bf16.msra.mxu0 %v1822
    %3031 = vmatpush.bf16.msra.mxu0 %v1810
    %3032 = vmatmul.bf16.gmra.mxu0 %v40
    %v3033 = vpop.f32.mrf.mxu0
    %v3034 = vadd.f32 %v3015, %v3033
    %v3035 = vpop.f32.mrf.mxu0
    %v3036 = vadd.f32 %v3017, %v3035
    %3037 = vmatmul.bf16.gmra.mxu0 %v44
    %v3038 = vpop.f32.mrf.mxu0
    %v3039 = vadd.f32 %v3020, %v3038
    %v3040 = vpop.f32.mrf.mxu0
    %v3041 = vadd.f32 %v3022, %v3040
    %3042 = vdwg.mxu0
    %3043 = vmatpush.bf16.msra.mxu0 %v1990
    %3044 = vmatpush.bf16.msra.mxu0 %v1978
    %3045 = vmatpush.bf16.msra.mxu0 %v1966
    %3046 = vmatpush.bf16.msra.mxu0 %v1954
    %3047 = vmatpush.bf16.msra.mxu0 %v1942
    %3048 = vmatpush.bf16.msra.mxu0 %v1930
    %3049 = vmatpush.bf16.msra.mxu0 %v1918
    %3050 = vmatpush.bf16.msra.mxu0 %v1906
    %3051 = vmatmul.bf16.gmra.mxu0 %v41
    %v3052 = vpop.f32.mrf.mxu0
    %v3053 = vadd.f32 %v3034, %v3052
    %v3054 = vpop.f32.mrf.mxu0
    %v3055 = vadd.f32 %v3036, %v3054
    %3056 = vmatmul.bf16.gmra.mxu0 %v45
    %v3057 = vpop.f32.mrf.mxu0
    %v3058 = vadd.f32 %v3039, %v3057
    %v3059 = vpop.f32.mrf.mxu0
    %v3060 = vadd.f32 %v3041, %v3059
    %3061 = vdwg.mxu0
    %3062 = vmatpush.bf16.msra.mxu0 %v1703
    %3063 = vmatpush.bf16.msra.mxu0 %v1691
    %3064 = vmatpush.bf16.msra.mxu0 %v1679
    %3065 = vmatpush.bf16.msra.mxu0 %v1667
    %3066 = vmatpush.bf16.msra.mxu0 %v1655
    %3067 = vmatpush.bf16.msra.mxu0 %v1643
    %3068 = vmatpush.bf16.msra.mxu0 %v1631
    %3069 = vmatpush.bf16.msra.mxu0 %v1619
    %3070 = vmatmul.bf16.gmra.mxu0 %v38
    %v3071 = vpop.f32.mrf.mxu0
    %v3072 = vadd.f32 %v443, %v3071
    %v3073 = vpop.f32.mrf.mxu0
    %v3074 = vadd.f32 %v443, %v3073
    %3075 = vmatmul.bf16.gmra.mxu0 %v42
    %v3076 = vpop.f32.mrf.mxu0
    %v3077 = vadd.f32 %v443, %v3076
    %v3078 = vpop.f32.mrf.mxu0
    %v3079 = vadd.f32 %v443, %v3078
    %3080 = vdwg.mxu0
    %3081 = vmatpush.bf16.msra.mxu0 %v1799
    %3082 = vmatpush.bf16.msra.mxu0 %v1787
    %3083 = vmatpush.bf16.msra.mxu0 %v1775
    %3084 = vmatpush.bf16.msra.mxu0 %v1763
    %3085 = vmatpush.bf16.msra.mxu0 %v1751
    %3086 = vmatpush.bf16.msra.mxu0 %v1739
    %3087 = vmatpush.bf16.msra.mxu0 %v1727
    %3088 = vmatpush.bf16.msra.mxu0 %v1715
    %3089 = vmatmul.bf16.gmra.mxu0 %v39
    %v3090 = vpop.f32.mrf.mxu0
    %v3091 = vadd.f32 %v3072, %v3090
    %v3092 = vpop.f32.mrf.mxu0
    %v3093 = vadd.f32 %v3074, %v3092
    %3094 = vmatmul.bf16.gmra.mxu0 %v43
    %v3095 = vpop.f32.mrf.mxu0
    %v3096 = vadd.f32 %v3077, %v3095
    %v3097 = vpop.f32.mrf.mxu0
    %v3098 = vadd.f32 %v3079, %v3097
    %3099 = vdwg.mxu0
    %3100 = vmatpush.bf16.msra.mxu0 %v1895
    %3101 = vmatpush.bf16.msra.mxu0 %v1883
    %3102 = vmatpush.bf16.msra.mxu0 %v1871
    %3103 = vmatpush.bf16.msra.mxu0 %v1859
    %3104 = vmatpush.bf16.msra.mxu0 %v1847
    %3105 = vmatpush.bf16.msra.mxu0 %v1835
    %3106 = vmatpush.bf16.msra.mxu0 %v1823
    %3107 = vmatpush.bf16.msra.mxu0 %v1811
    %3108 = vmatmul.bf16.gmra.mxu0 %v40
    %v3109 = vpop.f32.mrf.mxu0
    %v3110 = vadd.f32 %v3091, %v3109
    %v3111 = vpop.f32.mrf.mxu0
    %v3112 = vadd.f32 %v3093, %v3111
    %3113 = vmatmul.bf16.gmra.mxu0 %v44
    %v3114 = vpop.f32.mrf.mxu0
    %v3115 = vadd.f32 %v3096, %v3114
    %v3116 = vpop.f32.mrf.mxu0
    %v3117 = vadd.f32 %v3098, %v3116
    %3118 = vdwg.mxu0
    %3119 = vmatpush.bf16.msra.mxu0 %v1991
    %3120 = vmatpush.bf16.msra.mxu0 %v1979
    %3121 = vmatpush.bf16.msra.mxu0 %v1967
    %3122 = vmatpush.bf16.msra.mxu0 %v1955
    %3123 = vmatpush.bf16.msra.mxu0 %v1943
    %3124 = vmatpush.bf16.msra.mxu0 %v1931
    %3125 = vmatpush.bf16.msra.mxu0 %v1919
    %3126 = vmatpush.bf16.msra.mxu0 %v1907
    %3127 = vmatmul.bf16.gmra.mxu0 %v41
    %v3128 = vpop.f32.mrf.mxu0
    %v3129 = vadd.f32 %v3110, %v3128
    %v3130 = vpop.f32.mrf.mxu0
    %v3131 = vadd.f32 %v3112, %v3130
    %3132 = vmatmul.bf16.gmra.mxu0 %v45
    %v3133 = vpop.f32.mrf.mxu0
    %v3134 = vadd.f32 %v3115, %v3133
    %v3135 = vpop.f32.mrf.mxu0
    %v3136 = vadd.f32 %v3117, %v3135
    %3137 = vdwg.mxu0
    %3138 = vmatpush.bf16.msra.mxu0 %v1704
    %3139 = vmatpush.bf16.msra.mxu0 %v1692
    %3140 = vmatpush.bf16.msra.mxu0 %v1680
    %3141 = vmatpush.bf16.msra.mxu0 %v1668
    %3142 = vmatpush.bf16.msra.mxu0 %v1656
    %3143 = vmatpush.bf16.msra.mxu0 %v1644
    %3144 = vmatpush.bf16.msra.mxu0 %v1632
    %3145 = vmatpush.bf16.msra.mxu0 %v1620
    %3146 = vmatmul.bf16.gmra.mxu0 %v38
    %v3147 = vpop.f32.mrf.mxu0
    %v3148 = vadd.f32 %v444, %v3147
    %v3149 = vpop.f32.mrf.mxu0
    %v3150 = vadd.f32 %v444, %v3149
    %3151 = vmatmul.bf16.gmra.mxu0 %v42
    %v3152 = vpop.f32.mrf.mxu0
    %v3153 = vadd.f32 %v444, %v3152
    %v3154 = vpop.f32.mrf.mxu0
    %v3155 = vadd.f32 %v444, %v3154
    %3156 = vdwg.mxu0
    %3157 = vmatpush.bf16.msra.mxu0 %v1800
    %3158 = vmatpush.bf16.msra.mxu0 %v1788
    %3159 = vmatpush.bf16.msra.mxu0 %v1776
    %3160 = vmatpush.bf16.msra.mxu0 %v1764
    %3161 = vmatpush.bf16.msra.mxu0 %v1752
    %3162 = vmatpush.bf16.msra.mxu0 %v1740
    %3163 = vmatpush.bf16.msra.mxu0 %v1728
    %3164 = vmatpush.bf16.msra.mxu0 %v1716
    %3165 = vmatmul.bf16.gmra.mxu0 %v39
    %v3166 = vpop.f32.mrf.mxu0
    %v3167 = vadd.f32 %v3148, %v3166
    %v3168 = vpop.f32.mrf.mxu0
    %v3169 = vadd.f32 %v3150, %v3168
    %3170 = vmatmul.bf16.gmra.mxu0 %v43
    %v3171 = vpop.f32.mrf.mxu0
    %v3172 = vadd.f32 %v3153, %v3171
    %v3173 = vpop.f32.mrf.mxu0
    %v3174 = vadd.f32 %v3155, %v3173
    %3175 = vdwg.mxu0
    %3176 = vmatpush.bf16.msra.mxu0 %v1896
    %3177 = vmatpush.bf16.msra.mxu0 %v1884
    %3178 = vmatpush.bf16.msra.mxu0 %v1872
    %3179 = vmatpush.bf16.msra.mxu0 %v1860
    %3180 = vmatpush.bf16.msra.mxu0 %v1848
    %3181 = vmatpush.bf16.msra.mxu0 %v1836
    %3182 = vmatpush.bf16.msra.mxu0 %v1824
    %3183 = vmatpush.bf16.msra.mxu0 %v1812
    %3184 = vmatmul.bf16.gmra.mxu0 %v40
    %v3185 = vpop.f32.mrf.mxu0
    %v3186 = vadd.f32 %v3167, %v3185
    %v3187 = vpop.f32.mrf.mxu0
    %v3188 = vadd.f32 %v3169, %v3187
    %3189 = vmatmul.bf16.gmra.mxu0 %v44
    %v3190 = vpop.f32.mrf.mxu0
    %v3191 = vadd.f32 %v3172, %v3190
    %v3192 = vpop.f32.mrf.mxu0
    %v3193 = vadd.f32 %v3174, %v3192
    %3194 = vdwg.mxu0
    %3195 = vmatpush.bf16.msra.mxu0 %v1992
    %3196 = vmatpush.bf16.msra.mxu0 %v1980
    %3197 = vmatpush.bf16.msra.mxu0 %v1968
    %3198 = vmatpush.bf16.msra.mxu0 %v1956
    %3199 = vmatpush.bf16.msra.mxu0 %v1944
    %3200 = vmatpush.bf16.msra.mxu0 %v1932
    %3201 = vmatpush.bf16.msra.mxu0 %v1920
    %3202 = vmatpush.bf16.msra.mxu0 %v1908
    %3203 = vmatmul.bf16.gmra.mxu0 %v41
    %v3204 = vpop.f32.mrf.mxu0
    %v3205 = vadd.f32 %v3186, %v3204
    %v3206 = vpop.f32.mrf.mxu0
    %v3207 = vadd.f32 %v3188, %v3206
    %3208 = vmatmul.bf16.gmra.mxu0 %v45
    %v3209 = vpop.f32.mrf.mxu0
    %v3210 = vadd.f32 %v3191, %v3209
    %v3211 = vpop.f32.mrf.mxu0
    %v3212 = vadd.f32 %v3193, %v3211
    %3213 = vdwg.mxu0
    %3214 = vmatpush.bf16.msra.mxu0 %v1705
    %3215 = vmatpush.bf16.msra.mxu0 %v1693
    %3216 = vmatpush.bf16.msra.mxu0 %v1681
    %3217 = vmatpush.bf16.msra.mxu0 %v1669
    %3218 = vmatpush.bf16.msra.mxu0 %v1657
    %3219 = vmatpush.bf16.msra.mxu0 %v1645
    %3220 = vmatpush.bf16.msra.mxu0 %v1633
    %3221 = vmatpush.bf16.msra.mxu0 %v1621
    %3222 = vmatmul.bf16.gmra.mxu0 %v38
    %v3223 = vpop.f32.mrf.mxu0
    %v3224 = vadd.f32 %v445, %v3223
    %v3225 = vpop.f32.mrf.mxu0
    %v3226 = vadd.f32 %v445, %v3225
    %3227 = vmatmul.bf16.gmra.mxu0 %v42
    %v3228 = vpop.f32.mrf.mxu0
    %v3229 = vadd.f32 %v445, %v3228
    %v3230 = vpop.f32.mrf.mxu0
    %v3231 = vadd.f32 %v445, %v3230
    %3232 = vdwg.mxu0
    %3233 = vmatpush.bf16.msra.mxu0 %v1801
    %3234 = vmatpush.bf16.msra.mxu0 %v1789
    %3235 = vmatpush.bf16.msra.mxu0 %v1777
    %3236 = vmatpush.bf16.msra.mxu0 %v1765
    %3237 = vmatpush.bf16.msra.mxu0 %v1753
    %3238 = vmatpush.bf16.msra.mxu0 %v1741
    %3239 = vmatpush.bf16.msra.mxu0 %v1729
    %3240 = vmatpush.bf16.msra.mxu0 %v1717
    %3241 = vmatmul.bf16.gmra.mxu0 %v39
    %v3242 = vpop.f32.mrf.mxu0
    %v3243 = vadd.f32 %v3224, %v3242
    %v3244 = vpop.f32.mrf.mxu0
    %v3245 = vadd.f32 %v3226, %v3244
    %3246 = vmatmul.bf16.gmra.mxu0 %v43
    %v3247 = vpop.f32.mrf.mxu0
    %v3248 = vadd.f32 %v3229, %v3247
    %v3249 = vpop.f32.mrf.mxu0
    %v3250 = vadd.f32 %v3231, %v3249
    %3251 = vdwg.mxu0
    %3252 = vmatpush.bf16.msra.mxu0 %v1897
    %3253 = vmatpush.bf16.msra.mxu0 %v1885
    %3254 = vmatpush.bf16.msra.mxu0 %v1873
    %3255 = vmatpush.bf16.msra.mxu0 %v1861
    %3256 = vmatpush.bf16.msra.mxu0 %v1849
    %3257 = vmatpush.bf16.msra.mxu0 %v1837
    %3258 = vmatpush.bf16.msra.mxu0 %v1825
    %3259 = vmatpush.bf16.msra.mxu0 %v1813
    %3260 = vmatmul.bf16.gmra.mxu0 %v40
    %v3261 = vpop.f32.mrf.mxu0
    %v3262 = vadd.f32 %v3243, %v3261
    %v3263 = vpop.f32.mrf.mxu0
    %v3264 = vadd.f32 %v3245, %v3263
    %3265 = vmatmul.bf16.gmra.mxu0 %v44
    %v3266 = vpop.f32.mrf.mxu0
    %v3267 = vadd.f32 %v3248, %v3266
    %v3268 = vpop.f32.mrf.mxu0
    %v3269 = vadd.f32 %v3250, %v3268
    %3270 = vdwg.mxu0
    %3271 = vmatpush.bf16.msra.mxu0 %v1993
    %3272 = vmatpush.bf16.msra.mxu0 %v1981
    %3273 = vmatpush.bf16.msra.mxu0 %v1969
    %3274 = vmatpush.bf16.msra.mxu0 %v1957
    %3275 = vmatpush.bf16.msra.mxu0 %v1945
    %3276 = vmatpush.bf16.msra.mxu0 %v1933
    %3277 = vmatpush.bf16.msra.mxu0 %v1921
    %3278 = vmatpush.bf16.msra.mxu0 %v1909
    %3279 = vmatmul.bf16.gmra.mxu0 %v41
    %v3280 = vpop.f32.mrf.mxu0
    %v3281 = vadd.f32 %v3262, %v3280
    %v3282 = vpop.f32.mrf.mxu0
    %v3283 = vadd.f32 %v3264, %v3282
    %3284 = vmatmul.bf16.gmra.mxu0 %v45
    %v3285 = vpop.f32.mrf.mxu0
    %v3286 = vadd.f32 %v3267, %v3285
    %v3287 = vpop.f32.mrf.mxu0
    %v3288 = vadd.f32 %v3269, %v3287
    %3289 = vdwg.mxu0
    %v3290 = vpack.c.bf16 %v2445, %v2445
    %v3291 = vpack.c.bf16 %v2447, %v2447
    %v3292 = vpack.c.bf16 %v2450, %v2450
    %v3293 = vpack.c.bf16 %v2452, %v2452
    %v3294 = vpack.c.bf16 %v2749, %v2749
    %v3295 = vpack.c.bf16 %v2751, %v2751
    %v3296 = vpack.c.bf16 %v2754, %v2754
    %v3297 = vpack.c.bf16 %v2756, %v2756
    %v3298 = vpack.c.bf16 %v3053, %v3053
    %v3299 = vpack.c.bf16 %v3055, %v3055
    %v3300 = vpack.c.bf16 %v3058, %v3058
    %v3301 = vpack.c.bf16 %v3060, %v3060
    %v3304 = vunpack.c.l.b16 %v3290
    %v3305 = vunpack.c.l.b16 %v3291
    %v3306 = vpack.c.b16 %v3305, %v3304
    %v3310 = vunpack.c.l.b16 %v3294
    %v3311 = vunpack.c.l.b16 %v3295
    %v3312 = vpack.c.b16 %v3311, %v3310
    %3314 = vmatpush.bf16.xpose.msra.mxu0 0
    %3315 = vmatpush.bf16.xpose.msra.mxu0 0
    %3316 = vmatpush.bf16.xpose.msra.mxu0 0
    %3317 = vmatpush.bf16.xpose.msra.mxu0 0
    %3318 = vmatpush.bf16.xpose.msra.mxu0 0
    %3319 = vmatpush.bf16.xpose.msra.mxu0 0
    %3320 = vmatpush.bf16.xpose.msra.mxu0 0
    %3321 = vmatpush.bf16.xpose.msra.mxu0 %v3312
    %3322 = vmatmul.bf16.gmra.mxu0 %v3306
    %v3323 = vpop.f32.mrf.mxu0
    %v3324 = vadd.f32 0.0, %v3323
    %v3325 = vpop.f32.mrf.mxu0
    %v3326 = vadd.f32 0.0, %v3325
    %3327 = vdwg.mxu0
    %v3330 = vunpack.c.l.b16 %v3292
    %v3331 = vunpack.c.l.b16 %v3293
    %v3332 = vpack.c.b16 %v3331, %v3330
    %v3336 = vunpack.c.l.b16 %v3296
    %v3337 = vunpack.c.l.b16 %v3297
    %v3338 = vpack.c.b16 %v3337, %v3336
    %3340 = vmatpush.bf16.xpose.msra.mxu0 0
    %3341 = vmatpush.bf16.xpose.msra.mxu0 0
    %3342 = vmatpush.bf16.xpose.msra.mxu0 0
    %3343 = vmatpush.bf16.xpose.msra.mxu0 0
    %3344 = vmatpush.bf16.xpose.msra.mxu0 0
    %3345 = vmatpush.bf16.xpose.msra.mxu0 0
    %3346 = vmatpush.bf16.xpose.msra.mxu0 0
    %3347 = vmatpush.bf16.xpose.msra.mxu0 %v3338
    %3348 = vmatmul.bf16.gmra.mxu0 %v3332
    %v3349 = vpop.f32.mrf.mxu0
    %v3350 = vadd.f32 0.0, %v3349
    %v3351 = vpop.f32.mrf.mxu0
    %v3352 = vadd.f32 0.0, %v3351
    %3353 = vdwg.mxu0
    %vm3354 = vcmask 130048
    %v3355 = vsel %vm3354, %v3324, -inf
    %3356 = vmax.xlane.f32.xlu0 %v3355
    %v3357 = vpop.xlane.xlu0 %3356
    %v3358 = vsel %vm3354, %v3326, -inf
    %3359 = vmax.xlane.f32.xlu0 %v3358
    %v3360 = vpop.xlane.xlu0 %3359
    %v3361 = vsel %vm3354, %v3350, -inf
    %3362 = vmax.xlane.f32.xlu0 %v3361
    %v3363 = vpop.xlane.xlu0 %3362
    %v3364 = vsel %vm3354, %v3352, -inf
    %3365 = vmax.xlane.f32.xlu0 %v3364
    %v3366 = vpop.xlane.xlu0 %3365
    %v3367 = vsub.f32 %v3324, %v3357
    %v3368 = vsub.f32 %v3326, %v3360
    %v3369 = vsub.f32 %v3350, %v3363
    %v3370 = vsub.f32 %v3352, %v3366
    %v3371 = vmul.f32 %v3367, 0.088388346
    %v3372 = vmul.f32 %v3368, 0.088388346
    %v3373 = vmul.f32 %v3369, 0.088388346
    %v3374 = vmul.f32 %v3370, 0.088388346
    %v3375 = vmul.f32 %v3371, 1.442695
    %v3376 = vpow.pop %v3375
    %v3377 = vmul.f32 %v3372, 1.442695
    %v3378 = vpow.pop %v3377
    %v3379 = vmul.f32 %v3373, 1.442695
    %v3380 = vpow.pop %v3379
    %v3381 = vmul.f32 %v3374, 1.442695
    %v3382 = vpow.pop %v3381
    %v3383 = vsel %vm3354, %v3376, 0.0
    %3384 = vadd.xlane.f32.xlu0 %v3383
    %v3385 = vpop.xlane.xlu0 %3384
    %v3386 = vsel %vm3354, %v3378, 0.0
    %3387 = vadd.xlane.f32.xlu0 %v3386
    %v3388 = vpop.xlane.xlu0 %3387
    %v3389 = vsel %vm3354, %v3380, 0.0
    %3390 = vadd.xlane.f32.xlu0 %v3389
    %v3391 = vpop.xlane.xlu0 %3390
    %v3392 = vsel %vm3354, %v3382, 0.0
    %3393 = vadd.xlane.f32.xlu0 %v3392
    %v3394 = vpop.xlane.xlu0 %3393
    %v3395 = vrcp.pop %v3385
    %v3396 = vmul.f32 %v3385, %v3395
    %v3397 = vsub.f32 1.0, %v3396
    %v3398 = vmul.f32 %v3395, %v3397
    %v3399 = vadd.f32 %v3395, %v3398
    %vm3400 = vweird.f32 %v3385
    %vm3401 = vweird.f32 %v3395
    %vm3402 = vmor %vm3400, %vm3401
    %v3403 = vsel %vm3402, %v3395, %v3399
    %v3404 = vand.u32 2147483647, %v3385
    %vm3405 = vcmp.eq.f32.partialorder %v3404, 8.507059e+37
    %v3406 = vand.u32 %v3385, 2147483648
    %v3407 = vor.u32 1.1754944e-38, %v3406
    %v3408 = vsel %vm3405, %v3407, %v3403
    %v3409 = vrcp.pop %v3388
    %v3410 = vmul.f32 %v3388, %v3409
    %v3411 = vsub.f32 1.0, %v3410
    %v3412 = vmul.f32 %v3409, %v3411
    %v3413 = vadd.f32 %v3409, %v3412
    %vm3414 = vweird.f32 %v3388
    %vm3415 = vweird.f32 %v3409
    %vm3416 = vmor %vm3414, %vm3415
    %v3417 = vsel %vm3416, %v3409, %v3413
    %v3418 = vand.u32 2147483647, %v3388
    %vm3419 = vcmp.eq.f32.partialorder %v3418, 8.507059e+37
    %v3420 = vand.u32 %v3388, 2147483648
    %v3421 = vor.u32 1.1754944e-38, %v3420
    %v3422 = vsel %vm3419, %v3421, %v3417
    %v3423 = vrcp.pop %v3391
    %v3424 = vmul.f32 %v3391, %v3423
    %v3425 = vsub.f32 1.0, %v3424
    %v3426 = vmul.f32 %v3423, %v3425
    %v3427 = vadd.f32 %v3423, %v3426
    %vm3428 = vweird.f32 %v3391
    %vm3429 = vweird.f32 %v3423
    %vm3430 = vmor %vm3428, %vm3429
    %v3431 = vsel %vm3430, %v3423, %v3427
    %v3432 = vand.u32 2147483647, %v3391
    %vm3433 = vcmp.eq.f32.partialorder %v3432, 8.507059e+37
    %v3434 = vand.u32 %v3391, 2147483648
    %v3435 = vor.u32 1.1754944e-38, %v3434
    %v3436 = vsel %vm3433, %v3435, %v3431
    %v3437 = vrcp.pop %v3394
    %v3438 = vmul.f32 %v3394, %v3437
    %v3439 = vsub.f32 1.0, %v3438
    %v3440 = vmul.f32 %v3437, %v3439
    %v3441 = vadd.f32 %v3437, %v3440
    %vm3442 = vweird.f32 %v3394
    %vm3443 = vweird.f32 %v3437
    %vm3444 = vmor %vm3442, %vm3443
    %v3445 = vsel %vm3444, %v3437, %v3441
    %v3446 = vand.u32 2147483647, %v3394
    %vm3447 = vcmp.eq.f32.partialorder %v3446, 8.507059e+37
    %v3448 = vand.u32 %v3394, 2147483648
    %v3449 = vor.u32 1.1754944e-38, %v3448
    %v3450 = vsel %vm3447, %v3449, %v3445
    %v3451 = vmul.f32 %v3376, %v3408
    %v3452 = vmul.f32 %v3378, %v3422
    %v3453 = vmul.f32 %v3380, %v3436
    %v3454 = vmul.f32 %v3382, %v3450
    %v3455 = vpack.c.bf16 %v3451, %v3451
    %v3456 = vpack.c.bf16 %v3452, %v3452
    %v3457 = vpack.c.bf16 %v3453, %v3453
    %v3458 = vpack.c.bf16 %v3454, %v3454
    %v3461 = vunpack.c.l.b16 %v3455
    %v3462 = vunpack.c.l.b16 %v3456
    %v3463 = vpack.c.b16 %v3462, %v3461
    %v3466 = vunpack.c.l.b16 %v3298
    %v3467 = vunpack.c.l.b16 %v3299
    %v3468 = vpack.c.b16 %v3467, %v3466
    %v3471 = vsel %vm3354, %v3463, 0
    %3473 = vmatpush.bf16.msra.mxu0 0
    %3474 = vmatpush.bf16.msra.mxu0 0
    %3475 = vmatpush.bf16.msra.mxu0 0
    %3476 = vmatpush.bf16.msra.mxu0 0
    %3477 = vmatpush.bf16.msra.mxu0 0
    %3478 = vmatpush.bf16.msra.mxu0 0
    %3479 = vmatpush.bf16.msra.mxu0 0
    %3480 = vmatpush.bf16.msra.mxu0 %v3468
    %3481 = vmatmul.bf16.gmra.mxu0 %v3471
    %v3482 = vpop.f32.mrf.mxu0
    %v3483 = vadd.f32 0.0, %v3482
    %v3484 = vpop.f32.mrf.mxu0
    %v3485 = vadd.f32 0.0, %v3484
    %3486 = vdwg.mxu0
    %v3489 = vunpack.c.l.b16 %v3457
    %v3490 = vunpack.c.l.b16 %v3458
    %v3491 = vpack.c.b16 %v3490, %v3489
    %v3494 = vunpack.c.l.b16 %v3300
    %v3495 = vunpack.c.l.b16 %v3301
    %v3496 = vpack.c.b16 %v3495, %v3494
    %v3499 = vsel %vm3354, %v3491, 0
    %3501 = vmatpush.bf16.msra.mxu0 0
    %3502 = vmatpush.bf16.msra.mxu0 0
    %3503 = vmatpush.bf16.msra.mxu0 0
    %3504 = vmatpush.bf16.msra.mxu0 0
    %3505 = vmatpush.bf16.msra.mxu0 0
    %3506 = vmatpush.bf16.msra.mxu0 0
    %3507 = vmatpush.bf16.msra.mxu0 0
    %3508 = vmatpush.bf16.msra.mxu0 %v3496
    %3509 = vmatmul.bf16.gmra.mxu0 %v3499
    %v3510 = vpop.f32.mrf.mxu0
    %v3511 = vadd.f32 0.0, %v3510
    %v3512 = vpop.f32.mrf.mxu0
    %v3513 = vadd.f32 0.0, %v3512
    %3514 = vdwg.mxu0
    %v3515 = vpack.c.bf16 %v2521, %v2521
    %v3516 = vpack.c.bf16 %v2523, %v2523
    %v3517 = vpack.c.bf16 %v2526, %v2526
    %v3518 = vpack.c.bf16 %v2528, %v2528
    %v3519 = vpack.c.bf16 %v2825, %v2825
    %v3520 = vpack.c.bf16 %v2827, %v2827
    %v3521 = vpack.c.bf16 %v2830, %v2830
    %v3522 = vpack.c.bf16 %v2832, %v2832
    %v3523 = vpack.c.bf16 %v3129, %v3129
    %v3524 = vpack.c.bf16 %v3131, %v3131
    %v3525 = vpack.c.bf16 %v3134, %v3134
    %v3526 = vpack.c.bf16 %v3136, %v3136
    %v3529 = vunpack.c.l.b16 %v3515
    %v3530 = vunpack.c.l.b16 %v3516
    %v3531 = vpack.c.b16 %v3530, %v3529
    %v3535 = vunpack.c.l.b16 %v3519
    %v3536 = vunpack.c.l.b16 %v3520
    %v3537 = vpack.c.b16 %v3536, %v3535
    %3539 = vmatpush.bf16.xpose.msra.mxu0 0
    %3540 = vmatpush.bf16.xpose.msra.mxu0 0
    %3541 = vmatpush.bf16.xpose.msra.mxu0 0
    %3542 = vmatpush.bf16.xpose.msra.mxu0 0
    %3543 = vmatpush.bf16.xpose.msra.mxu0 0
    %3544 = vmatpush.bf16.xpose.msra.mxu0 0
    %3545 = vmatpush.bf16.xpose.msra.mxu0 0
    %3546 = vmatpush.bf16.xpose.msra.mxu0 %v3537
    %3547 = vmatmul.bf16.gmra.mxu0 %v3531
    %v3548 = vpop.f32.mrf.mxu0
    %v3549 = vadd.f32 0.0, %v3548
    %v3550 = vpop.f32.mrf.mxu0
    %v3551 = vadd.f32 0.0, %v3550
    %3552 = vdwg.mxu0
    %v3555 = vunpack.c.l.b16 %v3517
    %v3556 = vunpack.c.l.b16 %v3518
    %v3557 = vpack.c.b16 %v3556, %v3555
    %v3561 = vunpack.c.l.b16 %v3521
    %v3562 = vunpack.c.l.b16 %v3522
    %v3563 = vpack.c.b16 %v3562, %v3561
    %3565 = vmatpush.bf16.xpose.msra.mxu0 0
    %3566 = vmatpush.bf16.xpose.msra.mxu0 0
    %3567 = vmatpush.bf16.xpose.msra.mxu0 0
    %3568 = vmatpush.bf16.xpose.msra.mxu0 0
    %3569 = vmatpush.bf16.xpose.msra.mxu0 0
    %3570 = vmatpush.bf16.xpose.msra.mxu0 0
    %3571 = vmatpush.bf16.xpose.msra.mxu0 0
    %3572 = vmatpush.bf16.xpose.msra.mxu0 %v3563
    %3573 = vmatmul.bf16.gmra.mxu0 %v3557
    %v3574 = vpop.f32.mrf.mxu0
    %v3575 = vadd.f32 0.0, %v3574
    %v3576 = vpop.f32.mrf.mxu0
    %v3577 = vadd.f32 0.0, %v3576
    %3578 = vdwg.mxu0
    %v3579 = vsel %vm3354, %v3549, -inf
    %3580 = vmax.xlane.f32.xlu0 %v3579
    %v3581 = vpop.xlane.xlu0 %3580
    %v3582 = vsel %vm3354, %v3551, -inf
    %3583 = vmax.xlane.f32.xlu0 %v3582
    %v3584 = vpop.xlane.xlu0 %3583
    %v3585 = vsel %vm3354, %v3575, -inf
    %3586 = vmax.xlane.f32.xlu0 %v3585
    %v3587 = vpop.xlane.xlu0 %3586
    %v3588 = vsel %vm3354, %v3577, -inf
    %3589 = vmax.xlane.f32.xlu0 %v3588
    %v3590 = vpop.xlane.xlu0 %3589
    %v3591 = vsub.f32 %v3549, %v3581
    %v3592 = vsub.f32 %v3551, %v3584
    %v3593 = vsub.f32 %v3575, %v3587
    %v3594 = vsub.f32 %v3577, %v3590
    %v3595 = vmul.f32 %v3591, 0.088388346
    %v3596 = vmul.f32 %v3592, 0.088388346
    %v3597 = vmul.f32 %v3593, 0.088388346
    %v3598 = vmul.f32 %v3594, 0.088388346
    %v3599 = vmul.f32 %v3595, 1.442695
    %v3600 = vpow.pop %v3599
    %v3601 = vmul.f32 %v3596, 1.442695
    %v3602 = vpow.pop %v3601
    %v3603 = vmul.f32 %v3597, 1.442695
    %v3604 = vpow.pop %v3603
    %v3605 = vmul.f32 %v3598, 1.442695
    %v3606 = vpow.pop %v3605
    %v3607 = vsel %vm3354, %v3600, 0.0
    %3608 = vadd.xlane.f32.xlu0 %v3607
    %v3609 = vpop.xlane.xlu0 %3608
    %v3610 = vsel %vm3354, %v3602, 0.0
    %3611 = vadd.xlane.f32.xlu0 %v3610
    %v3612 = vpop.xlane.xlu0 %3611
    %v3613 = vsel %vm3354, %v3604, 0.0
    %3614 = vadd.xlane.f32.xlu0 %v3613
    %v3615 = vpop.xlane.xlu0 %3614
    %v3616 = vsel %vm3354, %v3606, 0.0
    %3617 = vadd.xlane.f32.xlu0 %v3616
    %v3618 = vpop.xlane.xlu0 %3617
    %v3619 = vrcp.pop %v3609
    %v3620 = vmul.f32 %v3609, %v3619
    %v3621 = vsub.f32 1.0, %v3620
    %v3622 = vmul.f32 %v3619, %v3621
    %v3623 = vadd.f32 %v3619, %v3622
    %vm3624 = vweird.f32 %v3609
    %vm3625 = vweird.f32 %v3619
    %vm3626 = vmor %vm3624, %vm3625
    %v3627 = vsel %vm3626, %v3619, %v3623
    %v3628 = vand.u32 2147483647, %v3609
    %vm3629 = vcmp.eq.f32.partialorder %v3628, 8.507059e+37
    %v3630 = vand.u32 %v3609, 2147483648
    %v3631 = vor.u32 1.1754944e-38, %v3630
    %v3632 = vsel %vm3629, %v3631, %v3627
    %v3633 = vrcp.pop %v3612
    %v3634 = vmul.f32 %v3612, %v3633
    %v3635 = vsub.f32 1.0, %v3634
    %v3636 = vmul.f32 %v3633, %v3635
    %v3637 = vadd.f32 %v3633, %v3636
    %vm3638 = vweird.f32 %v3612
    %vm3639 = vweird.f32 %v3633
    %vm3640 = vmor %vm3638, %vm3639
    %v3641 = vsel %vm3640, %v3633, %v3637
    %v3642 = vand.u32 2147483647, %v3612
    %vm3643 = vcmp.eq.f32.partialorder %v3642, 8.507059e+37
    %v3644 = vand.u32 %v3612, 2147483648
    %v3645 = vor.u32 1.1754944e-38, %v3644
    %v3646 = vsel %vm3643, %v3645, %v3641
    %v3647 = vrcp.pop %v3615
    %v3648 = vmul.f32 %v3615, %v3647
    %v3649 = vsub.f32 1.0, %v3648
    %v3650 = vmul.f32 %v3647, %v3649
    %v3651 = vadd.f32 %v3647, %v3650
    %vm3652 = vweird.f32 %v3615
    %vm3653 = vweird.f32 %v3647
    %vm3654 = vmor %vm3652, %vm3653
    %v3655 = vsel %vm3654, %v3647, %v3651
    %v3656 = vand.u32 2147483647, %v3615
    %vm3657 = vcmp.eq.f32.partialorder %v3656, 8.507059e+37
    %v3658 = vand.u32 %v3615, 2147483648
    %v3659 = vor.u32 1.1754944e-38, %v3658
    %v3660 = vsel %vm3657, %v3659, %v3655
    %v3661 = vrcp.pop %v3618
    %v3662 = vmul.f32 %v3618, %v3661
    %v3663 = vsub.f32 1.0, %v3662
    %v3664 = vmul.f32 %v3661, %v3663
    %v3665 = vadd.f32 %v3661, %v3664
    %vm3666 = vweird.f32 %v3618
    %vm3667 = vweird.f32 %v3661
    %vm3668 = vmor %vm3666, %vm3667
    %v3669 = vsel %vm3668, %v3661, %v3665
    %v3670 = vand.u32 2147483647, %v3618
    %vm3671 = vcmp.eq.f32.partialorder %v3670, 8.507059e+37
    %v3672 = vand.u32 %v3618, 2147483648
    %v3673 = vor.u32 1.1754944e-38, %v3672
    %v3674 = vsel %vm3671, %v3673, %v3669
    %v3675 = vmul.f32 %v3600, %v3632
    %v3676 = vmul.f32 %v3602, %v3646
    %v3677 = vmul.f32 %v3604, %v3660
    %v3678 = vmul.f32 %v3606, %v3674
    %v3679 = vpack.c.bf16 %v3675, %v3675
    %v3680 = vpack.c.bf16 %v3676, %v3676
    %v3681 = vpack.c.bf16 %v3677, %v3677
    %v3682 = vpack.c.bf16 %v3678, %v3678
    %v3685 = vunpack.c.l.b16 %v3679
    %v3686 = vunpack.c.l.b16 %v3680
    %v3687 = vpack.c.b16 %v3686, %v3685
    %v3690 = vunpack.c.l.b16 %v3523
    %v3691 = vunpack.c.l.b16 %v3524
    %v3692 = vpack.c.b16 %v3691, %v3690
    %v3695 = vsel %vm3354, %v3687, 0
    %3697 = vmatpush.bf16.msra.mxu0 0
    %3698 = vmatpush.bf16.msra.mxu0 0
    %3699 = vmatpush.bf16.msra.mxu0 0
    %3700 = vmatpush.bf16.msra.mxu0 0
    %3701 = vmatpush.bf16.msra.mxu0 0
    %3702 = vmatpush.bf16.msra.mxu0 0
    %3703 = vmatpush.bf16.msra.mxu0 0
    %3704 = vmatpush.bf16.msra.mxu0 %v3692
    %3705 = vmatmul.bf16.gmra.mxu0 %v3695
    %v3706 = vpop.f32.mrf.mxu0
    %v3707 = vadd.f32 0.0, %v3706
    %v3708 = vpop.f32.mrf.mxu0
    %v3709 = vadd.f32 0.0, %v3708
    %3710 = vdwg.mxu0
    %v3713 = vunpack.c.l.b16 %v3681
    %v3714 = vunpack.c.l.b16 %v3682
    %v3715 = vpack.c.b16 %v3714, %v3713
    %v3718 = vunpack.c.l.b16 %v3525
    %v3719 = vunpack.c.l.b16 %v3526
    %v3720 = vpack.c.b16 %v3719, %v3718
    %v3723 = vsel %vm3354, %v3715, 0
    %3725 = vmatpush.bf16.msra.mxu0 0
    %3726 = vmatpush.bf16.msra.mxu0 0
    %3727 = vmatpush.bf16.msra.mxu0 0
    %3728 = vmatpush.bf16.msra.mxu0 0
    %3729 = vmatpush.bf16.msra.mxu0 0
    %3730 = vmatpush.bf16.msra.mxu0 0
    %3731 = vmatpush.bf16.msra.mxu0 0
    %3732 = vmatpush.bf16.msra.mxu0 %v3720
    %3733 = vmatmul.bf16.gmra.mxu0 %v3723
    %v3734 = vpop.f32.mrf.mxu0
    %v3735 = vadd.f32 0.0, %v3734
    %v3736 = vpop.f32.mrf.mxu0
    %v3737 = vadd.f32 0.0, %v3736
    %3738 = vdwg.mxu0
    %v3739 = vpack.c.bf16 %v2597, %v2597
    %v3740 = vpack.c.bf16 %v2599, %v2599
    %v3741 = vpack.c.bf16 %v2602, %v2602
    %v3742 = vpack.c.bf16 %v2604, %v2604
    %v3743 = vpack.c.bf16 %v2901, %v2901
    %v3744 = vpack.c.bf16 %v2903, %v2903
    %v3745 = vpack.c.bf16 %v2906, %v2906
    %v3746 = vpack.c.bf16 %v2908, %v2908
    %v3747 = vpack.c.bf16 %v3205, %v3205
    %v3748 = vpack.c.bf16 %v3207, %v3207
    %v3749 = vpack.c.bf16 %v3210, %v3210
    %v3750 = vpack.c.bf16 %v3212, %v3212
    %v3753 = vunpack.c.l.b16 %v3739
    %v3754 = vunpack.c.l.b16 %v3740
    %v3755 = vpack.c.b16 %v3754, %v3753
    %v3759 = vunpack.c.l.b16 %v3743
    %v3760 = vunpack.c.l.b16 %v3744
    %v3761 = vpack.c.b16 %v3760, %v3759
    %3763 = vmatpush.bf16.xpose.msra.mxu0 0
    %3764 = vmatpush.bf16.xpose.msra.mxu0 0
    %3765 = vmatpush.bf16.xpose.msra.mxu0 0
    %3766 = vmatpush.bf16.xpose.msra.mxu0 0
    %3767 = vmatpush.bf16.xpose.msra.mxu0 0
    %3768 = vmatpush.bf16.xpose.msra.mxu0 0
    %3769 = vmatpush.bf16.xpose.msra.mxu0 0
    %3770 = vmatpush.bf16.xpose.msra.mxu0 %v3761
    %3771 = vmatmul.bf16.gmra.mxu0 %v3755
    %v3772 = vpop.f32.mrf.mxu0
    %v3773 = vadd.f32 0.0, %v3772
    %v3774 = vpop.f32.mrf.mxu0
    %v3775 = vadd.f32 0.0, %v3774
    %3776 = vdwg.mxu0
    %v3779 = vunpack.c.l.b16 %v3741
    %v3780 = vunpack.c.l.b16 %v3742
    %v3781 = vpack.c.b16 %v3780, %v3779
    %v3785 = vunpack.c.l.b16 %v3745
    %v3786 = vunpack.c.l.b16 %v3746
    %v3787 = vpack.c.b16 %v3786, %v3785
    %3789 = vmatpush.bf16.xpose.msra.mxu0 0
    %3790 = vmatpush.bf16.xpose.msra.mxu0 0
    %3791 = vmatpush.bf16.xpose.msra.mxu0 0
    %3792 = vmatpush.bf16.xpose.msra.mxu0 0
    %3793 = vmatpush.bf16.xpose.msra.mxu0 0
    %3794 = vmatpush.bf16.xpose.msra.mxu0 0
    %3795 = vmatpush.bf16.xpose.msra.mxu0 0
    %3796 = vmatpush.bf16.xpose.msra.mxu0 %v3787
    %3797 = vmatmul.bf16.gmra.mxu0 %v3781
    %v3798 = vpop.f32.mrf.mxu0
    %v3799 = vadd.f32 0.0, %v3798
    %v3800 = vpop.f32.mrf.mxu0
    %v3801 = vadd.f32 0.0, %v3800
    %3802 = vdwg.mxu0
    %v3803 = vsel %vm3354, %v3773, -inf
    %3804 = vmax.xlane.f32.xlu0 %v3803
    %v3805 = vpop.xlane.xlu0 %3804
    %v3806 = vsel %vm3354, %v3775, -inf
    %3807 = vmax.xlane.f32.xlu0 %v3806
    %v3808 = vpop.xlane.xlu0 %3807
    %v3809 = vsel %vm3354, %v3799, -inf
    %3810 = vmax.xlane.f32.xlu0 %v3809
    %v3811 = vpop.xlane.xlu0 %3810
    %v3812 = vsel %vm3354, %v3801, -inf
    %3813 = vmax.xlane.f32.xlu0 %v3812
    %v3814 = vpop.xlane.xlu0 %3813
    %v3815 = vsub.f32 %v3773, %v3805
    %v3816 = vsub.f32 %v3775, %v3808
    %v3817 = vsub.f32 %v3799, %v3811
    %v3818 = vsub.f32 %v3801, %v3814
    %v3819 = vmul.f32 %v3815, 0.088388346
    %v3820 = vmul.f32 %v3816, 0.088388346
    %v3821 = vmul.f32 %v3817, 0.088388346
    %v3822 = vmul.f32 %v3818, 0.088388346
    %v3823 = vmul.f32 %v3819, 1.442695
    %v3824 = vpow.pop %v3823
    %v3825 = vmul.f32 %v3820, 1.442695
    %v3826 = vpow.pop %v3825
    %v3827 = vmul.f32 %v3821, 1.442695
    %v3828 = vpow.pop %v3827
    %v3829 = vmul.f32 %v3822, 1.442695
    %v3830 = vpow.pop %v3829
    %v3831 = vsel %vm3354, %v3824, 0.0
    %3832 = vadd.xlane.f32.xlu0 %v3831
    %v3833 = vpop.xlane.xlu0 %3832
    %v3834 = vsel %vm3354, %v3826, 0.0
    %3835 = vadd.xlane.f32.xlu0 %v3834
    %v3836 = vpop.xlane.xlu0 %3835
    %v3837 = vsel %vm3354, %v3828, 0.0
    %3838 = vadd.xlane.f32.xlu0 %v3837
    %v3839 = vpop.xlane.xlu0 %3838
    %v3840 = vsel %vm3354, %v3830, 0.0
    %3841 = vadd.xlane.f32.xlu0 %v3840
    %v3842 = vpop.xlane.xlu0 %3841
    %v3843 = vrcp.pop %v3833
    %v3844 = vmul.f32 %v3833, %v3843
    %v3845 = vsub.f32 1.0, %v3844
    %v3846 = vmul.f32 %v3843, %v3845
    %v3847 = vadd.f32 %v3843, %v3846
    %vm3848 = vweird.f32 %v3833
    %vm3849 = vweird.f32 %v3843
    %vm3850 = vmor %vm3848, %vm3849
    %v3851 = vsel %vm3850, %v3843, %v3847
    %v3852 = vand.u32 2147483647, %v3833
    %vm3853 = vcmp.eq.f32.partialorder %v3852, 8.507059e+37
    %v3854 = vand.u32 %v3833, 2147483648
    %v3855 = vor.u32 1.1754944e-38, %v3854
    %v3856 = vsel %vm3853, %v3855, %v3851
    %v3857 = vrcp.pop %v3836
    %v3858 = vmul.f32 %v3836, %v3857
    %v3859 = vsub.f32 1.0, %v3858
    %v3860 = vmul.f32 %v3857, %v3859
    %v3861 = vadd.f32 %v3857, %v3860
    %vm3862 = vweird.f32 %v3836
    %vm3863 = vweird.f32 %v3857
    %vm3864 = vmor %vm3862, %vm3863
    %v3865 = vsel %vm3864, %v3857, %v3861
    %v3866 = vand.u32 2147483647, %v3836
    %vm3867 = vcmp.eq.f32.partialorder %v3866, 8.507059e+37
    %v3868 = vand.u32 %v3836, 2147483648
    %v3869 = vor.u32 1.1754944e-38, %v3868
    %v3870 = vsel %vm3867, %v3869, %v3865
    %v3871 = vrcp.pop %v3839
    %v3872 = vmul.f32 %v3839, %v3871
    %v3873 = vsub.f32 1.0, %v3872
    %v3874 = vmul.f32 %v3871, %v3873
    %v3875 = vadd.f32 %v3871, %v3874
    %vm3876 = vweird.f32 %v3839
    %vm3877 = vweird.f32 %v3871
    %vm3878 = vmor %vm3876, %vm3877
    %v3879 = vsel %vm3878, %v3871, %v3875
    %v3880 = vand.u32 2147483647, %v3839
    %vm3881 = vcmp.eq.f32.partialorder %v3880, 8.507059e+37
    %v3882 = vand.u32 %v3839, 2147483648
    %v3883 = vor.u32 1.1754944e-38, %v3882
    %v3884 = vsel %vm3881, %v3883, %v3879
    %v3885 = vrcp.pop %v3842
    %v3886 = vmul.f32 %v3842, %v3885
    %v3887 = vsub.f32 1.0, %v3886
    %v3888 = vmul.f32 %v3885, %v3887
    %v3889 = vadd.f32 %v3885, %v3888
    %vm3890 = vweird.f32 %v3842
    %vm3891 = vweird.f32 %v3885
    %vm3892 = vmor %vm3890, %vm3891
    %v3893 = vsel %vm3892, %v3885, %v3889
    %v3894 = vand.u32 2147483647, %v3842
    %vm3895 = vcmp.eq.f32.partialorder %v3894, 8.507059e+37
    %v3896 = vand.u32 %v3842, 2147483648
    %v3897 = vor.u32 1.1754944e-38, %v3896
    %v3898 = vsel %vm3895, %v3897, %v3893
    %v3899 = vmul.f32 %v3824, %v3856
    %v3900 = vmul.f32 %v3826, %v3870
    %v3901 = vmul.f32 %v3828, %v3884
    %v3902 = vmul.f32 %v3830, %v3898
    %v3903 = vpack.c.bf16 %v3899, %v3899
    %v3904 = vpack.c.bf16 %v3900, %v3900
    %v3905 = vpack.c.bf16 %v3901, %v3901
    %v3906 = vpack.c.bf16 %v3902, %v3902
    %v3909 = vunpack.c.l.b16 %v3903
    %v3910 = vunpack.c.l.b16 %v3904
    %v3911 = vpack.c.b16 %v3910, %v3909
    %v3914 = vunpack.c.l.b16 %v3747
    %v3915 = vunpack.c.l.b16 %v3748
    %v3916 = vpack.c.b16 %v3915, %v3914
    %v3919 = vsel %vm3354, %v3911, 0
    %3921 = vmatpush.bf16.msra.mxu0 0
    %3922 = vmatpush.bf16.msra.mxu0 0
    %3923 = vmatpush.bf16.msra.mxu0 0
    %3924 = vmatpush.bf16.msra.mxu0 0
    %3925 = vmatpush.bf16.msra.mxu0 0
    %3926 = vmatpush.bf16.msra.mxu0 0
    %3927 = vmatpush.bf16.msra.mxu0 0
    %3928 = vmatpush.bf16.msra.mxu0 %v3916
    %3929 = vmatmul.bf16.gmra.mxu0 %v3919
    %v3930 = vpop.f32.mrf.mxu0
    %v3931 = vadd.f32 0.0, %v3930
    %v3932 = vpop.f32.mrf.mxu0
    %v3933 = vadd.f32 0.0, %v3932
    %3934 = vdwg.mxu0
    %v3937 = vunpack.c.l.b16 %v3905
    %v3938 = vunpack.c.l.b16 %v3906
    %v3939 = vpack.c.b16 %v3938, %v3937
    %v3942 = vunpack.c.l.b16 %v3749
    %v3943 = vunpack.c.l.b16 %v3750
    %v3944 = vpack.c.b16 %v3943, %v3942
    %v3947 = vsel %vm3354, %v3939, 0
    %3949 = vmatpush.bf16.msra.mxu0 0
    %3950 = vmatpush.bf16.msra.mxu0 0
    %3951 = vmatpush.bf16.msra.mxu0 0
    %3952 = vmatpush.bf16.msra.mxu0 0
    %3953 = vmatpush.bf16.msra.mxu0 0
    %3954 = vmatpush.bf16.msra.mxu0 0
    %3955 = vmatpush.bf16.msra.mxu0 0
    %3956 = vmatpush.bf16.msra.mxu0 %v3944
    %3957 = vmatmul.bf16.gmra.mxu0 %v3947
    %v3958 = vpop.f32.mrf.mxu0
    %v3959 = vadd.f32 0.0, %v3958
    %v3960 = vpop.f32.mrf.mxu0
    %v3961 = vadd.f32 0.0, %v3960
    %3962 = vdwg.mxu0
    %v3963 = vpack.c.bf16 %v2673, %v2673
    %v3964 = vpack.c.bf16 %v2675, %v2675
    %v3965 = vpack.c.bf16 %v2678, %v2678
    %v3966 = vpack.c.bf16 %v2680, %v2680
    %v3967 = vpack.c.bf16 %v2977, %v2977
    %v3968 = vpack.c.bf16 %v2979, %v2979
    %v3969 = vpack.c.bf16 %v2982, %v2982
    %v3970 = vpack.c.bf16 %v2984, %v2984
    %v3971 = vpack.c.bf16 %v3281, %v3281
    %v3972 = vpack.c.bf16 %v3283, %v3283
    %v3973 = vpack.c.bf16 %v3286, %v3286
    %v3974 = vpack.c.bf16 %v3288, %v3288
    %v3977 = vunpack.c.l.b16 %v3963
    %v3978 = vunpack.c.l.b16 %v3964
    %v3979 = vpack.c.b16 %v3978, %v3977
    %v3983 = vunpack.c.l.b16 %v3967
    %v3984 = vunpack.c.l.b16 %v3968
    %v3985 = vpack.c.b16 %v3984, %v3983
    %3987 = vmatpush.bf16.xpose.msra.mxu0 0
    %3988 = vmatpush.bf16.xpose.msra.mxu0 0
    %3989 = vmatpush.bf16.xpose.msra.mxu0 0
    %3990 = vmatpush.bf16.xpose.msra.mxu0 0
    %3991 = vmatpush.bf16.xpose.msra.mxu0 0
    %3992 = vmatpush.bf16.xpose.msra.mxu0 0
    %3993 = vmatpush.bf16.xpose.msra.mxu0 0
    %3994 = vmatpush.bf16.xpose.msra.mxu0 %v3985
    %3995 = vmatmul.bf16.gmra.mxu0 %v3979
    %v3996 = vpop.f32.mrf.mxu0
    %v3997 = vadd.f32 0.0, %v3996
    %v3998 = vpop.f32.mrf.mxu0
    %v3999 = vadd.f32 0.0, %v3998
    %4000 = vdwg.mxu0
    %v4003 = vunpack.c.l.b16 %v3965
    %v4004 = vunpack.c.l.b16 %v3966
    %v4005 = vpack.c.b16 %v4004, %v4003
    %v4009 = vunpack.c.l.b16 %v3969
    %v4010 = vunpack.c.l.b16 %v3970
    %v4011 = vpack.c.b16 %v4010, %v4009
    %4013 = vmatpush.bf16.xpose.msra.mxu0 0
    %4014 = vmatpush.bf16.xpose.msra.mxu0 0
    %4015 = vmatpush.bf16.xpose.msra.mxu0 0
    %4016 = vmatpush.bf16.xpose.msra.mxu0 0
    %4017 = vmatpush.bf16.xpose.msra.mxu0 0
    %4018 = vmatpush.bf16.xpose.msra.mxu0 0
    %4019 = vmatpush.bf16.xpose.msra.mxu0 0
    %4020 = vmatpush.bf16.xpose.msra.mxu0 %v4011
    %4021 = vmatmul.bf16.gmra.mxu0 %v4005
    %v4022 = vpop.f32.mrf.mxu0
    %v4023 = vadd.f32 0.0, %v4022
    %v4024 = vpop.f32.mrf.mxu0
    %v4025 = vadd.f32 0.0, %v4024
    %4026 = vdwg.mxu0
    %v4027 = vsel %vm3354, %v3997, -inf
    %4028 = vmax.xlane.f32.xlu0 %v4027
    %v4029 = vpop.xlane.xlu0 %4028
    %v4030 = vsel %vm3354, %v3999, -inf
    %4031 = vmax.xlane.f32.xlu0 %v4030
    %v4032 = vpop.xlane.xlu0 %4031
    %v4033 = vsel %vm3354, %v4023, -inf
    %4034 = vmax.xlane.f32.xlu0 %v4033
    %v4035 = vpop.xlane.xlu0 %4034
    %v4036 = vsel %vm3354, %v4025, -inf
    %4037 = vmax.xlane.f32.xlu0 %v4036
    %v4038 = vpop.xlane.xlu0 %4037
    %v4039 = vsub.f32 %v3997, %v4029
    %v4040 = vsub.f32 %v3999, %v4032
    %v4041 = vsub.f32 %v4023, %v4035
    %v4042 = vsub.f32 %v4025, %v4038
    %v4043 = vmul.f32 %v4039, 0.088388346
    %v4044 = vmul.f32 %v4040, 0.088388346
    %v4045 = vmul.f32 %v4041, 0.088388346
    %v4046 = vmul.f32 %v4042, 0.088388346
    %v4047 = vmul.f32 %v4043, 1.442695
    %v4048 = vpow.pop %v4047
    %v4049 = vmul.f32 %v4044, 1.442695
    %v4050 = vpow.pop %v4049
    %v4051 = vmul.f32 %v4045, 1.442695
    %v4052 = vpow.pop %v4051
    %v4053 = vmul.f32 %v4046, 1.442695
    %v4054 = vpow.pop %v4053
    %v4055 = vsel %vm3354, %v4048, 0.0
    %4056 = vadd.xlane.f32.xlu0 %v4055
    %v4057 = vpop.xlane.xlu0 %4056
    %v4058 = vsel %vm3354, %v4050, 0.0
    %4059 = vadd.xlane.f32.xlu0 %v4058
    %v4060 = vpop.xlane.xlu0 %4059
    %v4061 = vsel %vm3354, %v4052, 0.0
    %4062 = vadd.xlane.f32.xlu0 %v4061
    %v4063 = vpop.xlane.xlu0 %4062
    %v4064 = vsel %vm3354, %v4054, 0.0
    %4065 = vadd.xlane.f32.xlu0 %v4064
    %v4066 = vpop.xlane.xlu0 %4065
    %v4067 = vrcp.pop %v4057
    %v4068 = vmul.f32 %v4057, %v4067
    %v4069 = vsub.f32 1.0, %v4068
    %v4070 = vmul.f32 %v4067, %v4069
    %v4071 = vadd.f32 %v4067, %v4070
    %vm4072 = vweird.f32 %v4057
    %vm4073 = vweird.f32 %v4067
    %vm4074 = vmor %vm4072, %vm4073
    %v4075 = vsel %vm4074, %v4067, %v4071
    %v4076 = vand.u32 2147483647, %v4057
    %vm4077 = vcmp.eq.f32.partialorder %v4076, 8.507059e+37
    %v4078 = vand.u32 %v4057, 2147483648
    %v4079 = vor.u32 1.1754944e-38, %v4078
    %v4080 = vsel %vm4077, %v4079, %v4075
    %v4081 = vrcp.pop %v4060
    %v4082 = vmul.f32 %v4060, %v4081
    %v4083 = vsub.f32 1.0, %v4082
    %v4084 = vmul.f32 %v4081, %v4083
    %v4085 = vadd.f32 %v4081, %v4084
    %vm4086 = vweird.f32 %v4060
    %vm4087 = vweird.f32 %v4081
    %vm4088 = vmor %vm4086, %vm4087
    %v4089 = vsel %vm4088, %v4081, %v4085
    %v4090 = vand.u32 2147483647, %v4060
    %vm4091 = vcmp.eq.f32.partialorder %v4090, 8.507059e+37
    %v4092 = vand.u32 %v4060, 2147483648
    %v4093 = vor.u32 1.1754944e-38, %v4092
    %v4094 = vsel %vm4091, %v4093, %v4089
    %v4095 = vrcp.pop %v4063
    %v4096 = vmul.f32 %v4063, %v4095
    %v4097 = vsub.f32 1.0, %v4096
    %v4098 = vmul.f32 %v4095, %v4097
    %v4099 = vadd.f32 %v4095, %v4098
    %vm4100 = vweird.f32 %v4063
    %vm4101 = vweird.f32 %v4095
    %vm4102 = vmor %vm4100, %vm4101
    %v4103 = vsel %vm4102, %v4095, %v4099
    %v4104 = vand.u32 2147483647, %v4063
    %vm4105 = vcmp.eq.f32.partialorder %v4104, 8.507059e+37
    %v4106 = vand.u32 %v4063, 2147483648
    %v4107 = vor.u32 1.1754944e-38, %v4106
    %v4108 = vsel %vm4105, %v4107, %v4103
    %v4109 = vrcp.pop %v4066
    %v4110 = vmul.f32 %v4066, %v4109
    %v4111 = vsub.f32 1.0, %v4110
    %v4112 = vmul.f32 %v4109, %v4111
    %v4113 = vadd.f32 %v4109, %v4112
    %vm4114 = vweird.f32 %v4066
    %vm4115 = vweird.f32 %v4109
    %vm4116 = vmor %vm4114, %vm4115
    %v4117 = vsel %vm4116, %v4109, %v4113
    %v4118 = vand.u32 2147483647, %v4066
    %vm4119 = vcmp.eq.f32.partialorder %v4118, 8.507059e+37
    %v4120 = vand.u32 %v4066, 2147483648
    %v4121 = vor.u32 1.1754944e-38, %v4120
    %v4122 = vsel %vm4119, %v4121, %v4117
    %v4123 = vmul.f32 %v4048, %v4080
    %v4124 = vmul.f32 %v4050, %v4094
    %v4125 = vmul.f32 %v4052, %v4108
    %v4126 = vmul.f32 %v4054, %v4122
    %v4127 = vpack.c.bf16 %v4123, %v4123
    %v4128 = vpack.c.bf16 %v4124, %v4124
    %v4129 = vpack.c.bf16 %v4125, %v4125
    %v4130 = vpack.c.bf16 %v4126, %v4126
    %v4133 = vunpack.c.l.b16 %v4127
    %v4134 = vunpack.c.l.b16 %v4128
    %v4135 = vpack.c.b16 %v4134, %v4133
    %v4138 = vunpack.c.l.b16 %v3971
    %v4139 = vunpack.c.l.b16 %v3972
    %v4140 = vpack.c.b16 %v4139, %v4138
    %v4143 = vsel %vm3354, %v4135, 0
    %4145 = vmatpush.bf16.msra.mxu0 0
    %4146 = vmatpush.bf16.msra.mxu0 0
    %4147 = vmatpush.bf16.msra.mxu0 0
    %4148 = vmatpush.bf16.msra.mxu0 0
    %4149 = vmatpush.bf16.msra.mxu0 0
    %4150 = vmatpush.bf16.msra.mxu0 0
    %4151 = vmatpush.bf16.msra.mxu0 0
    %4152 = vmatpush.bf16.msra.mxu0 %v4140
    %4153 = vmatmul.bf16.gmra.mxu0 %v4143
    %v4154 = vpop.f32.mrf.mxu0
    %v4155 = vadd.f32 0.0, %v4154
    %v4156 = vpop.f32.mrf.mxu0
    %v4157 = vadd.f32 0.0, %v4156
    %4158 = vdwg.mxu0
    %v4161 = vunpack.c.l.b16 %v4129
    %v4162 = vunpack.c.l.b16 %v4130
    %v4163 = vpack.c.b16 %v4162, %v4161
    %v4166 = vunpack.c.l.b16 %v3973
    %v4167 = vunpack.c.l.b16 %v3974
    %v4168 = vpack.c.b16 %v4167, %v4166
    %v4171 = vsel %vm3354, %v4163, 0
    %4173 = vmatpush.bf16.msra.mxu0 0
    %4174 = vmatpush.bf16.msra.mxu0 0
    %4175 = vmatpush.bf16.msra.mxu0 0
    %4176 = vmatpush.bf16.msra.mxu0 0
    %4177 = vmatpush.bf16.msra.mxu0 0
    %4178 = vmatpush.bf16.msra.mxu0 0
    %4179 = vmatpush.bf16.msra.mxu0 0
    %4180 = vmatpush.bf16.msra.mxu0 %v4168
    %4181 = vmatmul.bf16.gmra.mxu0 %v4171
    %v4182 = vpop.f32.mrf.mxu0
    %v4183 = vadd.f32 0.0, %v4182
    %v4184 = vpop.f32.mrf.mxu0
    %v4185 = vadd.f32 0.0, %v4184
    %4186 = vdwg.mxu0
    %v4187 = vpack.c.bf16 %v3485, %v3483
    %v4188 = vpack.c.bf16 %v3709, %v3707
    %v4189 = vpack.c.bf16 %v3933, %v3931
    %v4190 = vpack.c.bf16 %v4157, %v4155
    %v4191 = vpack.c.bf16 %v3513, %v3511
    %v4192 = vpack.c.bf16 %v3737, %v3735
    %v4193 = vpack.c.bf16 %v3961, %v3959
    %v4194 = vpack.c.bf16 %v4185, %v4183
    %v4195 = vld [vmem:[%s3] sm:$0xff]
    %v4196 = vld [vmem:[%s3 + $0x8] sm:$0xff]
    %v4197 = vld [vmem:[%s3 + $0x10] sm:$0xff]
    %v4198 = vld [vmem:[%s3 + $0x18] sm:$0xff]
    %v4199 = vld [vmem:[%s3 + $0x20] sm:$0xff]
    %v4200 = vld [vmem:[%s3 + $0x28] sm:$0xff]
    %v4201 = vld [vmem:[%s3 + $0x30] sm:$0xff]
    %v4202 = vld [vmem:[%s3 + $0x38] sm:$0xff]
    %v4203 = vld [vmem:[%s3 + $0x40] sm:$0xff]
    %v4204 = vld [vmem:[%s3 + $0x48] sm:$0xff]
    %v4205 = vld [vmem:[%s3 + $0x50] sm:$0xff]
    %v4206 = vld [vmem:[%s3 + $0x58] sm:$0xff]
    %v4207 = vld [vmem:[%s3 + $0x60] sm:$0xff]
    %v4208 = vld [vmem:[%s3 + $0x68] sm:$0xff]
    %v4209 = vld [vmem:[%s3 + $0x70] sm:$0xff]
    %v4210 = vld [vmem:[%s3 + $0x78] sm:$0xff]
    %v4211 = vld [vmem:[%s3 + $0x80] sm:$0xff]
    %v4212 = vld [vmem:[%s3 + $0x88] sm:$0xff]
    %v4213 = vld [vmem:[%s3 + $0x90] sm:$0xff]
    %v4214 = vld [vmem:[%s3 + $0x98] sm:$0xff]
    %v4215 = vld [vmem:[%s3 + $0xa0] sm:$0xff]
    %v4216 = vld [vmem:[%s3 + $0xa8] sm:$0xff]
    %v4217 = vld [vmem:[%s3 + $0xb0] sm:$0xff]
    %v4218 = vld [vmem:[%s3 + $0xb8] sm:$0xff]
    %v4219 = vld [vmem:[%s3 + $0xc0] sm:$0xff]
    %v4220 = vld [vmem:[%s3 + $0xc8] sm:$0xff]
    %v4221 = vld [vmem:[%s3 + $0xd0] sm:$0xff]
    %v4222 = vld [vmem:[%s3 + $0xd8] sm:$0xff]
    %v4223 = vld [vmem:[%s3 + $0xe0] sm:$0xff]
    %v4224 = vld [vmem:[%s3 + $0xe8] sm:$0xff]
    %v4225 = vld [vmem:[%s3 + $0xf0] sm:$0xff]
    %v4226 = vld [vmem:[%s3 + $0xf8] sm:$0xff]
    %v4227 = vld [vmem:[%s3 + $0x100] sm:$0xff]
    %v4228 = vld [vmem:[%s3 + $0x108] sm:$0xff]
    %v4229 = vld [vmem:[%s3 + $0x110] sm:$0xff]
    %v4230 = vld [vmem:[%s3 + $0x118] sm:$0xff]
    %v4231 = vld [vmem:[%s3 + $0x120] sm:$0xff]
    %v4232 = vld [vmem:[%s3 + $0x128] sm:$0xff]
    %v4233 = vld [vmem:[%s3 + $0x130] sm:$0xff]
    %v4234 = vld [vmem:[%s3 + $0x138] sm:$0xff]
    %v4235 = vld [vmem:[%s3 + $0x140] sm:$0xff]
    %v4236 = vld [vmem:[%s3 + $0x148] sm:$0xff]
    %v4237 = vld [vmem:[%s3 + $0x150] sm:$0xff]
    %v4238 = vld [vmem:[%s3 + $0x158] sm:$0xff]
    %v4239 = vld [vmem:[%s3 + $0x160] sm:$0xff]
    %v4240 = vld [vmem:[%s3 + $0x168] sm:$0xff]
    %v4241 = vld [vmem:[%s3 + $0x170] sm:$0xff]
    %v4242 = vld [vmem:[%s3 + $0x178] sm:$0xff]
    %v4243 = vld [vmem:[%s3 + $0x180] sm:$0xff]
    %v4244 = vld [vmem:[%s3 + $0x188] sm:$0xff]
    %v4245 = vld [vmem:[%s3 + $0x190] sm:$0xff]
    %v4246 = vld [vmem:[%s3 + $0x198] sm:$0xff]
    %v4247 = vld [vmem:[%s3 + $0x1a0] sm:$0xff]
    %v4248 = vld [vmem:[%s3 + $0x1a8] sm:$0xff]
    %v4249 = vld [vmem:[%s3 + $0x1b0] sm:$0xff]
    %v4250 = vld [vmem:[%s3 + $0x1b8] sm:$0xff]
    %v4251 = vld [vmem:[%s3 + $0x1c0] sm:$0xff]
    %v4252 = vld [vmem:[%s3 + $0x1c8] sm:$0xff]
    %v4253 = vld [vmem:[%s3 + $0x1d0] sm:$0xff]
    %v4254 = vld [vmem:[%s3 + $0x1d8] sm:$0xff]
    %v4255 = vld [vmem:[%s3 + $0x1e0] sm:$0xff]
    %v4256 = vld [vmem:[%s3 + $0x1e8] sm:$0xff]
    %v4257 = vld [vmem:[%s3 + $0x1f0] sm:$0xff]
    %v4258 = vld [vmem:[%s3 + $0x1f8] sm:$0xff]
    %v4259 = vld [vmem:[%s3 + $0x200] sm:$0xff]
    %v4260 = vld [vmem:[%s3 + $0x208] sm:$0xff]
    %v4261 = vld [vmem:[%s3 + $0x210] sm:$0xff]
    %v4262 = vld [vmem:[%s3 + $0x218] sm:$0xff]
    %v4263 = vld [vmem:[%s3 + $0x220] sm:$0xff]
    %v4264 = vld [vmem:[%s3 + $0x228] sm:$0xff]
    %v4265 = vld [vmem:[%s3 + $0x230] sm:$0xff]
    %v4266 = vld [vmem:[%s3 + $0x238] sm:$0xff]
    %v4267 = vld [vmem:[%s3 + $0x240] sm:$0xff]
    %v4268 = vld [vmem:[%s3 + $0x248] sm:$0xff]
    %v4269 = vld [vmem:[%s3 + $0x250] sm:$0xff]
    %v4270 = vld [vmem:[%s3 + $0x258] sm:$0xff]
    %v4271 = vld [vmem:[%s3 + $0x260] sm:$0xff]
    %v4272 = vld [vmem:[%s3 + $0x268] sm:$0xff]
    %v4273 = vld [vmem:[%s3 + $0x270] sm:$0xff]
    %v4274 = vld [vmem:[%s3 + $0x278] sm:$0xff]
    %v4275 = vld [vmem:[%s3 + $0x280] sm:$0xff]
    %v4276 = vld [vmem:[%s3 + $0x288] sm:$0xff]
    %v4277 = vld [vmem:[%s3 + $0x290] sm:$0xff]
    %v4278 = vld [vmem:[%s3 + $0x298] sm:$0xff]
    %v4279 = vld [vmem:[%s3 + $0x2a0] sm:$0xff]
    %v4280 = vld [vmem:[%s3 + $0x2a8] sm:$0xff]
    %v4281 = vld [vmem:[%s3 + $0x2b0] sm:$0xff]
    %v4282 = vld [vmem:[%s3 + $0x2b8] sm:$0xff]
    %v4283 = vld [vmem:[%s3 + $0x2c0] sm:$0xff]
    %v4284 = vld [vmem:[%s3 + $0x2c8] sm:$0xff]
    %v4285 = vld [vmem:[%s3 + $0x2d0] sm:$0xff]
    %v4286 = vld [vmem:[%s3 + $0x2d8] sm:$0xff]
    %v4287 = vld [vmem:[%s3 + $0x2e0] sm:$0xff]
    %v4288 = vld [vmem:[%s3 + $0x2e8] sm:$0xff]
    %v4289 = vld [vmem:[%s3 + $0x2f0] sm:$0xff]
    %v4290 = vld [vmem:[%s3 + $0x2f8] sm:$0xff]
    %v4291 = vld [vmem:[%s3 + $0x300] sm:$0xff]
    %v4292 = vld [vmem:[%s3 + $0x308] sm:$0xff]
    %v4293 = vld [vmem:[%s3 + $0x310] sm:$0xff]
    %v4294 = vld [vmem:[%s3 + $0x318] sm:$0xff]
    %v4295 = vld [vmem:[%s3 + $0x320] sm:$0xff]
    %v4296 = vld [vmem:[%s3 + $0x328] sm:$0xff]
    %v4297 = vld [vmem:[%s3 + $0x330] sm:$0xff]
    %v4298 = vld [vmem:[%s3 + $0x338] sm:$0xff]
    %v4299 = vld [vmem:[%s3 + $0x340] sm:$0xff]
    %v4300 = vld [vmem:[%s3 + $0x348] sm:$0xff]
    %v4301 = vld [vmem:[%s3 + $0x350] sm:$0xff]
    %v4302 = vld [vmem:[%s3 + $0x358] sm:$0xff]
    %v4303 = vld [vmem:[%s3 + $0x360] sm:$0xff]
    %v4304 = vld [vmem:[%s3 + $0x368] sm:$0xff]
    %v4305 = vld [vmem:[%s3 + $0x370] sm:$0xff]
    %v4306 = vld [vmem:[%s3 + $0x378] sm:$0xff]
    %v4307 = vld [vmem:[%s3 + $0x380] sm:$0xff]
    %v4308 = vld [vmem:[%s3 + $0x388] sm:$0xff]
    %v4309 = vld [vmem:[%s3 + $0x390] sm:$0xff]
    %v4310 = vld [vmem:[%s3 + $0x398] sm:$0xff]
    %v4311 = vld [vmem:[%s3 + $0x3a0] sm:$0xff]
    %v4312 = vld [vmem:[%s3 + $0x3a8] sm:$0xff]
    %v4313 = vld [vmem:[%s3 + $0x3b0] sm:$0xff]
    %v4314 = vld [vmem:[%s3 + $0x3b8] sm:$0xff]
    %v4315 = vld [vmem:[%s3 + $0x3c0] sm:$0xff]
    %v4316 = vld [vmem:[%s3 + $0x3c8] sm:$0xff]
    %v4317 = vld [vmem:[%s3 + $0x3d0] sm:$0xff]
    %v4318 = vld [vmem:[%s3 + $0x3d8] sm:$0xff]
    %v4319 = vld [vmem:[%s3 + $0x3e0] sm:$0xff]
    %v4320 = vld [vmem:[%s3 + $0x3e8] sm:$0xff]
    %v4321 = vld [vmem:[%s3 + $0x3f0] sm:$0xff]
    %v4322 = vld [vmem:[%s3 + $0x3f8] sm:$0xff]
    %v4323 = vld [vmem:[%s4] sm:$0xf]
    %v4325 = vperm.slane %v4323, 0
    %v4326 = vperm.slane %v4323, 1
    %v4327 = vperm.slane %v4323, 2
    %v4328 = vperm.slane %v4323, 3
    %v4461 = vunpack.c.l.b16 %v4195
    %v4462 = vunpack.c.h.b16 %v4195
    %v4463 = vunpack.c.l.b16 %v4196
    %v4464 = vunpack.c.h.b16 %v4196
    %v4465 = vunpack.c.l.b16 %v4197
    %v4466 = vunpack.c.h.b16 %v4197
    %v4467 = vunpack.c.l.b16 %v4198
    %v4468 = vunpack.c.h.b16 %v4198
    %v4469 = vunpack.c.l.b16 %v4199
    %v4470 = vunpack.c.h.b16 %v4199
    %v4471 = vunpack.c.l.b16 %v4200
    %v4472 = vunpack.c.h.b16 %v4200
    %v4473 = vunpack.c.l.b16 %v4201
    %v4474 = vunpack.c.h.b16 %v4201
    %v4475 = vunpack.c.l.b16 %v4202
    %v4476 = vunpack.c.h.b16 %v4202
    %v4477 = vunpack.c.l.b16 %v4203
    %v4478 = vunpack.c.h.b16 %v4203
    %v4479 = vunpack.c.l.b16 %v4204
    %v4480 = vunpack.c.h.b16 %v4204
    %v4481 = vunpack.c.l.b16 %v4205
    %v4482 = vunpack.c.h.b16 %v4205
    %v4483 = vunpack.c.l.b16 %v4206
    %v4484 = vunpack.c.h.b16 %v4206
    %v4485 = vunpack.c.l.b16 %v4207
    %v4486 = vunpack.c.h.b16 %v4207
    %v4487 = vunpack.c.l.b16 %v4208
    %v4488 = vunpack.c.h.b16 %v4208
    %v4489 = vunpack.c.l.b16 %v4209
    %v4490 = vunpack.c.h.b16 %v4209
    %v4491 = vunpack.c.l.b16 %v4210
    %v4492 = vunpack.c.h.b16 %v4210
    %v4493 = vunpack.c.l.b16 %v4211
    %v4494 = vunpack.c.h.b16 %v4211
    %v4495 = vunpack.c.l.b16 %v4212
    %v4496 = vunpack.c.h.b16 %v4212
    %v4497 = vunpack.c.l.b16 %v4213
    %v4498 = vunpack.c.h.b16 %v4213
    %v4499 = vunpack.c.l.b16 %v4214
    %v4500 = vunpack.c.h.b16 %v4214
    %v4501 = vunpack.c.l.b16 %v4215
    %v4502 = vunpack.c.h.b16 %v4215
    %v4503 = vunpack.c.l.b16 %v4216
    %v4504 = vunpack.c.h.b16 %v4216
    %v4505 = vunpack.c.l.b16 %v4217
    %v4506 = vunpack.c.h.b16 %v4217
    %v4507 = vunpack.c.l.b16 %v4218
    %v4508 = vunpack.c.h.b16 %v4218
    %v4509 = vunpack.c.l.b16 %v4219
    %v4510 = vunpack.c.h.b16 %v4219
    %v4511 = vunpack.c.l.b16 %v4220
    %v4512 = vunpack.c.h.b16 %v4220
    %v4513 = vunpack.c.l.b16 %v4221
    %v4514 = vunpack.c.h.b16 %v4221
    %v4515 = vunpack.c.l.b16 %v4222
    %v4516 = vunpack.c.h.b16 %v4222
    %v4517 = vunpack.c.l.b16 %v4223
    %v4518 = vunpack.c.h.b16 %v4223
    %v4519 = vunpack.c.l.b16 %v4224
    %v4520 = vunpack.c.h.b16 %v4224
    %v4521 = vunpack.c.l.b16 %v4225
    %v4522 = vunpack.c.h.b16 %v4225
    %v4523 = vunpack.c.l.b16 %v4226
    %v4524 = vunpack.c.h.b16 %v4226
    %v4525 = vunpack.c.l.b16 %v4227
    %v4526 = vunpack.c.h.b16 %v4227
    %v4527 = vunpack.c.l.b16 %v4228
    %v4528 = vunpack.c.h.b16 %v4228
    %v4529 = vunpack.c.l.b16 %v4229
    %v4530 = vunpack.c.h.b16 %v4229
    %v4531 = vunpack.c.l.b16 %v4230
    %v4532 = vunpack.c.h.b16 %v4230
    %v4533 = vunpack.c.l.b16 %v4231
    %v4534 = vunpack.c.h.b16 %v4231
    %v4535 = vunpack.c.l.b16 %v4232
    %v4536 = vunpack.c.h.b16 %v4232
    %v4537 = vunpack.c.l.b16 %v4233
    %v4538 = vunpack.c.h.b16 %v4233
    %v4539 = vunpack.c.l.b16 %v4234
    %v4540 = vunpack.c.h.b16 %v4234
    %v4541 = vunpack.c.l.b16 %v4235
    %v4542 = vunpack.c.h.b16 %v4235
    %v4543 = vunpack.c.l.b16 %v4236
    %v4544 = vunpack.c.h.b16 %v4236
    %v4545 = vunpack.c.l.b16 %v4237
    %v4546 = vunpack.c.h.b16 %v4237
    %v4547 = vunpack.c.l.b16 %v4238
    %v4548 = vunpack.c.h.b16 %v4238
    %v4549 = vunpack.c.l.b16 %v4239
    %v4550 = vunpack.c.h.b16 %v4239
    %v4551 = vunpack.c.l.b16 %v4240
    %v4552 = vunpack.c.h.b16 %v4240
    %v4553 = vunpack.c.l.b16 %v4241
    %v4554 = vunpack.c.h.b16 %v4241
    %v4555 = vunpack.c.l.b16 %v4242
    %v4556 = vunpack.c.h.b16 %v4242
    %v4557 = vunpack.c.l.b16 %v4243
    %v4558 = vunpack.c.h.b16 %v4243
    %v4559 = vunpack.c.l.b16 %v4244
    %v4560 = vunpack.c.h.b16 %v4244
    %v4561 = vunpack.c.l.b16 %v4245
    %v4562 = vunpack.c.h.b16 %v4245
    %v4563 = vunpack.c.l.b16 %v4246
    %v4564 = vunpack.c.h.b16 %v4246
    %v4565 = vunpack.c.l.b16 %v4247
    %v4566 = vunpack.c.h.b16 %v4247
    %v4567 = vunpack.c.l.b16 %v4248
    %v4568 = vunpack.c.h.b16 %v4248
    %v4569 = vunpack.c.l.b16 %v4249
    %v4570 = vunpack.c.h.b16 %v4249
    %v4571 = vunpack.c.l.b16 %v4250
    %v4572 = vunpack.c.h.b16 %v4250
    %v4573 = vunpack.c.l.b16 %v4251
    %v4574 = vunpack.c.h.b16 %v4251
    %v4575 = vunpack.c.l.b16 %v4252
    %v4576 = vunpack.c.h.b16 %v4252
    %v4577 = vunpack.c.l.b16 %v4253
    %v4578 = vunpack.c.h.b16 %v4253
    %v4579 = vunpack.c.l.b16 %v4254
    %v4580 = vunpack.c.h.b16 %v4254
    %v4581 = vunpack.c.l.b16 %v4255
    %v4582 = vunpack.c.h.b16 %v4255
    %v4583 = vunpack.c.l.b16 %v4256
    %v4584 = vunpack.c.h.b16 %v4256
    %v4585 = vunpack.c.l.b16 %v4257
    %v4586 = vunpack.c.h.b16 %v4257
    %v4587 = vunpack.c.l.b16 %v4258
    %v4588 = vunpack.c.h.b16 %v4258
    %v4589 = vunpack.c.l.b16 %v4259
    %v4590 = vunpack.c.h.b16 %v4259
    %v4591 = vunpack.c.l.b16 %v4260
    %v4592 = vunpack.c.h.b16 %v4260
    %v4593 = vunpack.c.l.b16 %v4261
    %v4594 = vunpack.c.h.b16 %v4261
    %v4595 = vunpack.c.l.b16 %v4262
    %v4596 = vunpack.c.h.b16 %v4262
    %v4597 = vunpack.c.l.b16 %v4263
    %v4598 = vunpack.c.h.b16 %v4263
    %v4599 = vunpack.c.l.b16 %v4264
    %v4600 = vunpack.c.h.b16 %v4264
    %v4601 = vunpack.c.l.b16 %v4265
    %v4602 = vunpack.c.h.b16 %v4265
    %v4603 = vunpack.c.l.b16 %v4266
    %v4604 = vunpack.c.h.b16 %v4266
    %v4605 = vunpack.c.l.b16 %v4267
    %v4606 = vunpack.c.h.b16 %v4267
    %v4607 = vunpack.c.l.b16 %v4268
    %v4608 = vunpack.c.h.b16 %v4268
    %v4609 = vunpack.c.l.b16 %v4269
    %v4610 = vunpack.c.h.b16 %v4269
    %v4611 = vunpack.c.l.b16 %v4270
    %v4612 = vunpack.c.h.b16 %v4270
    %v4613 = vunpack.c.l.b16 %v4271
    %v4614 = vunpack.c.h.b16 %v4271
    %v4615 = vunpack.c.l.b16 %v4272
    %v4616 = vunpack.c.h.b16 %v4272
    %v4617 = vunpack.c.l.b16 %v4273
    %v4618 = vunpack.c.h.b16 %v4273
    %v4619 = vunpack.c.l.b16 %v4274
    %v4620 = vunpack.c.h.b16 %v4274
    %v4621 = vunpack.c.l.b16 %v4275
    %v4622 = vunpack.c.h.b16 %v4275
    %v4623 = vunpack.c.l.b16 %v4276
    %v4624 = vunpack.c.h.b16 %v4276
    %v4625 = vunpack.c.l.b16 %v4277
    %v4626 = vunpack.c.h.b16 %v4277
    %v4627 = vunpack.c.l.b16 %v4278
    %v4628 = vunpack.c.h.b16 %v4278
    %v4629 = vunpack.c.l.b16 %v4279
    %v4630 = vunpack.c.h.b16 %v4279
    %v4631 = vunpack.c.l.b16 %v4280
    %v4632 = vunpack.c.h.b16 %v4280
    %v4633 = vunpack.c.l.b16 %v4281
    %v4634 = vunpack.c.h.b16 %v4281
    %v4635 = vunpack.c.l.b16 %v4282
    %v4636 = vunpack.c.h.b16 %v4282
    %v4637 = vunpack.c.l.b16 %v4283
    %v4638 = vunpack.c.h.b16 %v4283
    %v4639 = vunpack.c.l.b16 %v4284
    %v4640 = vunpack.c.h.b16 %v4284
    %v4641 = vunpack.c.l.b16 %v4285
    %v4642 = vunpack.c.h.b16 %v4285
    %v4643 = vunpack.c.l.b16 %v4286
    %v4644 = vunpack.c.h.b16 %v4286
    %v4645 = vunpack.c.l.b16 %v4287
    %v4646 = vunpack.c.h.b16 %v4287
    %v4647 = vunpack.c.l.b16 %v4288
    %v4648 = vunpack.c.h.b16 %v4288
    %v4649 = vunpack.c.l.b16 %v4289
    %v4650 = vunpack.c.h.b16 %v4289
    %v4651 = vunpack.c.l.b16 %v4290
    %v4652 = vunpack.c.h.b16 %v4290
    %v4653 = vunpack.c.l.b16 %v4291
    %v4654 = vunpack.c.h.b16 %v4291
    %v4655 = vunpack.c.l.b16 %v4292
    %v4656 = vunpack.c.h.b16 %v4292
    %v4657 = vunpack.c.l.b16 %v4293
    %v4658 = vunpack.c.h.b16 %v4293
    %v4659 = vunpack.c.l.b16 %v4294
    %v4660 = vunpack.c.h.b16 %v4294
    %v4661 = vunpack.c.l.b16 %v4295
    %v4662 = vunpack.c.h.b16 %v4295
    %v4663 = vunpack.c.l.b16 %v4296
    %v4664 = vunpack.c.h.b16 %v4296
    %v4665 = vunpack.c.l.b16 %v4297
    %v4666 = vunpack.c.h.b16 %v4297
    %v4667 = vunpack.c.l.b16 %v4298
    %v4668 = vunpack.c.h.b16 %v4298
    %v4669 = vunpack.c.l.b16 %v4299
    %v4670 = vunpack.c.h.b16 %v4299
    %v4671 = vunpack.c.l.b16 %v4300
    %v4672 = vunpack.c.h.b16 %v4300
    %v4673 = vunpack.c.l.b16 %v4301
    %v4674 = vunpack.c.h.b16 %v4301
    %v4675 = vunpack.c.l.b16 %v4302
    %v4676 = vunpack.c.h.b16 %v4302
    %v4677 = vunpack.c.l.b16 %v4303
    %v4678 = vunpack.c.h.b16 %v4303
    %v4679 = vunpack.c.l.b16 %v4304
    %v4680 = vunpack.c.h.b16 %v4304
    %v4681 = vunpack.c.l.b16 %v4305
    %v4682 = vunpack.c.h.b16 %v4305
    %v4683 = vunpack.c.l.b16 %v4306
    %v4684 = vunpack.c.h.b16 %v4306
    %v4685 = vunpack.c.l.b16 %v4307
    %v4686 = vunpack.c.h.b16 %v4307
    %v4687 = vunpack.c.l.b16 %v4308
    %v4688 = vunpack.c.h.b16 %v4308
    %v4689 = vunpack.c.l.b16 %v4309
    %v4690 = vunpack.c.h.b16 %v4309
    %v4691 = vunpack.c.l.b16 %v4310
    %v4692 = vunpack.c.h.b16 %v4310
    %v4693 = vunpack.c.l.b16 %v4311
    %v4694 = vunpack.c.h.b16 %v4311
    %v4695 = vunpack.c.l.b16 %v4312
    %v4696 = vunpack.c.h.b16 %v4312
    %v4697 = vunpack.c.l.b16 %v4313
    %v4698 = vunpack.c.h.b16 %v4313
    %v4699 = vunpack.c.l.b16 %v4314
    %v4700 = vunpack.c.h.b16 %v4314
    %v4701 = vunpack.c.l.b16 %v4315
    %v4702 = vunpack.c.h.b16 %v4315
    %v4703 = vunpack.c.l.b16 %v4316
    %v4704 = vunpack.c.h.b16 %v4316
    %v4705 = vunpack.c.l.b16 %v4317
    %v4706 = vunpack.c.h.b16 %v4317
    %v4707 = vunpack.c.l.b16 %v4318
    %v4708 = vunpack.c.h.b16 %v4318
    %v4709 = vunpack.c.l.b16 %v4319
    %v4710 = vunpack.c.h.b16 %v4319
    %v4711 = vunpack.c.l.b16 %v4320
    %v4712 = vunpack.c.h.b16 %v4320
    %v4713 = vunpack.c.l.b16 %v4321
    %v4714 = vunpack.c.h.b16 %v4321
    %v4715 = vunpack.c.l.b16 %v4322
    %v4716 = vunpack.c.h.b16 %v4322
    %v4717 = vpack.c.b16 %v4465, %v4461
    %v4718 = vpack.c.b16 %v4466, %v4462
    %v4719 = vpack.c.b16 %v4467, %v4463
    %v4720 = vpack.c.b16 %v4468, %v4464
    %v4721 = vpack.c.b16 %v4473, %v4469
    %v4722 = vpack.c.b16 %v4474, %v4470
    %v4723 = vpack.c.b16 %v4475, %v4471
    %v4724 = vpack.c.b16 %v4476, %v4472
    %v4725 = vpack.c.b16 %v4481, %v4477
    %v4726 = vpack.c.b16 %v4482, %v4478
    %v4727 = vpack.c.b16 %v4483, %v4479
    %v4728 = vpack.c.b16 %v4484, %v4480
    %v4729 = vpack.c.b16 %v4489, %v4485
    %v4730 = vpack.c.b16 %v4490, %v4486
    %v4731 = vpack.c.b16 %v4491, %v4487
    %v4732 = vpack.c.b16 %v4492, %v4488
    %v4733 = vpack.c.b16 %v4497, %v4493
    %v4734 = vpack.c.b16 %v4498, %v4494
    %v4735 = vpack.c.b16 %v4499, %v4495
    %v4736 = vpack.c.b16 %v4500, %v4496
    %v4737 = vpack.c.b16 %v4505, %v4501
    %v4738 = vpack.c.b16 %v4506, %v4502
    %v4739 = vpack.c.b16 %v4507, %v4503
    %v4740 = vpack.c.b16 %v4508, %v4504
    %v4741 = vpack.c.b16 %v4513, %v4509
    %v4742 = vpack.c.b16 %v4514, %v4510
    %v4743 = vpack.c.b16 %v4515, %v4511
    %v4744 = vpack.c.b16 %v4516, %v4512
    %v4745 = vpack.c.b16 %v4521, %v4517
    %v4746 = vpack.c.b16 %v4522, %v4518
    %v4747 = vpack.c.b16 %v4523, %v4519
    %v4748 = vpack.c.b16 %v4524, %v4520
    %v4749 = vpack.c.b16 %v4529, %v4525
    %v4750 = vpack.c.b16 %v4530, %v4526
    %v4751 = vpack.c.b16 %v4531, %v4527
    %v4752 = vpack.c.b16 %v4532, %v4528
    %v4753 = vpack.c.b16 %v4537, %v4533
    %v4754 = vpack.c.b16 %v4538, %v4534
    %v4755 = vpack.c.b16 %v4539, %v4535
    %v4756 = vpack.c.b16 %v4540, %v4536
    %v4757 = vpack.c.b16 %v4545, %v4541
    %v4758 = vpack.c.b16 %v4546, %v4542
    %v4759 = vpack.c.b16 %v4547, %v4543
    %v4760 = vpack.c.b16 %v4548, %v4544
    %v4761 = vpack.c.b16 %v4553, %v4549
    %v4762 = vpack.c.b16 %v4554, %v4550
    %v4763 = vpack.c.b16 %v4555, %v4551
    %v4764 = vpack.c.b16 %v4556, %v4552
    %v4765 = vpack.c.b16 %v4561, %v4557
    %v4766 = vpack.c.b16 %v4562, %v4558
    %v4767 = vpack.c.b16 %v4563, %v4559
    %v4768 = vpack.c.b16 %v4564, %v4560
    %v4769 = vpack.c.b16 %v4569, %v4565
    %v4770 = vpack.c.b16 %v4570, %v4566
    %v4771 = vpack.c.b16 %v4571, %v4567
    %v4772 = vpack.c.b16 %v4572, %v4568
    %v4773 = vpack.c.b16 %v4577, %v4573
    %v4774 = vpack.c.b16 %v4578, %v4574
    %v4775 = vpack.c.b16 %v4579, %v4575
    %v4776 = vpack.c.b16 %v4580, %v4576
    %v4777 = vpack.c.b16 %v4585, %v4581
    %v4778 = vpack.c.b16 %v4586, %v4582
    %v4779 = vpack.c.b16 %v4587, %v4583
    %v4780 = vpack.c.b16 %v4588, %v4584
    %v4781 = vpack.c.b16 %v4593, %v4589
    %v4782 = vpack.c.b16 %v4594, %v4590
    %v4783 = vpack.c.b16 %v4595, %v4591
    %v4784 = vpack.c.b16 %v4596, %v4592
    %v4785 = vpack.c.b16 %v4601, %v4597
    %v4786 = vpack.c.b16 %v4602, %v4598
    %v4787 = vpack.c.b16 %v4603, %v4599
    %v4788 = vpack.c.b16 %v4604, %v4600
    %v4789 = vpack.c.b16 %v4609, %v4605
    %v4790 = vpack.c.b16 %v4610, %v4606
    %v4791 = vpack.c.b16 %v4611, %v4607
    %v4792 = vpack.c.b16 %v4612, %v4608
    %v4793 = vpack.c.b16 %v4617, %v4613
    %v4794 = vpack.c.b16 %v4618, %v4614
    %v4795 = vpack.c.b16 %v4619, %v4615
    %v4796 = vpack.c.b16 %v4620, %v4616
    %v4797 = vpack.c.b16 %v4625, %v4621
    %v4798 = vpack.c.b16 %v4626, %v4622
    %v4799 = vpack.c.b16 %v4627, %v4623
    %v4800 = vpack.c.b16 %v4628, %v4624
    %v4801 = vpack.c.b16 %v4633, %v4629
    %v4802 = vpack.c.b16 %v4634, %v4630
    %v4803 = vpack.c.b16 %v4635, %v4631
    %v4804 = vpack.c.b16 %v4636, %v4632
    %v4805 = vpack.c.b16 %v4641, %v4637
    %v4806 = vpack.c.b16 %v4642, %v4638
    %v4807 = vpack.c.b16 %v4643, %v4639
    %v4808 = vpack.c.b16 %v4644, %v4640
    %v4809 = vpack.c.b16 %v4649, %v4645
    %v4810 = vpack.c.b16 %v4650, %v4646
    %v4811 = vpack.c.b16 %v4651, %v4647
    %v4812 = vpack.c.b16 %v4652, %v4648
    %v4813 = vpack.c.b16 %v4657, %v4653
    %v4814 = vpack.c.b16 %v4658, %v4654
    %v4815 = vpack.c.b16 %v4659, %v4655
    %v4816 = vpack.c.b16 %v4660, %v4656
    %v4817 = vpack.c.b16 %v4665, %v4661
    %v4818 = vpack.c.b16 %v4666, %v4662
    %v4819 = vpack.c.b16 %v4667, %v4663
    %v4820 = vpack.c.b16 %v4668, %v4664
    %v4821 = vpack.c.b16 %v4673, %v4669
    %v4822 = vpack.c.b16 %v4674, %v4670
    %v4823 = vpack.c.b16 %v4675, %v4671
    %v4824 = vpack.c.b16 %v4676, %v4672
    %v4825 = vpack.c.b16 %v4681, %v4677
    %v4826 = vpack.c.b16 %v4682, %v4678
    %v4827 = vpack.c.b16 %v4683, %v4679
    %v4828 = vpack.c.b16 %v4684, %v4680
    %v4829 = vpack.c.b16 %v4689, %v4685
    %v4830 = vpack.c.b16 %v4690, %v4686
    %v4831 = vpack.c.b16 %v4691, %v4687
    %v4832 = vpack.c.b16 %v4692, %v4688
    %v4833 = vpack.c.b16 %v4697, %v4693
    %v4834 = vpack.c.b16 %v4698, %v4694
    %v4835 = vpack.c.b16 %v4699, %v4695
    %v4836 = vpack.c.b16 %v4700, %v4696
    %v4837 = vpack.c.b16 %v4705, %v4701
    %v4838 = vpack.c.b16 %v4706, %v4702
    %v4839 = vpack.c.b16 %v4707, %v4703
    %v4840 = vpack.c.b16 %v4708, %v4704
    %v4841 = vpack.c.b16 %v4713, %v4709
    %v4842 = vpack.c.b16 %v4714, %v4710
    %v4843 = vpack.c.b16 %v4715, %v4711
    %v4844 = vpack.c.b16 %v4716, %v4712
    %4973 = vmatpush.bf16.msra.mxu0 %v4745
    %4974 = vmatpush.bf16.msra.mxu0 %v4741
    %4975 = vmatpush.bf16.msra.mxu0 %v4737
    %4976 = vmatpush.bf16.msra.mxu0 %v4733
    %4977 = vmatpush.bf16.msra.mxu0 %v4729
    %4978 = vmatpush.bf16.msra.mxu0 %v4725
    %4979 = vmatpush.bf16.msra.mxu0 %v4721
    %4980 = vmatpush.bf16.msra.mxu0 %v4717
    %4981 = vmatmul.bf16.gmra.mxu0 %v4187
    %v4982 = vpop.f32.mrf.mxu0
    %v4983 = vadd.f32 %v4325, %v4982
    %v4984 = vpop.f32.mrf.mxu0
    %v4985 = vadd.f32 %v4325, %v4984
    %4986 = vmatmul.bf16.gmra.mxu0 %v4191
    %v4987 = vpop.f32.mrf.mxu0
    %v4988 = vadd.f32 %v4325, %v4987
    %v4989 = vpop.f32.mrf.mxu0
    %v4990 = vadd.f32 %v4325, %v4989
    %4991 = vdwg.mxu0
    %4992 = vmatpush.bf16.msra.mxu0 %v4777
    %4993 = vmatpush.bf16.msra.mxu0 %v4773
    %4994 = vmatpush.bf16.msra.mxu0 %v4769
    %4995 = vmatpush.bf16.msra.mxu0 %v4765
    %4996 = vmatpush.bf16.msra.mxu0 %v4761
    %4997 = vmatpush.bf16.msra.mxu0 %v4757
    %4998 = vmatpush.bf16.msra.mxu0 %v4753
    %4999 = vmatpush.bf16.msra.mxu0 %v4749
    %5000 = vmatmul.bf16.gmra.mxu0 %v4188
    %v5001 = vpop.f32.mrf.mxu0
    %v5002 = vadd.f32 %v4983, %v5001
    %v5003 = vpop.f32.mrf.mxu0
    %v5004 = vadd.f32 %v4985, %v5003
    %5005 = vmatmul.bf16.gmra.mxu0 %v4192
    %v5006 = vpop.f32.mrf.mxu0
    %v5007 = vadd.f32 %v4988, %v5006
    %v5008 = vpop.f32.mrf.mxu0
    %v5009 = vadd.f32 %v4990, %v5008
    %5010 = vdwg.mxu0
    %5011 = vmatpush.bf16.msra.mxu0 %v4809
    %5012 = vmatpush.bf16.msra.mxu0 %v4805
    %5013 = vmatpush.bf16.msra.mxu0 %v4801
    %5014 = vmatpush.bf16.msra.mxu0 %v4797
    %5015 = vmatpush.bf16.msra.mxu0 %v4793
    %5016 = vmatpush.bf16.msra.mxu0 %v4789
    %5017 = vmatpush.bf16.msra.mxu0 %v4785
    %5018 = vmatpush.bf16.msra.mxu0 %v4781
    %5019 = vmatmul.bf16.gmra.mxu0 %v4189
    %v5020 = vpop.f32.mrf.mxu0
    %v5021 = vadd.f32 %v5002, %v5020
    %v5022 = vpop.f32.mrf.mxu0
    %v5023 = vadd.f32 %v5004, %v5022
    %5024 = vmatmul.bf16.gmra.mxu0 %v4193
    %v5025 = vpop.f32.mrf.mxu0
    %v5026 = vadd.f32 %v5007, %v5025
    %v5027 = vpop.f32.mrf.mxu0
    %v5028 = vadd.f32 %v5009, %v5027
    %5029 = vdwg.mxu0
    %5030 = vmatpush.bf16.msra.mxu0 %v4841
    %5031 = vmatpush.bf16.msra.mxu0 %v4837
    %5032 = vmatpush.bf16.msra.mxu0 %v4833
    %5033 = vmatpush.bf16.msra.mxu0 %v4829
    %5034 = vmatpush.bf16.msra.mxu0 %v4825
    %5035 = vmatpush.bf16.msra.mxu0 %v4821
    %5036 = vmatpush.bf16.msra.mxu0 %v4817
    %5037 = vmatpush.bf16.msra.mxu0 %v4813
    %5038 = vmatmul.bf16.gmra.mxu0 %v4190
    %v5039 = vpop.f32.mrf.mxu0
    %v5040 = vadd.f32 %v5021, %v5039
    %v5041 = vpop.f32.mrf.mxu0
    %v5042 = vadd.f32 %v5023, %v5041
    %5043 = vmatmul.bf16.gmra.mxu0 %v4194
    %v5044 = vpop.f32.mrf.mxu0
    %v5045 = vadd.f32 %v5026, %v5044
    %v5046 = vpop.f32.mrf.mxu0
    %v5047 = vadd.f32 %v5028, %v5046
    %5048 = vdwg.mxu0
    %5049 = vmatpush.bf16.msra.mxu0 %v4746
    %5050 = vmatpush.bf16.msra.mxu0 %v4742
    %5051 = vmatpush.bf16.msra.mxu0 %v4738
    %5052 = vmatpush.bf16.msra.mxu0 %v4734
    %5053 = vmatpush.bf16.msra.mxu0 %v4730
    %5054 = vmatpush.bf16.msra.mxu0 %v4726
    %5055 = vmatpush.bf16.msra.mxu0 %v4722
    %5056 = vmatpush.bf16.msra.mxu0 %v4718
    %5057 = vmatmul.bf16.gmra.mxu0 %v4187
    %v5058 = vpop.f32.mrf.mxu0
    %v5059 = vadd.f32 %v4326, %v5058
    %v5060 = vpop.f32.mrf.mxu0
    %v5061 = vadd.f32 %v4326, %v5060
    %5062 = vmatmul.bf16.gmra.mxu0 %v4191
    %v5063 = vpop.f32.mrf.mxu0
    %v5064 = vadd.f32 %v4326, %v5063
    %v5065 = vpop.f32.mrf.mxu0
    %v5066 = vadd.f32 %v4326, %v5065
    %5067 = vdwg.mxu0
    %5068 = vmatpush.bf16.msra.mxu0 %v4778
    %5069 = vmatpush.bf16.msra.mxu0 %v4774
    %5070 = vmatpush.bf16.msra.mxu0 %v4770
    %5071 = vmatpush.bf16.msra.mxu0 %v4766
    %5072 = vmatpush.bf16.msra.mxu0 %v4762
    %5073 = vmatpush.bf16.msra.mxu0 %v4758
    %5074 = vmatpush.bf16.msra.mxu0 %v4754
    %5075 = vmatpush.bf16.msra.mxu0 %v4750
    %5076 = vmatmul.bf16.gmra.mxu0 %v4188
    %v5077 = vpop.f32.mrf.mxu0
    %v5078 = vadd.f32 %v5059, %v5077
    %v5079 = vpop.f32.mrf.mxu0
    %v5080 = vadd.f32 %v5061, %v5079
    %5081 = vmatmul.bf16.gmra.mxu0 %v4192
    %v5082 = vpop.f32.mrf.mxu0
    %v5083 = vadd.f32 %v5064, %v5082
    %v5084 = vpop.f32.mrf.mxu0
    %v5085 = vadd.f32 %v5066, %v5084
    %5086 = vdwg.mxu0
    %5087 = vmatpush.bf16.msra.mxu0 %v4810
    %5088 = vmatpush.bf16.msra.mxu0 %v4806
    %5089 = vmatpush.bf16.msra.mxu0 %v4802
    %5090 = vmatpush.bf16.msra.mxu0 %v4798
    %5091 = vmatpush.bf16.msra.mxu0 %v4794
    %5092 = vmatpush.bf16.msra.mxu0 %v4790
    %5093 = vmatpush.bf16.msra.mxu0 %v4786
    %5094 = vmatpush.bf16.msra.mxu0 %v4782
    %5095 = vmatmul.bf16.gmra.mxu0 %v4189
    %v5096 = vpop.f32.mrf.mxu0
    %v5097 = vadd.f32 %v5078, %v5096
    %v5098 = vpop.f32.mrf.mxu0
    %v5099 = vadd.f32 %v5080, %v5098
    %5100 = vmatmul.bf16.gmra.mxu0 %v4193
    %v5101 = vpop.f32.mrf.mxu0
    %v5102 = vadd.f32 %v5083, %v5101
    %v5103 = vpop.f32.mrf.mxu0
    %v5104 = vadd.f32 %v5085, %v5103
    %5105 = vdwg.mxu0
    %5106 = vmatpush.bf16.msra.mxu0 %v4842
    %5107 = vmatpush.bf16.msra.mxu0 %v4838
    %5108 = vmatpush.bf16.msra.mxu0 %v4834
    %5109 = vmatpush.bf16.msra.mxu0 %v4830
    %5110 = vmatpush.bf16.msra.mxu0 %v4826
    %5111 = vmatpush.bf16.msra.mxu0 %v4822
    %5112 = vmatpush.bf16.msra.mxu0 %v4818
    %5113 = vmatpush.bf16.msra.mxu0 %v4814
    %5114 = vmatmul.bf16.gmra.mxu0 %v4190
    %v5115 = vpop.f32.mrf.mxu0
    %v5116 = vadd.f32 %v5097, %v5115
    %v5117 = vpop.f32.mrf.mxu0
    %v5118 = vadd.f32 %v5099, %v5117
    %5119 = vmatmul.bf16.gmra.mxu0 %v4194
    %v5120 = vpop.f32.mrf.mxu0
    %v5121 = vadd.f32 %v5102, %v5120
    %v5122 = vpop.f32.mrf.mxu0
    %v5123 = vadd.f32 %v5104, %v5122
    %5124 = vdwg.mxu0
    %5125 = vmatpush.bf16.msra.mxu0 %v4747
    %5126 = vmatpush.bf16.msra.mxu0 %v4743
    %5127 = vmatpush.bf16.msra.mxu0 %v4739
    %5128 = vmatpush.bf16.msra.mxu0 %v4735
    %5129 = vmatpush.bf16.msra.mxu0 %v4731
    %5130 = vmatpush.bf16.msra.mxu0 %v4727
    %5131 = vmatpush.bf16.msra.mxu0 %v4723
    %5132 = vmatpush.bf16.msra.mxu0 %v4719
    %5133 = vmatmul.bf16.gmra.mxu0 %v4187
    %v5134 = vpop.f32.mrf.mxu0
    %v5135 = vadd.f32 %v4327, %v5134
    %v5136 = vpop.f32.mrf.mxu0
    %v5137 = vadd.f32 %v4327, %v5136
    %5138 = vmatmul.bf16.gmra.mxu0 %v4191
    %v5139 = vpop.f32.mrf.mxu0
    %v5140 = vadd.f32 %v4327, %v5139
    %v5141 = vpop.f32.mrf.mxu0
    %v5142 = vadd.f32 %v4327, %v5141
    %5143 = vdwg.mxu0
    %5144 = vmatpush.bf16.msra.mxu0 %v4779
    %5145 = vmatpush.bf16.msra.mxu0 %v4775
    %5146 = vmatpush.bf16.msra.mxu0 %v4771
    %5147 = vmatpush.bf16.msra.mxu0 %v4767
    %5148 = vmatpush.bf16.msra.mxu0 %v4763
    %5149 = vmatpush.bf16.msra.mxu0 %v4759
    %5150 = vmatpush.bf16.msra.mxu0 %v4755
    %5151 = vmatpush.bf16.msra.mxu0 %v4751
    %5152 = vmatmul.bf16.gmra.mxu0 %v4188
    %v5153 = vpop.f32.mrf.mxu0
    %v5154 = vadd.f32 %v5135, %v5153
    %v5155 = vpop.f32.mrf.mxu0
    %v5156 = vadd.f32 %v5137, %v5155
    %5157 = vmatmul.bf16.gmra.mxu0 %v4192
    %v5158 = vpop.f32.mrf.mxu0
    %v5159 = vadd.f32 %v5140, %v5158
    %v5160 = vpop.f32.mrf.mxu0
    %v5161 = vadd.f32 %v5142, %v5160
    %5162 = vdwg.mxu0
    %5163 = vmatpush.bf16.msra.mxu0 %v4811
    %5164 = vmatpush.bf16.msra.mxu0 %v4807
    %5165 = vmatpush.bf16.msra.mxu0 %v4803
    %5166 = vmatpush.bf16.msra.mxu0 %v4799
    %5167 = vmatpush.bf16.msra.mxu0 %v4795
    %5168 = vmatpush.bf16.msra.mxu0 %v4791
    %5169 = vmatpush.bf16.msra.mxu0 %v4787
    %5170 = vmatpush.bf16.msra.mxu0 %v4783
    %5171 = vmatmul.bf16.gmra.mxu0 %v4189
    %v5172 = vpop.f32.mrf.mxu0
    %v5173 = vadd.f32 %v5154, %v5172
    %v5174 = vpop.f32.mrf.mxu0
    %v5175 = vadd.f32 %v5156, %v5174
    %5176 = vmatmul.bf16.gmra.mxu0 %v4193
    %v5177 = vpop.f32.mrf.mxu0
    %v5178 = vadd.f32 %v5159, %v5177
    %v5179 = vpop.f32.mrf.mxu0
    %v5180 = vadd.f32 %v5161, %v5179
    %5181 = vdwg.mxu0
    %5182 = vmatpush.bf16.msra.mxu0 %v4843
    %5183 = vmatpush.bf16.msra.mxu0 %v4839
    %5184 = vmatpush.bf16.msra.mxu0 %v4835
    %5185 = vmatpush.bf16.msra.mxu0 %v4831
    %5186 = vmatpush.bf16.msra.mxu0 %v4827
    %5187 = vmatpush.bf16.msra.mxu0 %v4823
    %5188 = vmatpush.bf16.msra.mxu0 %v4819
    %5189 = vmatpush.bf16.msra.mxu0 %v4815
    %5190 = vmatmul.bf16.gmra.mxu0 %v4190
    %v5191 = vpop.f32.mrf.mxu0
    %v5192 = vadd.f32 %v5173, %v5191
    %v5193 = vpop.f32.mrf.mxu0
    %v5194 = vadd.f32 %v5175, %v5193
    %5195 = vmatmul.bf16.gmra.mxu0 %v4194
    %v5196 = vpop.f32.mrf.mxu0
    %v5197 = vadd.f32 %v5178, %v5196
    %v5198 = vpop.f32.mrf.mxu0
    %v5199 = vadd.f32 %v5180, %v5198
    %5200 = vdwg.mxu0
    %5201 = vmatpush.bf16.msra.mxu0 %v4748
    %5202 = vmatpush.bf16.msra.mxu0 %v4744
    %5203 = vmatpush.bf16.msra.mxu0 %v4740
    %5204 = vmatpush.bf16.msra.mxu0 %v4736
    %5205 = vmatpush.bf16.msra.mxu0 %v4732
    %5206 = vmatpush.bf16.msra.mxu0 %v4728
    %5207 = vmatpush.bf16.msra.mxu0 %v4724
    %5208 = vmatpush.bf16.msra.mxu0 %v4720
    %5209 = vmatmul.bf16.gmra.mxu0 %v4187
    %v5210 = vpop.f32.mrf.mxu0
    %v5211 = vadd.f32 %v4328, %v5210
    %v5212 = vpop.f32.mrf.mxu0
    %v5213 = vadd.f32 %v4328, %v5212
    %5214 = vmatmul.bf16.gmra.mxu0 %v4191
    %v5215 = vpop.f32.mrf.mxu0
    %v5216 = vadd.f32 %v4328, %v5215
    %v5217 = vpop.f32.mrf.mxu0
    %v5218 = vadd.f32 %v4328, %v5217
    %5219 = vdwg.mxu0
    %5220 = vmatpush.bf16.msra.mxu0 %v4780
    %5221 = vmatpush.bf16.msra.mxu0 %v4776
    %5222 = vmatpush.bf16.msra.mxu0 %v4772
    %5223 = vmatpush.bf16.msra.mxu0 %v4768
    %5224 = vmatpush.bf16.msra.mxu0 %v4764
    %5225 = vmatpush.bf16.msra.mxu0 %v4760
    %5226 = vmatpush.bf16.msra.mxu0 %v4756
    %5227 = vmatpush.bf16.msra.mxu0 %v4752
    %5228 = vmatmul.bf16.gmra.mxu0 %v4188
    %v5229 = vpop.f32.mrf.mxu0
    %v5230 = vadd.f32 %v5211, %v5229
    %v5231 = vpop.f32.mrf.mxu0
    %v5232 = vadd.f32 %v5213, %v5231
    %5233 = vmatmul.bf16.gmra.mxu0 %v4192
    %v5234 = vpop.f32.mrf.mxu0
    %v5235 = vadd.f32 %v5216, %v5234
    %v5236 = vpop.f32.mrf.mxu0
    %v5237 = vadd.f32 %v5218, %v5236
    %5238 = vdwg.mxu0
    %5239 = vmatpush.bf16.msra.mxu0 %v4812
    %5240 = vmatpush.bf16.msra.mxu0 %v4808
    %5241 = vmatpush.bf16.msra.mxu0 %v4804
    %5242 = vmatpush.bf16.msra.mxu0 %v4800
    %5243 = vmatpush.bf16.msra.mxu0 %v4796
    %5244 = vmatpush.bf16.msra.mxu0 %v4792
    %5245 = vmatpush.bf16.msra.mxu0 %v4788
    %5246 = vmatpush.bf16.msra.mxu0 %v4784
    %5247 = vmatmul.bf16.gmra.mxu0 %v4189
    %v5248 = vpop.f32.mrf.mxu0
    %v5249 = vadd.f32 %v5230, %v5248
    %v5250 = vpop.f32.mrf.mxu0
    %v5251 = vadd.f32 %v5232, %v5250
    %5252 = vmatmul.bf16.gmra.mxu0 %v4193
    %v5253 = vpop.f32.mrf.mxu0
    %v5254 = vadd.f32 %v5235, %v5253
    %v5255 = vpop.f32.mrf.mxu0
    %v5256 = vadd.f32 %v5237, %v5255
    %5257 = vdwg.mxu0
    %5258 = vmatpush.bf16.msra.mxu0 %v4844
    %5259 = vmatpush.bf16.msra.mxu0 %v4840
    %5260 = vmatpush.bf16.msra.mxu0 %v4836
    %5261 = vmatpush.bf16.msra.mxu0 %v4832
    %5262 = vmatpush.bf16.msra.mxu0 %v4828
    %5263 = vmatpush.bf16.msra.mxu0 %v4824
    %5264 = vmatpush.bf16.msra.mxu0 %v4820
    %5265 = vmatpush.bf16.msra.mxu0 %v4816
    %5266 = vmatmul.bf16.gmra.mxu0 %v4190
    %v5267 = vpop.f32.mrf.mxu0
    %v5268 = vadd.f32 %v5249, %v5267
    %v5269 = vpop.f32.mrf.mxu0
    %v5270 = vadd.f32 %v5251, %v5269
    %5271 = vmatmul.bf16.gmra.mxu0 %v4194
    %v5272 = vpop.f32.mrf.mxu0
    %v5273 = vadd.f32 %v5254, %v5272
    %v5274 = vpop.f32.mrf.mxu0
    %v5275 = vadd.f32 %v5256, %v5274
    %5276 = vdwg.mxu0
    %5277 = vst [vmem:[#allocation2] sm:$0xff] %v5040
    %5278 = vst [vmem:[#allocation2 + $0x8] sm:$0xff] %v5116
    %5279 = vst [vmem:[#allocation2 + $0x10] sm:$0xff] %v5192
    %5280 = vst [vmem:[#allocation2 + $0x18] sm:$0xff] %v5268
    %5281 = vst [vmem:[#allocation2 + $0x20] sm:$0xff] %v5042
    %5282 = vst [vmem:[#allocation2 + $0x28] sm:$0xff] %v5118
    %5283 = vst [vmem:[#allocation2 + $0x30] sm:$0xff] %v5194
    %5284 = vst [vmem:[#allocation2 + $0x38] sm:$0xff] %v5270
    %5285 = vst [vmem:[#allocation2 + $0x40] sm:$0xff] %v5045
    %5286 = vst [vmem:[#allocation2 + $0x48] sm:$0xff] %v5121
    %5287 = vst [vmem:[#allocation2 + $0x50] sm:$0xff] %v5197
    %5288 = vst [vmem:[#allocation2 + $0x58] sm:$0xff] %v5273
    %5289 = vst [vmem:[#allocation2 + $0x60] sm:$0xff] %v5047
    %5290 = vst [vmem:[#allocation2 + $0x68] sm:$0xff] %v5123
    %5291 = vst [vmem:[#allocation2 + $0x70] sm:$0xff] %v5199
    %5292 = vst [vmem:[#allocation2 + $0x78] sm:$0xff] %v5275
    // Predicated region
    $region22: #{test_attention_forward.1} parent=1 // pred_check
      _
    $region23: #{test_attention_forward.1} parent=1 // pred_check_branch
      %5294 = sbr.rel (0) target = $region25
    $region24: #{test_attention_forward.1} parent=1 // pred_region
      %5296 = vsyncadd [#allocation3], 0
      %s5297 = sshll.u32 [#allocation2], 4
      %s5298 = int_to_ptr.vmem [resolvable:$true] %s5297
      %s5299 = sshll.u32 %s5, 4
      %s5300 = int_to_ptr.hbm [resolvable:$true] %s5299
      %5305 = dma.vmem_to_hbm [thread:$0]  %s5298, 2048, %s5300, [#allocation3], 512, 512, 32
    $region25: #{test_attention_forward.1} parent=1 // pred_fallthru
      _
    // Predicated region
    $region26: #{test_attention_forward.1} parent=1 // pred_check
      _
    $region27: #{test_attention_forward.1} parent=1 // pred_check_branch
      %5307 = sbr.rel (0) target = $region29
    $region28: #{test_attention_forward.1} parent=1 // pred_region
      %5309 = dma.done [#allocation3], 2048
    $region29: #{test_attention_forward.1} parent=1 // pred_fallthru
      _
    %5310 = vsyncpa [#allocation3], 1

</llo_original>
